<compile_context>
chip_gen: v6e
topology: v6e:2x2x1
jax: 0.10.0
libtpu: 0.0.40
codegen_flags: <defaults>
</compile_context>

<pallas_src>
import functools

import jax
import jax.numpy as jnp
from jax.experimental import pallas as pl
from jax.experimental.pallas import tpu as pltpu


KH = KW = 4          # kernel size of both convs
C_IN = 3             # conv1 input channels
C_MID = 64           # conv1 output channels
NEG_SLOPE = 0.2      # LeakyReLU slope


# ----------------------------------------------------------------------------
# Fused kernel: conv1(3->64, s=2, p=1) + LeakyReLU + conv2(64->1, s=1, p=1)
# ----------------------------------------------------------------------------
def _disc_kernel(x_ref, w1_ref, b1_ref, w2_ref, b2_ref, out_ref, hpad_ref,
                 *, ho, wo, ho2, wo2):
    """Per-batch-element fused discriminator forward.

    x_ref    : (4, Hs, Ws, 3)  f32  stride-2 space-to-depth planes of the
                                    zero-padded image (plane index = 2*r + s).
    w1_ref   : (16, 3, 64)    bf16  conv1 weights, tap-major (di*4 + dj).
    b1_ref   : (1, 64)         f32  conv1 bias.
    w2_ref   : (16, 1, 64)     f32  conv2 weights, tap-major.
    b2_ref   : (1,)            f32  conv2 bias (SMEM scalar).
    out_ref  : (1, ho2, wo2)   f32  conv2 output for this batch element.
    hpad_ref : (ho+2, wo+2, 64) f32 VMEM scratch: padded conv1 feature map.
    """
    # ---- conv1: one small bf16 MXU GEMM per (di, dj) tap, f32 accumulate ----
    acc1 = jnp.zeros((ho * wo, C_MID), jnp.float32)
    for di in range(KH):
        r, a = di % 2, di // 2
        for dj in range(KW):
            s, b = dj % 2, dj // 2
            plane = x_ref[2 * r + s]                      # (Hs, Ws, 3)
            win = plane[a:a + ho, b:b + wo, :]            # (ho, wo, 3)
            win = win.reshape(ho * wo, C_IN).astype(jnp.bfloat16)
            acc1 = acc1 + jnp.dot(win, w1_ref[di * KW + dj],
                                  preferred_element_type=jnp.float32)
    h = acc1 + b1_ref[...]                                # bias (1, 64) bcast
    h = jnp.where(h >= 0.0, h, NEG_SLOPE * h)             # LeakyReLU(0.2)

    # ---- keep the feature map (with a zero halo) in VMEM scratch ------------
    hpad_ref[...] = jnp.zeros_like(hpad_ref)
    hpad_ref[1:ho + 1, 1:wo + 1, :] = h.reshape(ho, wo, C_MID)

    # ---- conv2 (C_out == 1): VPU multiply-accumulate + cross-lane reduce ----
    acc2 = jnp.zeros((ho2, wo2, C_MID), jnp.float32)
    for di in range(KH):
        for dj in range(KW):
            win = hpad_ref[di:di + ho2, dj:dj + wo2, :]   # (ho2, wo2, 64)
            acc2 = acc2 + win * w2_ref[di * KW + dj]      # (1, 64) broadcast
    out_ref[0] = jnp.sum(acc2, axis=2) + b2_ref[0]


# ----------------------------------------------------------------------------
# Wrapper: layout plumbing + pallas_call
# ----------------------------------------------------------------------------
def discriminator_forward(img, params):
    """img: (N, 3, H, W) f32 (NCHW) -> (N, 1, H//2 - 1, W//2 - 1) f32."""
    n, c, hh, ww = img.shape
    assert c == C_IN
    pad = 1
    ho = (hh + 2 * pad - KH) // 2 + 1                 # conv1 output spatial
    wo = (ww + 2 * pad - KW) // 2 + 1
    ho2 = ho + 2 * pad - KW + 1                       # conv2 output spatial
    wo2 = wo + 2 * pad - KW + 1

    # Single cheap layout pass over the small 3-channel input.
    x = jnp.transpose(img, (0, 2, 3, 1))              # NHWC (C on lanes)
    hp, wp = hh + 2 * pad, ww + 2 * pad
    hp2, wp2 = hp + hp % 2, wp + wp % 2               # even dims for s2d
    xp = jnp.pad(x, ((0, 0), (pad, hp2 - hh - pad),
                     (pad, wp2 - ww - pad), (0, 0)))
    hs, ws = hp2 // 2, wp2 // 2
    # space-to-depth: xs[n*4 + 2r + s, i, j, c] == xp[n, 2i + r, 2j + s, c]
    xs = xp.reshape(n, hs, 2, ws, 2, c).transpose(0, 2, 4, 1, 3, 5)
    xs = xs.reshape(n * 4, hs, ws, c)

    # Weight / bias layouts (tiny one-time transforms).
    w1 = jnp.transpose(params["w1"], (2, 3, 1, 0)).reshape(KH * KW, C_IN, C_MID)
    w1 = w1.astype(jnp.bfloat16)                      # MXU operands in bf16
    b1 = params["b1"].reshape(1, C_MID).astype(jnp.float32)
    w2 = jnp.transpose(params["w2"], (2, 3, 0, 1)).reshape(KH * KW, 1, C_MID)
    w2 = w2.astype(jnp.float32)
    b2 = params["b2"].astype(jnp.float32)             # (1,) scalar -> SMEM

    kernel = functools.partial(_disc_kernel, ho=ho, wo=wo, ho2=ho2, wo2=wo2)
    flops = n * (2 * ho * wo * (C_IN * KH * KW) * C_MID
                 + 2 * ho2 * wo2 * C_MID * KH * KW)
    bytes_accessed = (xs.size * 4 + w1.size * 2 + b1.size * 4
                      + w2.size * 4 + b2.size * 4 + n * ho2 * wo2 * 4)

    out = pl.pallas_call(
        kernel,
        out_shape=jax.ShapeDtypeStruct((n, ho2, wo2), jnp.float32),
        grid=(n,),
        in_specs=[
            pl.BlockSpec((4, hs, ws, c), lambda i: (i, 0, 0, 0)),
            pl.BlockSpec((KH * KW, C_IN, C_MID), lambda i: (0, 0, 0)),
            pl.BlockSpec((1, C_MID), lambda i: (0, 0)),
            pl.BlockSpec((KH * KW, 1, C_MID), lambda i: (0, 0, 0)),
            pl.BlockSpec(memory_space=pltpu.MemorySpace.SMEM),
        ],
        out_specs=pl.BlockSpec((1, ho2, wo2), lambda i: (i, 0, 0)),
        scratch_shapes=[pltpu.VMEM((ho + 2, wo + 2, C_MID), jnp.float32)],
        compiler_params=pltpu.CompilerParams(
            dimension_semantics=("parallel",)),
        cost_estimate=pl.CostEstimate(flops=flops, transcendentals=0,
                                      bytes_accessed=bytes_accessed),
    )(xs, w1, b1, w2, b2)
    return out.reshape(n, 1, ho2, wo2)


def init_params(key):
    k1, k2, k3, k4 = jax.random.split(key, 4)
    # Conv2d(3, 64, 4, stride=2, padding=1)
    w1 = jax.random.normal(k1, (C_MID, C_IN, KH, KW), jnp.float32) * 0.05
    b1 = jax.random.normal(k2, (C_MID,), jnp.float32) * 0.05
    # Second conv (see TODO above): effective in_channels = 64, out = 1, k=4.
    w2 = jax.random.normal(k3, (1, C_MID, KH, KW), jnp.float32) * 0.05
    b2 = jax.random.normal(k4, (1,), jnp.float32) * 0.05
    return {"w1": w1, "b1": b1, "w2": w2, "b2": b2}


# ----------------------------------------------------------------------------
# Pure-JAX reference (conv1 in bf16/f32-acc to match the kernel's MXU dtype).
# ----------------------------------------------------------------------------
def discriminator_ref(img, params):
    h = jax.lax.conv_general_dilated(
        img.astype(jnp.bfloat16), params["w1"].astype(jnp.bfloat16),
        window_strides=(2, 2), padding=[(1, 1), (1, 1)],
        dimension_numbers=("NCHW", "OIHW", "NCHW"),
        preferred_element_type=jnp.float32)
    h = h + params["b1"].reshape(1, -1, 1, 1)
    h = jnp.where(h >= 0.0, h, NEG_SLOPE * h)
    out = jax.lax.conv_general_dilated(
        h, params["w2"], window_strides=(1, 1), padding=[(1, 1), (1, 1)],
        dimension_numbers=("NCHW", "OIHW", "NCHW"),
        precision=jax.lax.Precision.HIGHEST)
    return out + params["b2"].reshape(1, -1, 1, 1)


if __name__ == "__main__":
    key = jax.random.PRNGKey(0)
    pkey, xkey = jax.random.split(key)
    params = init_params(pkey)

    # Small NCHW input: batch=2, channels=3, spatial=16x16.
    img = jax.random.normal(xkey, (2, 3, 16, 16), jnp.float32)

    out = jax.block_until_ready(discriminator_forward(img, params))
    ref = discriminator_ref(img, params)

    assert out.shape == (2, 1, 7, 7), out.shape
    assert jnp.allclose(out, ref, atol=2e-3, rtol=2e-3), \
        float(jnp.max(jnp.abs(out - ref)))

    print("KERNEL_OK")
</pallas_src>

<mosaic_0001>
module attributes {stable_mosaic.version = 11 : i64} {
  func.func @_disc_kernel(%arg0: i32, %arg1: memref<4x9x9x3xf32, #tpu.memory_space<vmem>>, %arg2: memref<16x3x64xbf16, #tpu.memory_space<vmem>>, %arg3: memref<1x64xf32, #tpu.memory_space<vmem>>, %arg4: memref<16x1x64xf32, #tpu.memory_space<vmem>>, %arg5: memref<1xf32, #tpu.memory_space<smem>>, %arg6: memref<1x7x7xf32, #tpu.memory_space<vmem>>, %arg7: memref<10x10x64xf32, #tpu.memory_space<vmem>>) attributes {dimension_semantics = [#tpu.dimension_semantics<parallel>], iteration_bounds = array<i64: 2>, scalar_prefetch = 0 : i64, scratch_operands = 1 : i64, tpu.core_type = #tpu.core_type<tc>, window_params = [{transform_indices = @transform_0, window_bounds = array<i64: 4, 9, 9, 3>}, {pipeline_mode = #tpu.pipeline_mode<synchronous>, transform_indices = @transform_1, window_bounds = array<i64: 16, 3, 64>}, {pipeline_mode = #tpu.pipeline_mode<synchronous>, transform_indices = @transform_2, window_bounds = array<i64: 1, 64>}, {pipeline_mode = #tpu.pipeline_mode<synchronous>, transform_indices = @transform_3, window_bounds = array<i64: 16, 1, 64>}, {transform_indices = @transform_4, window_bounds = array<i64: 1>}, {transform_indices = @transform_5, window_bounds = array<i64: 1, 7, 7>}]} {
    %cst = arith.constant 0.000000e+00 : f32
    %0 = vector.broadcast %cst : f32 to vector<64x64xf32>
    %c0 = arith.constant 0 : index
    %c0_0 = arith.constant 0 : index
    %c0_1 = arith.constant 0 : index
    %c0_2 = arith.constant 0 : index
    %1 = vector.load %arg1[%c0, %c0_0, %c0_1, %c0_2] : memref<4x9x9x3xf32, #tpu.memory_space<vmem>>, vector<1x9x9x3xf32>
    %2 = vector.shape_cast %1 : vector<1x9x9x3xf32> to vector<9x9x3xf32>
    %3 = vector.extract_strided_slice %2 {offsets = [0, 0, 0], sizes = [8, 8, 3], strides = [1, 1, 1]} : vector<9x9x3xf32> to vector<8x8x3xf32>
    %4 = vector.shape_cast %3 : vector<8x8x3xf32> to vector<64x3xf32>
    %5 = arith.truncf %4 : vector<64x3xf32> to vector<64x3xbf16>
    %c0_3 = arith.constant 0 : index
    %c0_4 = arith.constant 0 : index
    %c0_5 = arith.constant 0 : index
    %6 = vector.load %arg2[%c0_3, %c0_4, %c0_5] : memref<16x3x64xbf16, #tpu.memory_space<vmem>>, vector<1x3x64xbf16>
    %7 = vector.shape_cast %6 : vector<1x3x64xbf16> to vector<3x64xbf16>
    %cst_6 = arith.constant dense<0.000000e+00> : vector<64x64xf32>
    %8 = tpu.matmul %5, %7, %cst_6 {dimension_numbers = #tpu.dot_dimension_numbers<[1], [0], [0], [1], [0, 0, 1, 1], [], []>} : vector<64x3xbf16>, vector<3x64xbf16>, vector<64x64xf32> -> vector<64x64xf32>
    %9 = arith.addf %0, %8 : vector<64x64xf32>
    %c1 = arith.constant 1 : index
    %c0_7 = arith.constant 0 : index
    %c0_8 = arith.constant 0 : index
    %c0_9 = arith.constant 0 : index
    %10 = vector.load %arg1[%c1, %c0_7, %c0_8, %c0_9] : memref<4x9x9x3xf32, #tpu.memory_space<vmem>>, vector<1x9x9x3xf32>
    %11 = vector.shape_cast %10 : vector<1x9x9x3xf32> to vector<9x9x3xf32>
    %12 = vector.extract_strided_slice %11 {offsets = [0, 0, 0], sizes = [8, 8, 3], strides = [1, 1, 1]} : vector<9x9x3xf32> to vector<8x8x3xf32>
    %13 = vector.shape_cast %12 : vector<8x8x3xf32> to vector<64x3xf32>
    %14 = arith.truncf %13 : vector<64x3xf32> to vector<64x3xbf16>
    %c1_10 = arith.constant 1 : index
    %c0_11 = arith.constant 0 : index
    %c0_12 = arith.constant 0 : index
    %15 = vector.load %arg2[%c1_10, %c0_11, %c0_12] : memref<16x3x64xbf16, #tpu.memory_space<vmem>>, vector<1x3x64xbf16>
    %16 = vector.shape_cast %15 : vector<1x3x64xbf16> to vector<3x64xbf16>
    %cst_13 = arith.constant dense<0.000000e+00> : vector<64x64xf32>
    %17 = tpu.matmul %14, %16, %cst_13 {dimension_numbers = #tpu.dot_dimension_numbers<[1], [0], [0], [1], [0, 0, 1, 1], [], []>} : vector<64x3xbf16>, vector<3x64xbf16>, vector<64x64xf32> -> vector<64x64xf32>
    %18 = arith.addf %9, %17 : vector<64x64xf32>
    %c0_14 = arith.constant 0 : index
    %c0_15 = arith.constant 0 : index
    %c0_16 = arith.constant 0 : index
    %c0_17 = arith.constant 0 : index
    %19 = vector.load %arg1[%c0_14, %c0_15, %c0_16, %c0_17] : memref<4x9x9x3xf32, #tpu.memory_space<vmem>>, vector<1x9x9x3xf32>
    %20 = vector.shape_cast %19 : vector<1x9x9x3xf32> to vector<9x9x3xf32>
    %21 = vector.extract_strided_slice %20 {offsets = [0, 1, 0], sizes = [8, 8, 3], strides = [1, 1, 1]} : vector<9x9x3xf32> to vector<8x8x3xf32>
    %22 = vector.shape_cast %21 : vector<8x8x3xf32> to vector<64x3xf32>
    %23 = arith.truncf %22 : vector<64x3xf32> to vector<64x3xbf16>
    %c2 = arith.constant 2 : index
    %c0_18 = arith.constant 0 : index
    %c0_19 = arith.constant 0 : index
    %24 = vector.load %arg2[%c2, %c0_18, %c0_19] : memref<16x3x64xbf16, #tpu.memory_space<vmem>>, vector<1x3x64xbf16>
    %25 = vector.shape_cast %24 : vector<1x3x64xbf16> to vector<3x64xbf16>
    %cst_20 = arith.constant dense<0.000000e+00> : vector<64x64xf32>
    %26 = tpu.matmul %23, %25, %cst_20 {dimension_numbers = #tpu.dot_dimension_numbers<[1], [0], [0], [1], [0, 0, 1, 1], [], []>} : vector<64x3xbf16>, vector<3x64xbf16>, vector<64x64xf32> -> vector<64x64xf32>
    %27 = arith.addf %18, %26 : vector<64x64xf32>
    %c1_21 = arith.constant 1 : index
    %c0_22 = arith.constant 0 : index
    %c0_23 = arith.constant 0 : index
    %c0_24 = arith.constant 0 : index
    %28 = vector.load %arg1[%c1_21, %c0_22, %c0_23, %c0_24] : memref<4x9x9x3xf32, #tpu.memory_space<vmem>>, vector<1x9x9x3xf32>
    %29 = vector.shape_cast %28 : vector<1x9x9x3xf32> to vector<9x9x3xf32>
    %30 = vector.extract_strided_slice %29 {offsets = [0, 1, 0], sizes = [8, 8, 3], strides = [1, 1, 1]} : vector<9x9x3xf32> to vector<8x8x3xf32>
    %31 = vector.shape_cast %30 : vector<8x8x3xf32> to vector<64x3xf32>
    %32 = arith.truncf %31 : vector<64x3xf32> to vector<64x3xbf16>
    %c3 = arith.constant 3 : index
    %c0_25 = arith.constant 0 : index
    %c0_26 = arith.constant 0 : index
    %33 = vector.load %arg2[%c3, %c0_25, %c0_26] : memref<16x3x64xbf16, #tpu.memory_space<vmem>>, vector<1x3x64xbf16>
    %34 = vector.shape_cast %33 : vector<1x3x64xbf16> to vector<3x64xbf16>
    %cst_27 = arith.constant dense<0.000000e+00> : vector<64x64xf32>
    %35 = tpu.matmul %32, %34, %cst_27 {dimension_numbers = #tpu.dot_dimension_numbers<[1], [0], [0], [1], [0, 0, 1, 1], [], []>} : vector<64x3xbf16>, vector<3x64xbf16>, vector<64x64xf32> -> vector<64x64xf32>
    %36 = arith.addf %27, %35 : vector<64x64xf32>
    %c2_28 = arith.constant 2 : index
    %c0_29 = arith.constant 0 : index
    %c0_30 = arith.constant 0 : index
    %c0_31 = arith.constant 0 : index
    %37 = vector.load %arg1[%c2_28, %c0_29, %c0_30, %c0_31] : memref<4x9x9x3xf32, #tpu.memory_space<vmem>>, vector<1x9x9x3xf32>
    %38 = vector.shape_cast %37 : vector<1x9x9x3xf32> to vector<9x9x3xf32>
    %39 = vector.extract_strided_slice %38 {offsets = [0, 0, 0], sizes = [8, 8, 3], strides = [1, 1, 1]} : vector<9x9x3xf32> to vector<8x8x3xf32>
    %40 = vector.shape_cast %39 : vector<8x8x3xf32> to vector<64x3xf32>
    %41 = arith.truncf %40 : vector<64x3xf32> to vector<64x3xbf16>
    %c4 = arith.constant 4 : index
    %c0_32 = arith.constant 0 : index
    %c0_33 = arith.constant 0 : index
    %42 = vector.load %arg2[%c4, %c0_32, %c0_33] : memref<16x3x64xbf16, #tpu.memory_space<vmem>>, vector<1x3x64xbf16>
    %43 = vector.shape_cast %42 : vector<1x3x64xbf16> to vector<3x64xbf16>
    %cst_34 = arith.constant dense<0.000000e+00> : vector<64x64xf32>
    %44 = tpu.matmul %41, %43, %cst_34 {dimension_numbers = #tpu.dot_dimension_numbers<[1], [0], [0], [1], [0, 0, 1, 1], [], []>} : vector<64x3xbf16>, vector<3x64xbf16>, vector<64x64xf32> -> vector<64x64xf32>
    %45 = arith.addf %36, %44 : vector<64x64xf32>
    %c3_35 = arith.constant 3 : index
    %c0_36 = arith.constant 0 : index
    %c0_37 = arith.constant 0 : index
    %c0_38 = arith.constant 0 : index
    %46 = vector.load %arg1[%c3_35, %c0_36, %c0_37, %c0_38] : memref<4x9x9x3xf32, #tpu.memory_space<vmem>>, vector<1x9x9x3xf32>
    %47 = vector.shape_cast %46 : vector<1x9x9x3xf32> to vector<9x9x3xf32>
    %48 = vector.extract_strided_slice %47 {offsets = [0, 0, 0], sizes = [8, 8, 3], strides = [1, 1, 1]} : vector<9x9x3xf32> to vector<8x8x3xf32>
    %49 = vector.shape_cast %48 : vector<8x8x3xf32> to vector<64x3xf32>
    %50 = arith.truncf %49 : vector<64x3xf32> to vector<64x3xbf16>
    %c5 = arith.constant 5 : index
    %c0_39 = arith.constant 0 : index
    %c0_40 = arith.constant 0 : index
    %51 = vector.load %arg2[%c5, %c0_39, %c0_40] : memref<16x3x64xbf16, #tpu.memory_space<vmem>>, vector<1x3x64xbf16>
    %52 = vector.shape_cast %51 : vector<1x3x64xbf16> to vector<3x64xbf16>
    %cst_41 = arith.constant dense<0.000000e+00> : vector<64x64xf32>
    %53 = tpu.matmul %50, %52, %cst_41 {dimension_numbers = #tpu.dot_dimension_numbers<[1], [0], [0], [1], [0, 0, 1, 1], [], []>} : vector<64x3xbf16>, vector<3x64xbf16>, vector<64x64xf32> -> vector<64x64xf32>
    %54 = arith.addf %45, %53 : vector<64x64xf32>
    %c2_42 = arith.constant 2 : index
    %c0_43 = arith.constant 0 : index
    %c0_44 = arith.constant 0 : index
    %c0_45 = arith.constant 0 : index
    %55 = vector.load %arg1[%c2_42, %c0_43, %c0_44, %c0_45] : memref<4x9x9x3xf32, #tpu.memory_space<vmem>>, vector<1x9x9x3xf32>
    %56 = vector.shape_cast %55 : vector<1x9x9x3xf32> to vector<9x9x3xf32>
    %57 = vector.extract_strided_slice %56 {offsets = [0, 1, 0], sizes = [8, 8, 3], strides = [1, 1, 1]} : vector<9x9x3xf32> to vector<8x8x3xf32>
    %58 = vector.shape_cast %57 : vector<8x8x3xf32> to vector<64x3xf32>
    %59 = arith.truncf %58 : vector<64x3xf32> to vector<64x3xbf16>
    %c6 = arith.constant 6 : index
    %c0_46 = arith.constant 0 : index
    %c0_47 = arith.constant 0 : index
    %60 = vector.load %arg2[%c6, %c0_46, %c0_47] : memref<16x3x64xbf16, #tpu.memory_space<vmem>>, vector<1x3x64xbf16>
    %61 = vector.shape_cast %60 : vector<1x3x64xbf16> to vector<3x64xbf16>
    %cst_48 = arith.constant dense<0.000000e+00> : vector<64x64xf32>
    %62 = tpu.matmul %59, %61, %cst_48 {dimension_numbers = #tpu.dot_dimension_numbers<[1], [0], [0], [1], [0, 0, 1, 1], [], []>} : vector<64x3xbf16>, vector<3x64xbf16>, vector<64x64xf32> -> vector<64x64xf32>
    %63 = arith.addf %54, %62 : vector<64x64xf32>
    %c3_49 = arith.constant 3 : index
    %c0_50 = arith.constant 0 : index
    %c0_51 = arith.constant 0 : index
    %c0_52 = arith.constant 0 : index
    %64 = vector.load %arg1[%c3_49, %c0_50, %c0_51, %c0_52] : memref<4x9x9x3xf32, #tpu.memory_space<vmem>>, vector<1x9x9x3xf32>
    %65 = vector.shape_cast %64 : vector<1x9x9x3xf32> to vector<9x9x3xf32>
    %66 = vector.extract_strided_slice %65 {offsets = [0, 1, 0], sizes = [8, 8, 3], strides = [1, 1, 1]} : vector<9x9x3xf32> to vector<8x8x3xf32>
    %67 = vector.shape_cast %66 : vector<8x8x3xf32> to vector<64x3xf32>
    %68 = arith.truncf %67 : vector<64x3xf32> to vector<64x3xbf16>
    %c7 = arith.constant 7 : index
    %c0_53 = arith.constant 0 : index
    %c0_54 = arith.constant 0 : index
    %69 = vector.load %arg2[%c7, %c0_53, %c0_54] : memref<16x3x64xbf16, #tpu.memory_space<vmem>>, vector<1x3x64xbf16>
    %70 = vector.shape_cast %69 : vector<1x3x64xbf16> to vector<3x64xbf16>
    %cst_55 = arith.constant dense<0.000000e+00> : vector<64x64xf32>
    %71 = tpu.matmul %68, %70, %cst_55 {dimension_numbers = #tpu.dot_dimension_numbers<[1], [0], [0], [1], [0, 0, 1, 1], [], []>} : vector<64x3xbf16>, vector<3x64xbf16>, vector<64x64xf32> -> vector<64x64xf32>
    %72 = arith.addf %63, %71 : vector<64x64xf32>
    %c0_56 = arith.constant 0 : index
    %c0_57 = arith.constant 0 : index
    %c0_58 = arith.constant 0 : index
    %c0_59 = arith.constant 0 : index
    %73 = vector.load %arg1[%c0_56, %c0_57, %c0_58, %c0_59] : memref<4x9x9x3xf32, #tpu.memory_space<vmem>>, vector<1x9x9x3xf32>
    %74 = vector.shape_cast %73 : vector<1x9x9x3xf32> to vector<9x9x3xf32>
    %75 = vector.extract_strided_slice %74 {offsets = [1, 0, 0], sizes = [8, 8, 3], strides = [1, 1, 1]} : vector<9x9x3xf32> to vector<8x8x3xf32>
    %76 = vector.shape_cast %75 : vector<8x8x3xf32> to vector<64x3xf32>
    %77 = arith.truncf %76 : vector<64x3xf32> to vector<64x3xbf16>
    %c8 = arith.constant 8 : index
    %c0_60 = arith.constant 0 : index
    %c0_61 = arith.constant 0 : index
    %78 = vector.load %arg2[%c8, %c0_60, %c0_61] : memref<16x3x64xbf16, #tpu.memory_space<vmem>>, vector<1x3x64xbf16>
    %79 = vector.shape_cast %78 : vector<1x3x64xbf16> to vector<3x64xbf16>
    %cst_62 = arith.constant dense<0.000000e+00> : vector<64x64xf32>
    %80 = tpu.matmul %77, %79, %cst_62 {dimension_numbers = #tpu.dot_dimension_numbers<[1], [0], [0], [1], [0, 0, 1, 1], [], []>} : vector<64x3xbf16>, vector<3x64xbf16>, vector<64x64xf32> -> vector<64x64xf32>
    %81 = arith.addf %72, %80 : vector<64x64xf32>
    %c1_63 = arith.constant 1 : index
    %c0_64 = arith.constant 0 : index
    %c0_65 = arith.constant 0 : index
    %c0_66 = arith.constant 0 : index
    %82 = vector.load %arg1[%c1_63, %c0_64, %c0_65, %c0_66] : memref<4x9x9x3xf32, #tpu.memory_space<vmem>>, vector<1x9x9x3xf32>
    %83 = vector.shape_cast %82 : vector<1x9x9x3xf32> to vector<9x9x3xf32>
    %84 = vector.extract_strided_slice %83 {offsets = [1, 0, 0], sizes = [8, 8, 3], strides = [1, 1, 1]} : vector<9x9x3xf32> to vector<8x8x3xf32>
    %85 = vector.shape_cast %84 : vector<8x8x3xf32> to vector<64x3xf32>
    %86 = arith.truncf %85 : vector<64x3xf32> to vector<64x3xbf16>
    %c9 = arith.constant 9 : index
    %c0_67 = arith.constant 0 : index
    %c0_68 = arith.constant 0 : index
    %87 = vector.load %arg2[%c9, %c0_67, %c0_68] : memref<16x3x64xbf16, #tpu.memory_space<vmem>>, vector<1x3x64xbf16>
    %88 = vector.shape_cast %87 : vector<1x3x64xbf16> to vector<3x64xbf16>
    %cst_69 = arith.constant dense<0.000000e+00> : vector<64x64xf32>
    %89 = tpu.matmul %86, %88, %cst_69 {dimension_numbers = #tpu.dot_dimension_numbers<[1], [0], [0], [1], [0, 0, 1, 1], [], []>} : vector<64x3xbf16>, vector<3x64xbf16>, vector<64x64xf32> -> vector<64x64xf32>
    %90 = arith.addf %81, %89 : vector<64x64xf32>
    %c0_70 = arith.constant 0 : index
    %c0_71 = arith.constant 0 : index
    %c0_72 = arith.constant 0 : index
    %c0_73 = arith.constant 0 : index
    %91 = vector.load %arg1[%c0_70, %c0_71, %c0_72, %c0_73] : memref<4x9x9x3xf32, #tpu.memory_space<vmem>>, vector<1x9x9x3xf32>
    %92 = vector.shape_cast %91 : vector<1x9x9x3xf32> to vector<9x9x3xf32>
    %93 = vector.extract_strided_slice %92 {offsets = [1, 1, 0], sizes = [8, 8, 3], strides = [1, 1, 1]} : vector<9x9x3xf32> to vector<8x8x3xf32>
    %94 = vector.shape_cast %93 : vector<8x8x3xf32> to vector<64x3xf32>
    %95 = arith.truncf %94 : vector<64x3xf32> to vector<64x3xbf16>
    %c10 = arith.constant 10 : index
    %c0_74 = arith.constant 0 : index
    %c0_75 = arith.constant 0 : index
    %96 = vector.load %arg2[%c10, %c0_74, %c0_75] : memref<16x3x64xbf16, #tpu.memory_space<vmem>>, vector<1x3x64xbf16>
    %97 = vector.shape_cast %96 : vector<1x3x64xbf16> to vector<3x64xbf16>
    %cst_76 = arith.constant dense<0.000000e+00> : vector<64x64xf32>
    %98 = tpu.matmul %95, %97, %cst_76 {dimension_numbers = #tpu.dot_dimension_numbers<[1], [0], [0], [1], [0, 0, 1, 1], [], []>} : vector<64x3xbf16>, vector<3x64xbf16>, vector<64x64xf32> -> vector<64x64xf32>
    %99 = arith.addf %90, %98 : vector<64x64xf32>
    %c1_77 = arith.constant 1 : index
    %c0_78 = arith.constant 0 : index
    %c0_79 = arith.constant 0 : index
    %c0_80 = arith.constant 0 : index
    %100 = vector.load %arg1[%c1_77, %c0_78, %c0_79, %c0_80] : memref<4x9x9x3xf32, #tpu.memory_space<vmem>>, vector<1x9x9x3xf32>
    %101 = vector.shape_cast %100 : vector<1x9x9x3xf32> to vector<9x9x3xf32>
    %102 = vector.extract_strided_slice %101 {offsets = [1, 1, 0], sizes = [8, 8, 3], strides = [1, 1, 1]} : vector<9x9x3xf32> to vector<8x8x3xf32>
    %103 = vector.shape_cast %102 : vector<8x8x3xf32> to vector<64x3xf32>
    %104 = arith.truncf %103 : vector<64x3xf32> to vector<64x3xbf16>
    %c11 = arith.constant 11 : index
    %c0_81 = arith.constant 0 : index
    %c0_82 = arith.constant 0 : index
    %105 = vector.load %arg2[%c11, %c0_81, %c0_82] : memref<16x3x64xbf16, #tpu.memory_space<vmem>>, vector<1x3x64xbf16>
    %106 = vector.shape_cast %105 : vector<1x3x64xbf16> to vector<3x64xbf16>
    %cst_83 = arith.constant dense<0.000000e+00> : vector<64x64xf32>
    %107 = tpu.matmul %104, %106, %cst_83 {dimension_numbers = #tpu.dot_dimension_numbers<[1], [0], [0], [1], [0, 0, 1, 1], [], []>} : vector<64x3xbf16>, vector<3x64xbf16>, vector<64x64xf32> -> vector<64x64xf32>
    %108 = arith.addf %99, %107 : vector<64x64xf32>
    %c2_84 = arith.constant 2 : index
    %c0_85 = arith.constant 0 : index
    %c0_86 = arith.constant 0 : index
    %c0_87 = arith.constant 0 : index
    %109 = vector.load %arg1[%c2_84, %c0_85, %c0_86, %c0_87] : memref<4x9x9x3xf32, #tpu.memory_space<vmem>>, vector<1x9x9x3xf32>
    %110 = vector.shape_cast %109 : vector<1x9x9x3xf32> to vector<9x9x3xf32>
    %111 = vector.extract_strided_slice %110 {offsets = [1, 0, 0], sizes = [8, 8, 3], strides = [1, 1, 1]} : vector<9x9x3xf32> to vector<8x8x3xf32>
    %112 = vector.shape_cast %111 : vector<8x8x3xf32> to vector<64x3xf32>
    %113 = arith.truncf %112 : vector<64x3xf32> to vector<64x3xbf16>
    %c12 = arith.constant 12 : index
    %c0_88 = arith.constant 0 : index
    %c0_89 = arith.constant 0 : index
    %114 = vector.load %arg2[%c12, %c0_88, %c0_89] : memref<16x3x64xbf16, #tpu.memory_space<vmem>>, vector<1x3x64xbf16>
    %115 = vector.shape_cast %114 : vector<1x3x64xbf16> to vector<3x64xbf16>
    %cst_90 = arith.constant dense<0.000000e+00> : vector<64x64xf32>
    %116 = tpu.matmul %113, %115, %cst_90 {dimension_numbers = #tpu.dot_dimension_numbers<[1], [0], [0], [1], [0, 0, 1, 1], [], []>} : vector<64x3xbf16>, vector<3x64xbf16>, vector<64x64xf32> -> vector<64x64xf32>
    %117 = arith.addf %108, %116 : vector<64x64xf32>
    %c3_91 = arith.constant 3 : index
    %c0_92 = arith.constant 0 : index
    %c0_93 = arith.constant 0 : index
    %c0_94 = arith.constant 0 : index
    %118 = vector.load %arg1[%c3_91, %c0_92, %c0_93, %c0_94] : memref<4x9x9x3xf32, #tpu.memory_space<vmem>>, vector<1x9x9x3xf32>
    %119 = vector.shape_cast %118 : vector<1x9x9x3xf32> to vector<9x9x3xf32>
    %120 = vector.extract_strided_slice %119 {offsets = [1, 0, 0], sizes = [8, 8, 3], strides = [1, 1, 1]} : vector<9x9x3xf32> to vector<8x8x3xf32>
    %121 = vector.shape_cast %120 : vector<8x8x3xf32> to vector<64x3xf32>
    %122 = arith.truncf %121 : vector<64x3xf32> to vector<64x3xbf16>
    %c13 = arith.constant 13 : index
    %c0_95 = arith.constant 0 : index
    %c0_96 = arith.constant 0 : index
    %123 = vector.load %arg2[%c13, %c0_95, %c0_96] : memref<16x3x64xbf16, #tpu.memory_space<vmem>>, vector<1x3x64xbf16>
    %124 = vector.shape_cast %123 : vector<1x3x64xbf16> to vector<3x64xbf16>
    %cst_97 = arith.constant dense<0.000000e+00> : vector<64x64xf32>
    %125 = tpu.matmul %122, %124, %cst_97 {dimension_numbers = #tpu.dot_dimension_numbers<[1], [0], [0], [1], [0, 0, 1, 1], [], []>} : vector<64x3xbf16>, vector<3x64xbf16>, vector<64x64xf32> -> vector<64x64xf32>
    %126 = arith.addf %117, %125 : vector<64x64xf32>
    %c2_98 = arith.constant 2 : index
    %c0_99 = arith.constant 0 : index
    %c0_100 = arith.constant 0 : index
    %c0_101 = arith.constant 0 : index
    %127 = vector.load %arg1[%c2_98, %c0_99, %c0_100, %c0_101] : memref<4x9x9x3xf32, #tpu.memory_space<vmem>>, vector<1x9x9x3xf32>
    %128 = vector.shape_cast %127 : vector<1x9x9x3xf32> to vector<9x9x3xf32>
    %129 = vector.extract_strided_slice %128 {offsets = [1, 1, 0], sizes = [8, 8, 3], strides = [1, 1, 1]} : vector<9x9x3xf32> to vector<8x8x3xf32>
    %130 = vector.shape_cast %129 : vector<8x8x3xf32> to vector<64x3xf32>
    %131 = arith.truncf %130 : vector<64x3xf32> to vector<64x3xbf16>
    %c14 = arith.constant 14 : index
    %c0_102 = arith.constant 0 : index
    %c0_103 = arith.constant 0 : index
    %132 = vector.load %arg2[%c14, %c0_102, %c0_103] : memref<16x3x64xbf16, #tpu.memory_space<vmem>>, vector<1x3x64xbf16>
    %133 = vector.shape_cast %132 : vector<1x3x64xbf16> to vector<3x64xbf16>
    %cst_104 = arith.constant dense<0.000000e+00> : vector<64x64xf32>
    %134 = tpu.matmul %131, %133, %cst_104 {dimension_numbers = #tpu.dot_dimension_numbers<[1], [0], [0], [1], [0, 0, 1, 1], [], []>} : vector<64x3xbf16>, vector<3x64xbf16>, vector<64x64xf32> -> vector<64x64xf32>
    %135 = arith.addf %126, %134 : vector<64x64xf32>
    %c3_105 = arith.constant 3 : index
    %c0_106 = arith.constant 0 : index
    %c0_107 = arith.constant 0 : index
    %c0_108 = arith.constant 0 : index
    %136 = vector.load %arg1[%c3_105, %c0_106, %c0_107, %c0_108] : memref<4x9x9x3xf32, #tpu.memory_space<vmem>>, vector<1x9x9x3xf32>
    %137 = vector.shape_cast %136 : vector<1x9x9x3xf32> to vector<9x9x3xf32>
    %138 = vector.extract_strided_slice %137 {offsets = [1, 1, 0], sizes = [8, 8, 3], strides = [1, 1, 1]} : vector<9x9x3xf32> to vector<8x8x3xf32>
    %139 = vector.shape_cast %138 : vector<8x8x3xf32> to vector<64x3xf32>
    %140 = arith.truncf %139 : vector<64x3xf32> to vector<64x3xbf16>
    %c15 = arith.constant 15 : index
    %c0_109 = arith.constant 0 : index
    %c0_110 = arith.constant 0 : index
    %141 = vector.load %arg2[%c15, %c0_109, %c0_110] : memref<16x3x64xbf16, #tpu.memory_space<vmem>>, vector<1x3x64xbf16>
    %142 = vector.shape_cast %141 : vector<1x3x64xbf16> to vector<3x64xbf16>
    %cst_111 = arith.constant dense<0.000000e+00> : vector<64x64xf32>
    %143 = tpu.matmul %140, %142, %cst_111 {dimension_numbers = #tpu.dot_dimension_numbers<[1], [0], [0], [1], [0, 0, 1, 1], [], []>} : vector<64x3xbf16>, vector<3x64xbf16>, vector<64x64xf32> -> vector<64x64xf32>
    %144 = arith.addf %135, %143 : vector<64x64xf32>
    %c0_112 = arith.constant 0 : index
    %c0_113 = arith.constant 0 : index
    %145 = vector.load %arg3[%c0_112, %c0_113] : memref<1x64xf32, #tpu.memory_space<vmem>>, vector<1x64xf32>
    %146 = vector.broadcast %145 : vector<1x64xf32> to vector<64x64xf32>
    %147 = arith.addf %144, %146 : vector<64x64xf32>
    %cst_114 = arith.constant 0.000000e+00 : f32
    %148 = vector.broadcast %cst_114 : f32 to vector<64x64xf32>
    %149 = arith.cmpf oge, %147, %148 : vector<64x64xf32>
    %cst_115 = arith.constant 2.000000e-01 : f32
    %150 = vector.broadcast %cst_115 : f32 to vector<64x64xf32>
    %151 = arith.mulf %150, %147 : vector<64x64xf32>
    %152 = arith.select %149, %147, %151 : vector<64x64xi1>, vector<64x64xf32>
    %cst_116 = arith.constant 0.000000e+00 : f32
    %153 = vector.broadcast %cst_116 : f32 to vector<10x10x64xf32>
    %c0_117 = arith.constant 0 : index
    %c0_118 = arith.constant 0 : index
    %c0_119 = arith.constant 0 : index
    %154 = vector.load %arg7[%c0_117, %c0_118, %c0_119] : memref<10x10x64xf32, #tpu.memory_space<vmem>>, vector<10x10x64xf32>
    tpu.vector_store %arg7[%c0_117, %c0_118, %c0_119], %153 {strides = array<i32>} : memref<10x10x64xf32, #tpu.memory_space<vmem>>, vector<10x10x64xf32>,
    %155 = vector.shape_cast %152 : vector<64x64xf32> to vector<8x8x64xf32>
    %c1_120 = arith.constant 1 : index
    %c1_121 = arith.constant 1 : index
    %c0_122 = arith.constant 0 : index
    %156 = vector.load %arg7[%c1_120, %c1_121, %c0_122] : memref<10x10x64xf32, #tpu.memory_space<vmem>>, vector<8x8x64xf32>
    tpu.vector_store %arg7[%c1_120, %c1_121, %c0_122], %155 {strides = array<i32>} : memref<10x10x64xf32, #tpu.memory_space<vmem>>, vector<8x8x64xf32>,
    %cst_123 = arith.constant 0.000000e+00 : f32
    %157 = vector.broadcast %cst_123 : f32 to vector<7x7x64xf32>
    %c0_124 = arith.constant 0 : index
    %c0_125 = arith.constant 0 : index
    %c0_126 = arith.constant 0 : index
    %158 = vector.load %arg7[%c0_124, %c0_125, %c0_126] : memref<10x10x64xf32, #tpu.memory_space<vmem>>, vector<7x7x64xf32>
    %c0_127 = arith.constant 0 : index
    %c0_128 = arith.constant 0 : index
    %c0_129 = arith.constant 0 : index
    %159 = vector.load %arg4[%c0_127, %c0_128, %c0_129] : memref<16x1x64xf32, #tpu.memory_space<vmem>>, vector<1x1x64xf32>
    %160 = vector.shape_cast %159 : vector<1x1x64xf32> to vector<1x64xf32>
    %161 = vector.shape_cast %160 : vector<1x64xf32> to vector<1x1x64xf32>
    %162 = vector.broadcast %161 : vector<1x1x64xf32> to vector<7x7x64xf32>
    %163 = arith.mulf %158, %162 : vector<7x7x64xf32>
    %164 = arith.addf %157, %163 : vector<7x7x64xf32>
    %c0_130 = arith.constant 0 : index
    %c1_131 = arith.constant 1 : index
    %c0_132 = arith.constant 0 : index
    %165 = vector.load %arg7[%c0_130, %c1_131, %c0_132] : memref<10x10x64xf32, #tpu.memory_space<vmem>>, vector<7x7x64xf32>
    %c1_133 = arith.constant 1 : index
    %c0_134 = arith.constant 0 : index
    %c0_135 = arith.constant 0 : index
    %166 = vector.load %arg4[%c1_133, %c0_134, %c0_135] : memref<16x1x64xf32, #tpu.memory_space<vmem>>, vector<1x1x64xf32>
    %167 = vector.shape_cast %166 : vector<1x1x64xf32> to vector<1x64xf32>
    %168 = vector.shape_cast %167 : vector<1x64xf32> to vector<1x1x64xf32>
    %169 = vector.broadcast %168 : vector<1x1x64xf32> to vector<7x7x64xf32>
    %170 = arith.mulf %165, %169 : vector<7x7x64xf32>
    %171 = arith.addf %164, %170 : vector<7x7x64xf32>
    %c0_136 = arith.constant 0 : index
    %c2_137 = arith.constant 2 : index
    %c0_138 = arith.constant 0 : index
    %172 = vector.load %arg7[%c0_136, %c2_137, %c0_138] : memref<10x10x64xf32, #tpu.memory_space<vmem>>, vector<7x7x64xf32>
    %c2_139 = arith.constant 2 : index
    %c0_140 = arith.constant 0 : index
    %c0_141 = arith.constant 0 : index
    %173 = vector.load %arg4[%c2_139, %c0_140, %c0_141] : memref<16x1x64xf32, #tpu.memory_space<vmem>>, vector<1x1x64xf32>
    %174 = vector.shape_cast %173 : vector<1x1x64xf32> to vector<1x64xf32>
    %175 = vector.shape_cast %174 : vector<1x64xf32> to vector<1x1x64xf32>
    %176 = vector.broadcast %175 : vector<1x1x64xf32> to vector<7x7x64xf32>
    %177 = arith.mulf %172, %176 : vector<7x7x64xf32>
    %178 = arith.addf %171, %177 : vector<7x7x64xf32>
    %c0_142 = arith.constant 0 : index
    %c3_143 = arith.constant 3 : index
    %c0_144 = arith.constant 0 : index
    %179 = vector.load %arg7[%c0_142, %c3_143, %c0_144] : memref<10x10x64xf32, #tpu.memory_space<vmem>>, vector<7x7x64xf32>
    %c3_145 = arith.constant 3 : index
    %c0_146 = arith.constant 0 : index
    %c0_147 = arith.constant 0 : index
    %180 = vector.load %arg4[%c3_145, %c0_146, %c0_147] : memref<16x1x64xf32, #tpu.memory_space<vmem>>, vector<1x1x64xf32>
    %181 = vector.shape_cast %180 : vector<1x1x64xf32> to vector<1x64xf32>
    %182 = vector.shape_cast %181 : vector<1x64xf32> to vector<1x1x64xf32>
    %183 = vector.broadcast %182 : vector<1x1x64xf32> to vector<7x7x64xf32>
    %184 = arith.mulf %179, %183 : vector<7x7x64xf32>
    %185 = arith.addf %178, %184 : vector<7x7x64xf32>
    %c1_148 = arith.constant 1 : index
    %c0_149 = arith.constant 0 : index
    %c0_150 = arith.constant 0 : index
    %186 = vector.load %arg7[%c1_148, %c0_149, %c0_150] : memref<10x10x64xf32, #tpu.memory_space<vmem>>, vector<7x7x64xf32>
    %c4_151 = arith.constant 4 : index
    %c0_152 = arith.constant 0 : index
    %c0_153 = arith.constant 0 : index
    %187 = vector.load %arg4[%c4_151, %c0_152, %c0_153] : memref<16x1x64xf32, #tpu.memory_space<vmem>>, vector<1x1x64xf32>
    %188 = vector.shape_cast %187 : vector<1x1x64xf32> to vector<1x64xf32>
    %189 = vector.shape_cast %188 : vector<1x64xf32> to vector<1x1x64xf32>
    %190 = vector.broadcast %189 : vector<1x1x64xf32> to vector<7x7x64xf32>
    %191 = arith.mulf %186, %190 : vector<7x7x64xf32>
    %192 = arith.addf %185, %191 : vector<7x7x64xf32>
    %c1_154 = arith.constant 1 : index
    %c1_155 = arith.constant 1 : index
    %c0_156 = arith.constant 0 : index
    %193 = vector.load %arg7[%c1_154, %c1_155, %c0_156] : memref<10x10x64xf32, #tpu.memory_space<vmem>>, vector<7x7x64xf32>
    %c5_157 = arith.constant 5 : index
    %c0_158 = arith.constant 0 : index
    %c0_159 = arith.constant 0 : index
    %194 = vector.load %arg4[%c5_157, %c0_158, %c0_159] : memref<16x1x64xf32, #tpu.memory_space<vmem>>, vector<1x1x64xf32>
    %195 = vector.shape_cast %194 : vector<1x1x64xf32> to vector<1x64xf32>
    %196 = vector.shape_cast %195 : vector<1x64xf32> to vector<1x1x64xf32>
    %197 = vector.broadcast %196 : vector<1x1x64xf32> to vector<7x7x64xf32>
    %198 = arith.mulf %193, %197 : vector<7x7x64xf32>
    %199 = arith.addf %192, %198 : vector<7x7x64xf32>
    %c1_160 = arith.constant 1 : index
    %c2_161 = arith.constant 2 : index
    %c0_162 = arith.constant 0 : index
    %200 = vector.load %arg7[%c1_160, %c2_161, %c0_162] : memref<10x10x64xf32, #tpu.memory_space<vmem>>, vector<7x7x64xf32>
    %c6_163 = arith.constant 6 : index
    %c0_164 = arith.constant 0 : index
    %c0_165 = arith.constant 0 : index
    %201 = vector.load %arg4[%c6_163, %c0_164, %c0_165] : memref<16x1x64xf32, #tpu.memory_space<vmem>>, vector<1x1x64xf32>
    %202 = vector.shape_cast %201 : vector<1x1x64xf32> to vector<1x64xf32>
    %203 = vector.shape_cast %202 : vector<1x64xf32> to vector<1x1x64xf32>
    %204 = vector.broadcast %203 : vector<1x1x64xf32> to vector<7x7x64xf32>
    %205 = arith.mulf %200, %204 : vector<7x7x64xf32>
    %206 = arith.addf %199, %205 : vector<7x7x64xf32>
    %c1_166 = arith.constant 1 : index
    %c3_167 = arith.constant 3 : index
    %c0_168 = arith.constant 0 : index
    %207 = vector.load %arg7[%c1_166, %c3_167, %c0_168] : memref<10x10x64xf32, #tpu.memory_space<vmem>>, vector<7x7x64xf32>
    %c7_169 = arith.constant 7 : index
    %c0_170 = arith.constant 0 : index
    %c0_171 = arith.constant 0 : index
    %208 = vector.load %arg4[%c7_169, %c0_170, %c0_171] : memref<16x1x64xf32, #tpu.memory_space<vmem>>, vector<1x1x64xf32>
    %209 = vector.shape_cast %208 : vector<1x1x64xf32> to vector<1x64xf32>
    %210 = vector.shape_cast %209 : vector<1x64xf32> to vector<1x1x64xf32>
    %211 = vector.broadcast %210 : vector<1x1x64xf32> to vector<7x7x64xf32>
    %212 = arith.mulf %207, %211 : vector<7x7x64xf32>
    %213 = arith.addf %206, %212 : vector<7x7x64xf32>
    %c2_172 = arith.constant 2 : index
    %c0_173 = arith.constant 0 : index
    %c0_174 = arith.constant 0 : index
    %214 = vector.load %arg7[%c2_172, %c0_173, %c0_174] : memref<10x10x64xf32, #tpu.memory_space<vmem>>, vector<7x7x64xf32>
    %c8_175 = arith.constant 8 : index
    %c0_176 = arith.constant 0 : index
    %c0_177 = arith.constant 0 : index
    %215 = vector.load %arg4[%c8_175, %c0_176, %c0_177] : memref<16x1x64xf32, #tpu.memory_space<vmem>>, vector<1x1x64xf32>
    %216 = vector.shape_cast %215 : vector<1x1x64xf32> to vector<1x64xf32>
    %217 = vector.shape_cast %216 : vector<1x64xf32> to vector<1x1x64xf32>
    %218 = vector.broadcast %217 : vector<1x1x64xf32> to vector<7x7x64xf32>
    %219 = arith.mulf %214, %218 : vector<7x7x64xf32>
    %220 = arith.addf %213, %219 : vector<7x7x64xf32>
    %c2_178 = arith.constant 2 : index
    %c1_179 = arith.constant 1 : index
    %c0_180 = arith.constant 0 : index
    %221 = vector.load %arg7[%c2_178, %c1_179, %c0_180] : memref<10x10x64xf32, #tpu.memory_space<vmem>>, vector<7x7x64xf32>
    %c9_181 = arith.constant 9 : index
    %c0_182 = arith.constant 0 : index
    %c0_183 = arith.constant 0 : index
    %222 = vector.load %arg4[%c9_181, %c0_182, %c0_183] : memref<16x1x64xf32, #tpu.memory_space<vmem>>, vector<1x1x64xf32>
    %223 = vector.shape_cast %222 : vector<1x1x64xf32> to vector<1x64xf32>
    %224 = vector.shape_cast %223 : vector<1x64xf32> to vector<1x1x64xf32>
    %225 = vector.broadcast %224 : vector<1x1x64xf32> to vector<7x7x64xf32>
    %226 = arith.mulf %221, %225 : vector<7x7x64xf32>
    %227 = arith.addf %220, %226 : vector<7x7x64xf32>
    %c2_184 = arith.constant 2 : index
    %c2_185 = arith.constant 2 : index
    %c0_186 = arith.constant 0 : index
    %228 = vector.load %arg7[%c2_184, %c2_185, %c0_186] : memref<10x10x64xf32, #tpu.memory_space<vmem>>, vector<7x7x64xf32>
    %c10_187 = arith.constant 10 : index
    %c0_188 = arith.constant 0 : index
    %c0_189 = arith.constant 0 : index
    %229 = vector.load %arg4[%c10_187, %c0_188, %c0_189] : memref<16x1x64xf32, #tpu.memory_space<vmem>>, vector<1x1x64xf32>
    %230 = vector.shape_cast %229 : vector<1x1x64xf32> to vector<1x64xf32>
    %231 = vector.shape_cast %230 : vector<1x64xf32> to vector<1x1x64xf32>
    %232 = vector.broadcast %231 : vector<1x1x64xf32> to vector<7x7x64xf32>
    %233 = arith.mulf %228, %232 : vector<7x7x64xf32>
    %234 = arith.addf %227, %233 : vector<7x7x64xf32>
    %c2_190 = arith.constant 2 : index
    %c3_191 = arith.constant 3 : index
    %c0_192 = arith.constant 0 : index
    %235 = vector.load %arg7[%c2_190, %c3_191, %c0_192] : memref<10x10x64xf32, #tpu.memory_space<vmem>>, vector<7x7x64xf32>
    %c11_193 = arith.constant 11 : index
    %c0_194 = arith.constant 0 : index
    %c0_195 = arith.constant 0 : index
    %236 = vector.load %arg4[%c11_193, %c0_194, %c0_195] : memref<16x1x64xf32, #tpu.memory_space<vmem>>, vector<1x1x64xf32>
    %237 = vector.shape_cast %236 : vector<1x1x64xf32> to vector<1x64xf32>
    %238 = vector.shape_cast %237 : vector<1x64xf32> to vector<1x1x64xf32>
    %239 = vector.broadcast %238 : vector<1x1x64xf32> to vector<7x7x64xf32>
    %240 = arith.mulf %235, %239 : vector<7x7x64xf32>
    %241 = arith.addf %234, %240 : vector<7x7x64xf32>
    %c3_196 = arith.constant 3 : index
    %c0_197 = arith.constant 0 : index
    %c0_198 = arith.constant 0 : index
    %242 = vector.load %arg7[%c3_196, %c0_197, %c0_198] : memref<10x10x64xf32, #tpu.memory_space<vmem>>, vector<7x7x64xf32>
    %c12_199 = arith.constant 12 : index
    %c0_200 = arith.constant 0 : index
    %c0_201 = arith.constant 0 : index
    %243 = vector.load %arg4[%c12_199, %c0_200, %c0_201] : memref<16x1x64xf32, #tpu.memory_space<vmem>>, vector<1x1x64xf32>
    %244 = vector.shape_cast %243 : vector<1x1x64xf32> to vector<1x64xf32>
    %245 = vector.shape_cast %244 : vector<1x64xf32> to vector<1x1x64xf32>
    %246 = vector.broadcast %245 : vector<1x1x64xf32> to vector<7x7x64xf32>
    %247 = arith.mulf %242, %246 : vector<7x7x64xf32>
    %248 = arith.addf %241, %247 : vector<7x7x64xf32>
    %c3_202 = arith.constant 3 : index
    %c1_203 = arith.constant 1 : index
    %c0_204 = arith.constant 0 : index
    %249 = vector.load %arg7[%c3_202, %c1_203, %c0_204] : memref<10x10x64xf32, #tpu.memory_space<vmem>>, vector<7x7x64xf32>
    %c13_205 = arith.constant 13 : index
    %c0_206 = arith.constant 0 : index
    %c0_207 = arith.constant 0 : index
    %250 = vector.load %arg4[%c13_205, %c0_206, %c0_207] : memref<16x1x64xf32, #tpu.memory_space<vmem>>, vector<1x1x64xf32>
    %251 = vector.shape_cast %250 : vector<1x1x64xf32> to vector<1x64xf32>
    %252 = vector.shape_cast %251 : vector<1x64xf32> to vector<1x1x64xf32>
    %253 = vector.broadcast %252 : vector<1x1x64xf32> to vector<7x7x64xf32>
    %254 = arith.mulf %249, %253 : vector<7x7x64xf32>
    %255 = arith.addf %248, %254 : vector<7x7x64xf32>
    %c3_208 = arith.constant 3 : index
    %c2_209 = arith.constant 2 : index
    %c0_210 = arith.constant 0 : index
    %256 = vector.load %arg7[%c3_208, %c2_209, %c0_210] : memref<10x10x64xf32, #tpu.memory_space<vmem>>, vector<7x7x64xf32>
    %c14_211 = arith.constant 14 : index
    %c0_212 = arith.constant 0 : index
    %c0_213 = arith.constant 0 : index
    %257 = vector.load %arg4[%c14_211, %c0_212, %c0_213] : memref<16x1x64xf32, #tpu.memory_space<vmem>>, vector<1x1x64xf32>
    %258 = vector.shape_cast %257 : vector<1x1x64xf32> to vector<1x64xf32>
    %259 = vector.shape_cast %258 : vector<1x64xf32> to vector<1x1x64xf32>
    %260 = vector.broadcast %259 : vector<1x1x64xf32> to vector<7x7x64xf32>
    %261 = arith.mulf %256, %260 : vector<7x7x64xf32>
    %262 = arith.addf %255, %261 : vector<7x7x64xf32>
    %c3_214 = arith.constant 3 : index
    %c3_215 = arith.constant 3 : index
    %c0_216 = arith.constant 0 : index
    %263 = vector.load %arg7[%c3_214, %c3_215, %c0_216] : memref<10x10x64xf32, #tpu.memory_space<vmem>>, vector<7x7x64xf32>
    %c15_217 = arith.constant 15 : index
    %c0_218 = arith.constant 0 : index
    %c0_219 = arith.constant 0 : index
    %264 = vector.load %arg4[%c15_217, %c0_218, %c0_219] : memref<16x1x64xf32, #tpu.memory_space<vmem>>, vector<1x1x64xf32>
    %265 = vector.shape_cast %264 : vector<1x1x64xf32> to vector<1x64xf32>
    %266 = vector.shape_cast %265 : vector<1x64xf32> to vector<1x1x64xf32>
    %267 = vector.broadcast %266 : vector<1x1x64xf32> to vector<7x7x64xf32>
    %268 = arith.mulf %263, %267 : vector<7x7x64xf32>
    %269 = arith.addf %262, %268 : vector<7x7x64xf32>
    %cst_220 = arith.constant dense<0.000000e+00> : vector<7x7xf32>
    %270 = vector.multi_reduction <add>, %269, %cst_220 [2] : vector<7x7x64xf32> to vector<7x7xf32>
    %c0_221 = arith.constant 0 : index
    %271 = memref.load %arg5[%c0_221] : memref<1xf32, #tpu.memory_space<smem>>
    %272 = vector.broadcast %271 : f32 to vector<7x7xf32>
    %273 = arith.addf %270, %272 : vector<7x7xf32>
    %c0_222 = arith.constant 0 : index
    %c0_223 = arith.constant 0 : index
    %c0_224 = arith.constant 0 : index
    %274 = vector.load %arg6[%c0_222, %c0_223, %c0_224] : memref<1x7x7xf32, #tpu.memory_space<vmem>>, vector<1x7x7xf32>
    %275 = vector.shape_cast %274 : vector<1x7x7xf32> to vector<7x7xf32>
    %276 = vector.shape_cast %273 : vector<7x7xf32> to vector<1x7x7xf32>
    tpu.vector_store %arg6[%c0_222, %c0_223, %c0_224], %276 {strides = array<i32>} : memref<1x7x7xf32, #tpu.memory_space<vmem>>, vector<1x7x7xf32>,
    return
  }
  func.func @transform_0(%arg0: i32) -> (i32, i32, i32, i32) {
    %c0_i32 = arith.constant 0 : i32
    %c0_i32_0 = arith.constant 0 : i32
    %c0_i32_1 = arith.constant 0 : i32
    %c0_i32_2 = arith.constant 0 : i32
    return %arg0, %c0_i32, %c0_i32_0, %c0_i32_1 : i32, i32, i32, i32
  }
  func.func @transform_1(%arg0: i32) -> (i32, i32, i32) {
    %c0_i32 = arith.constant 0 : i32
    %c0_i32_0 = arith.constant 0 : i32
    %c0_i32_1 = arith.constant 0 : i32
    %c0_i32_2 = arith.constant 0 : i32
    return %c0_i32, %c0_i32_0, %c0_i32_1 : i32, i32, i32
  }
  func.func @transform_2(%arg0: i32) -> (i32, i32) {
    %c0_i32 = arith.constant 0 : i32
    %c0_i32_0 = arith.constant 0 : i32
    %c0_i32_1 = arith.constant 0 : i32
    return %c0_i32, %c0_i32_0 : i32, i32
  }
  func.func @transform_3(%arg0: i32) -> (i32, i32, i32) {
    %c0_i32 = arith.constant 0 : i32
    %c0_i32_0 = arith.constant 0 : i32
    %c0_i32_1 = arith.constant 0 : i32
    %c0_i32_2 = arith.constant 0 : i32
    return %c0_i32, %c0_i32_0, %c0_i32_1 : i32, i32, i32
  }
  func.func @transform_4(%arg0: i32) -> i32 {
    %c0_i32 = arith.constant 0 : i32
    %c0_i32_0 = arith.constant 0 : i32
    return %c0_i32 : i32
  }
  func.func @transform_5(%arg0: i32) -> (i32, i32, i32) {
    %c0_i32 = arith.constant 0 : i32
    %c0_i32_0 = arith.constant 0 : i32
    %c0_i32_1 = arith.constant 0 : i32
    return %arg0, %c0_i32, %c0_i32_0 : i32, i32, i32
  }
}

</mosaic_0001>

<llo_original>
// kernel: tpu_custom_call.1
$region0: #{tpu_custom_call.1}
  #allocation0 [shape = 'u32[]', space=smem, size = 0x4, offset = 0x4, fixed_abs, tag = 'smem constant byte address 0x4 - core index']
  #allocation1 [shape = 'u32[144,128]{1,0:T(1,128)}', space=vmem, size = 0x12000, scoped, tag = 'internal scratch']
  #allocation2 [shape = 'f32[10,10,64]{2,1,0:T(8,128)}', space=vmem, size = 0x14000, scoped, tag = 'scratch operand']
  #allocation3 [shape = 'f32[1]{0:T(128)S(6)}', space=smem, size = 0x200, scoped, tag = 'scoped memory for tpu_custom_call.1']
  %s0 = inlined_call_operand.vmem [shape: f32[8,9,9,3], index: 0, kind: input, shape index: {}]
  %s1 = inlined_call_operand.vmem [shape: bf16[16,3,64], index: 1, kind: input, shape index: {}]
  %s2 = inlined_call_operand.vmem [shape: f32[1,64], index: 2, kind: input, shape index: {}]
  %s3 = inlined_call_operand.vmem [shape: f32[16,1,64], index: 3, kind: input, shape index: {}]
  %s4 = inlined_call_operand.<no memory space> [shape: f32[1], index: 4, kind: input, shape index: {}]
  %s5 = inlined_call_operand.vmem [shape: f32[2,7,7], index: 5, kind: output, shape index: {}]
  %s6 = sld [smem:[#allocation0]]
  $region53: #{tpu_custom_call.1} parent=0
    _
  %s8 = ssub.s32 1, %s6
  %s9 = scalar_select 0, %s8, %s6
  %10 = sst [smem:[#allocation3]] %s4
  loop: start=0, step=1, limit=4
  $region2: #{tpu_custom_call.1} parent=0 // loop_pre_header
    _
  $region3: #{tpu_custom_call.1} parent=0 // loop_header
    %s12 = sphi 0, %s16
    %p13 = scmp.ge.s32.totalorder %s12, 4
    %s22 = sphi 0, %s24
    %s25 = sphi 0, %s22
    %s26 = sphi 0, %s25
    %s42 = sphi 0, %s26
    %s46 = sphi 0, %s46
    %s48 = sphi 0, %s46
    %s49 = sphi 0, %s48
    %s63 = sphi 0, %s49
    %s67 = sphi 0, %s67
    %s69 = sphi 0, %s67
    %s70 = sphi 0, %s69
    %s84 = sphi 0, %s70
    %s88 = sphi 0, %s88
    %s90 = sphi 0, %s88
    %s91 = sphi 0, %s90
    %s105 = sphi 0, %s91
    %s109 = sphi 0, %s109
    %s111 = sphi 0, %s109
    %s112 = sphi 0, %s111
    %s126 = sphi 0, %s112
    %s132 = sphi 0, %s134
    %s135 = sphi 0, %s132
    %s136 = sphi 0, %s135
    %s152 = sphi 0, %s136
  $region4: #{tpu_custom_call.1} parent=0 // loop_header_branch
    %15 = sbr.rel (%p13) target = $region8
  $region5: #{tpu_custom_call.1} parent=0 // loop_body
    %s17 = ssub.s32 %s12, 1
    %s18 = ssub.s32 %s12, 2
    %s19 = sadd.s32 %s12, 1
    %s20 = ssub.s32 %s12, %s19
    %p21 = scmp.eq.s32.totalorder %s20, 0
    %s23 = sadd.s32 %s22, 1
    %s24 = scalar_select %p21, %s22, %s23
    %p27 = pneg %p21
    %p28 = scmp.eq.s32.totalorder %s12, 1
    %p29 = por %p27, %p28
    %p30 = scmp.ne.s32.totalorder %s22, %s25
    %p31 = scmp.eq.s32.totalorder %s12, 0
    %p32 = por %p30, %p31
    %p33 = scmp.ne.s32.totalorder %s22, %s25
    %p34 = scmp.eq.s32.totalorder %s17, 1
    %p35 = por %p33, %p34
    %p36 = scmp.ne.s32.totalorder %s25, %s26
    %p37 = scmp.eq.s32.totalorder %s17, 0
    %p38 = por %p36, %p37
    %p39 = scmp.ne.s32.totalorder %s25, %s26
    %p40 = scmp.eq.s32.totalorder %s18, 1
    %p41 = por %p39, %p40
    %p43 = scmp.ne.s32.totalorder %s26, %s42
    %p44 = scmp.eq.s32.totalorder %s18, 0
    %p45 = por %p43, %p44
    %s47 = sadd.s32 %s46, 1
    %p50 = scmp.eq.s32.totalorder %s12, 1
    %p51 = scmp.ne.s32.totalorder %s46, %s48
    %p52 = scmp.eq.s32.totalorder %s12, 0
    %p53 = por %p51, %p52
    %p54 = scmp.ne.s32.totalorder %s46, %s48
    %p55 = scmp.eq.s32.totalorder %s17, 1
    %p56 = por %p54, %p55
    %p57 = scmp.ne.s32.totalorder %s48, %s49
    %p58 = scmp.eq.s32.totalorder %s17, 0
    %p59 = por %p57, %p58
    %p60 = scmp.ne.s32.totalorder %s48, %s49
    %p61 = scmp.eq.s32.totalorder %s18, 1
    %p62 = por %p60, %p61
    %p64 = scmp.ne.s32.totalorder %s49, %s63
    %p65 = scmp.eq.s32.totalorder %s18, 0
    %p66 = por %p64, %p65
    %s68 = sadd.s32 %s67, 1
    %p71 = scmp.eq.s32.totalorder %s12, 1
    %p72 = scmp.ne.s32.totalorder %s67, %s69
    %p73 = scmp.eq.s32.totalorder %s12, 0
    %p74 = por %p72, %p73
    %p75 = scmp.ne.s32.totalorder %s67, %s69
    %p76 = scmp.eq.s32.totalorder %s17, 1
    %p77 = por %p75, %p76
    %p78 = scmp.ne.s32.totalorder %s69, %s70
    %p79 = scmp.eq.s32.totalorder %s17, 0
    %p80 = por %p78, %p79
    %p81 = scmp.ne.s32.totalorder %s69, %s70
    %p82 = scmp.eq.s32.totalorder %s18, 1
    %p83 = por %p81, %p82
    %p85 = scmp.ne.s32.totalorder %s70, %s84
    %p86 = scmp.eq.s32.totalorder %s18, 0
    %p87 = por %p85, %p86
    %s89 = sadd.s32 %s88, 1
    %p92 = scmp.eq.s32.totalorder %s12, 1
    %p93 = scmp.ne.s32.totalorder %s88, %s90
    %p94 = scmp.eq.s32.totalorder %s12, 0
    %p95 = por %p93, %p94
    %p96 = scmp.ne.s32.totalorder %s88, %s90
    %p97 = scmp.eq.s32.totalorder %s17, 1
    %p98 = por %p96, %p97
    %p99 = scmp.ne.s32.totalorder %s90, %s91
    %p100 = scmp.eq.s32.totalorder %s17, 0
    %p101 = por %p99, %p100
    %p102 = scmp.ne.s32.totalorder %s90, %s91
    %p103 = scmp.eq.s32.totalorder %s18, 1
    %p104 = por %p102, %p103
    %p106 = scmp.ne.s32.totalorder %s91, %s105
    %p107 = scmp.eq.s32.totalorder %s18, 0
    %p108 = por %p106, %p107
    %s110 = sadd.s32 %s109, 1
    %p113 = scmp.eq.s32.totalorder %s12, 1
    %p114 = scmp.ne.s32.totalorder %s109, %s111
    %p115 = scmp.eq.s32.totalorder %s12, 0
    %p116 = por %p114, %p115
    %p117 = scmp.ne.s32.totalorder %s109, %s111
    %p118 = scmp.eq.s32.totalorder %s17, 1
    %p119 = por %p117, %p118
    %p120 = scmp.ne.s32.totalorder %s111, %s112
    %p121 = scmp.eq.s32.totalorder %s17, 0
    %p122 = por %p120, %p121
    %p123 = scmp.ne.s32.totalorder %s111, %s112
    %p124 = scmp.eq.s32.totalorder %s18, 1
    %p125 = por %p123, %p124
    %p127 = scmp.ne.s32.totalorder %s112, %s126
    %p128 = scmp.eq.s32.totalorder %s18, 0
    %p129 = por %p127, %p128
    %s130 = ssub.s32 %s12, %s19
    %p131 = scmp.eq.s32.totalorder %s130, 0
    %s133 = sadd.s32 %s132, 1
    %s134 = scalar_select %p131, %s132, %s133
    %p137 = pneg %p131
    %p138 = scmp.eq.s32.totalorder %s12, 1
    %p139 = por %p137, %p138
    %p140 = scmp.ne.s32.totalorder %s132, %s135
    %p141 = scmp.eq.s32.totalorder %s12, 0
    %p142 = por %p140, %p141
    %p143 = scmp.ne.s32.totalorder %s132, %s135
    %p144 = scmp.eq.s32.totalorder %s17, 1
    %p145 = por %p143, %p144
    %p146 = scmp.ne.s32.totalorder %s135, %s136
    %p147 = scmp.eq.s32.totalorder %s17, 0
    %p148 = por %p146, %p147
    %p149 = scmp.ne.s32.totalorder %s135, %s136
    %p150 = scmp.eq.s32.totalorder %s18, 1
    %p151 = por %p149, %p150
    %p153 = scmp.ne.s32.totalorder %s136, %s152
    %p154 = scmp.eq.s32.totalorder %s18, 0
    %p155 = por %p153, %p154
    %p156 = scmp.le.s32.totalorder 1, %s12
    %p157 = scmp.lt.s32.totalorder %s12, 3
    %p158 = pnand %p156, %p157
    %p159 = pneg %p158
    // Predicated region
    $region9: #{tpu_custom_call.1} parent=5 // pred_check
      _
    $region10: #{tpu_custom_call.1} parent=5 // pred_check_branch
      %161 = sbr.rel (%p158) target = $region12
    $region11: #{tpu_custom_call.1} parent=5 // pred_region
      %s162 = ssub.s32 %s12, 1
      // Predicated region
      $region13: #{tpu_custom_call.1} parent=11 // pred_check
        %p163 = pneg %p59
      $region14: #{tpu_custom_call.1} parent=11 // pred_check_branch
        %165 = sbr.rel (%p163) target = $region16
      $region15: #{tpu_custom_call.1} parent=11 // pred_region
        _
      $region16: #{tpu_custom_call.1} parent=11 // pred_fallthru
        _
      // Predicated region
      $region17: #{tpu_custom_call.1} parent=11 // pred_check
        %p166 = pneg %p80
      $region18: #{tpu_custom_call.1} parent=11 // pred_check_branch
        %168 = sbr.rel (%p166) target = $region20
      $region19: #{tpu_custom_call.1} parent=11 // pred_region
        _
      $region20: #{tpu_custom_call.1} parent=11 // pred_fallthru
        _
      // Predicated region
      $region21: #{tpu_custom_call.1} parent=11 // pred_check
        %p169 = pneg %p101
      $region22: #{tpu_custom_call.1} parent=11 // pred_check_branch
        %171 = sbr.rel (%p169) target = $region24
      $region23: #{tpu_custom_call.1} parent=11 // pred_region
        _
      $region24: #{tpu_custom_call.1} parent=11 // pred_fallthru
        _
      // Predicated region
      $region25: #{tpu_custom_call.1} parent=11 // pred_check
        %p172 = pneg %p122
      $region26: #{tpu_custom_call.1} parent=11 // pred_check_branch
        %174 = sbr.rel (%p172) target = $region28
      $region27: #{tpu_custom_call.1} parent=11 // pred_region
        _
      $region28: #{tpu_custom_call.1} parent=11 // pred_fallthru
        _
    $region12: #{tpu_custom_call.1} parent=5 // pred_fallthru
      _
    %p175 = scmp.lt.s32.totalorder %s12, 2
    // Predicated region
    $region29: #{tpu_custom_call.1} parent=5 // pred_check
      %p176 = pneg %p175
    $region30: #{tpu_custom_call.1} parent=5 // pred_check_branch
      %178 = sbr.rel (%p176) target = $region32
    $region31: #{tpu_custom_call.1} parent=5 // pred_region
      // Predicated region
      $region33: #{tpu_custom_call.1} parent=31 // pred_check
        %p179 = pneg %p32
      $region34: #{tpu_custom_call.1} parent=31 // pred_check_branch
        %181 = sbr.rel (%p179) target = $region36
      $region35: #{tpu_custom_call.1} parent=31 // pred_region
        %s182 = smul.u32 4, %s12
        %p183 = scmp.lt.s32.totalorder %s182, 7
        %s184 = scalar_select %p183, %s182, 7
        %s185 = smul.addr %s184, 18
        %s186 = smul.addr %s185, 8
        %s187 = scalar_lea.vmem %s0, %s186
        %s188 = smul.u32 4, %s12
      $region36: #{tpu_custom_call.1} parent=31 // pred_fallthru
        _
    $region32: #{tpu_custom_call.1} parent=5 // pred_fallthru
      _
    %p189 = scmp.le.s32.totalorder 1, %s12
    %p190 = scmp.lt.s32.totalorder %s12, 3
    %p191 = pnand %p189, %p190
    %p192 = pneg %p191
    // Predicated region
    $region37: #{tpu_custom_call.1} parent=5 // pred_check
      _
    $region38: #{tpu_custom_call.1} parent=5 // pred_check_branch
      %194 = sbr.rel (%p191) target = $region40
    $region39: #{tpu_custom_call.1} parent=5 // pred_region
      %s195 = ssub.s32 %s12, 1
      %s196 = smul.u32 4, %s17
      %p197 = scmp.lt.s32.totalorder %s196, 7
      %s198 = scalar_select %p197, %s196, 7
      %s199 = smul.addr %s198, 18
      %s200 = smul.addr %s199, 8
      %s201 = scalar_lea.vmem %s0, %s200
      %p202 = pneg %p38
      %p203 = pneg %p35
      %p204 = pneg %p59
      %p205 = pneg %p56
      %p206 = pneg %p80
      %p207 = pneg %p77
      %p208 = pneg %p101
      %p209 = pneg %p98
      %p210 = pneg %p122
      %p211 = pneg %p119
      %p212 = pneg %p148
      %p213 = pneg %p145
      %p214 = scmp.lt.s32.totalorder %s17, 1
      %s215 = scalar_select %p214, %s17, 1
      %s216 = smul.addr %s215, 8
      %s217 = scalar_lea.vmem %s5, %s216
      %s218 = smul.u32 4, %s17
      %p219 = scmp.lt.s32.totalorder %s218, 7
      %s220 = scalar_select %p219, %s218, 7
      %s221 = smul.addr %s220, 18
      %s222 = smul.addr %s221, 8
      %s223 = scalar_lea.vmem %s0, %s222
      %s224 = smul.u32 4, %s17
      %p225 = scmp.lt.s32.totalorder %s17, 1
      %s226 = scalar_select %p225, %s17, 1
      %s227 = smul.addr %s226, 8
      %s228 = scalar_lea.vmem %s5, %s227
      %v230 = vld [vmem:[%s223] sm:$0xff]
      %v231 = vld [vmem:[%s223 + $0x8] sm:$0x1]
      %v232 = vld [vmem:[%s223 + $0x10] sm:$0xff]
      %v233 = vld [vmem:[%s223 + $0x18] sm:$0x1]
      %v234 = vld [vmem:[%s223 + $0x20] sm:$0xff]
      %v235 = vld [vmem:[%s223 + $0x28] sm:$0x1]
      %v236 = vld [vmem:[%s223 + $0x30] sm:$0xff]
      %v237 = vld [vmem:[%s223 + $0x38] sm:$0x1]
      %v238 = vld [vmem:[%s223 + $0x40] sm:$0xff]
      %v239 = vld [vmem:[%s223 + $0x48] sm:$0x1]
      %v240 = vld [vmem:[%s223 + $0x50] sm:$0xff]
      %v241 = vld [vmem:[%s223 + $0x58] sm:$0x1]
      %v242 = vld [vmem:[%s223 + $0x60] sm:$0xff]
      %v243 = vld [vmem:[%s223 + $0x68] sm:$0x1]
      %v244 = vld [vmem:[%s223 + $0x70] sm:$0xff]
      %v245 = vld [vmem:[%s223 + $0x78] sm:$0x1]
      %v246 = vld [vmem:[%s223 + $0x80] sm:$0xff]
      %v247 = vld [vmem:[%s223 + $0x88] sm:$0x1]
      %v248 = vpack.c.bf16 %v232, %v230
      %v249 = vpack.c.bf16 %v236, %v234
      %v250 = vpack.c.bf16 %v240, %v238
      %v251 = vpack.c.bf16 %v244, %v242
      %v252 = vld [vmem:[%s1] sm:$0x3]
      %s253 = scalar_lea.vmem %s223, 144
      %v254 = vld [vmem:[%s253] sm:$0xff]
      %v255 = vld [vmem:[%s253 + $0x8] sm:$0x1]
      %v256 = vld [vmem:[%s253 + $0x10] sm:$0xff]
      %v257 = vld [vmem:[%s253 + $0x18] sm:$0x1]
      %v258 = vld [vmem:[%s253 + $0x20] sm:$0xff]
      %v259 = vld [vmem:[%s253 + $0x28] sm:$0x1]
      %v260 = vld [vmem:[%s253 + $0x30] sm:$0xff]
      %v261 = vld [vmem:[%s253 + $0x38] sm:$0x1]
      %v262 = vld [vmem:[%s253 + $0x40] sm:$0xff]
      %v263 = vld [vmem:[%s253 + $0x48] sm:$0x1]
      %v264 = vld [vmem:[%s253 + $0x50] sm:$0xff]
      %v265 = vld [vmem:[%s253 + $0x58] sm:$0x1]
      %v266 = vld [vmem:[%s253 + $0x60] sm:$0xff]
      %v267 = vld [vmem:[%s253 + $0x68] sm:$0x1]
      %v268 = vld [vmem:[%s253 + $0x70] sm:$0xff]
      %v269 = vld [vmem:[%s253 + $0x78] sm:$0x1]
      %v270 = vld [vmem:[%s253 + $0x80] sm:$0xff]
      %v271 = vld [vmem:[%s253 + $0x88] sm:$0x1]
      %v272 = vpack.c.bf16 %v256, %v254
      %v273 = vpack.c.bf16 %v260, %v258
      %v274 = vpack.c.bf16 %v264, %v262
      %v275 = vpack.c.bf16 %v268, %v266
      %s276 = scalar_lea.vmem %s1, 2
      %v277 = vld [vmem:[%s276] sm:$0x3]
      %vm278 = vcmask 23552
      %v280 = vsel %vm278, %v272, 0
      %v283 = vsel %vm278, %v273, 0
      %v286 = vsel %vm278, %v274, 0
      %v289 = vsel %vm278, %v275, 0
      %vm291 = vcmask 1040384
      %vm292 = vcmask 1041408
      %v293 = vsel %vm291, 4294967295, 65535
      %v294 = vsel %vm292, %v293, 0
      %v296 = vand.u32 %v277, %v294
      %298 = vmatprep.subr.bf16.mxu0 0
      %299 = vmatpush1.bf16.msra.mxu0 0
      %300 = vmatprep.subr.bf16.mxu0 0
      %301 = vmatpush1.bf16.msra.mxu0 0
      %302 = vmatprep.subr.bf16.mxu0 0
      %303 = vmatpush1.bf16.msra.mxu0 0
      %304 = vmatprep.subr.bf16.mxu0 0
      %305 = vmatpush1.bf16.msra.mxu0 0
      %306 = vmatprep.subr.bf16.mxu0 0
      %307 = vmatpush1.bf16.msra.mxu0 0
      %308 = vmatprep.subr.bf16.mxu0 0
      %309 = vmatpush1.bf16.msra.mxu0 0
      %310 = vmatprep.subr.bf16.mxu0 0
      %311 = vmatpush1.bf16.msra.mxu0 0
      %312 = vmatprep.subr.bf16.mxu0 0
      %313 = vmatpush1.bf16.msra.mxu0 %v296
      %314 = vmatprep.subr.bf16.mxu0 0
      %315 = vmatpush2.bf16.msra.mxu0 0
      %316 = vmatprep.subr.bf16.mxu0 0
      %317 = vmatpush2.bf16.msra.mxu0 0
      %318 = vmatprep.subr.bf16.mxu0 0
      %319 = vmatpush2.bf16.msra.mxu0 0
      %320 = vmatprep.subr.bf16.mxu0 0
      %321 = vmatpush2.bf16.msra.mxu0 0
      %322 = vmatprep.subr.bf16.mxu0 0
      %323 = vmatpush2.bf16.msra.mxu0 0
      %324 = vmatprep.subr.bf16.mxu0 0
      %325 = vmatpush2.bf16.msra.mxu0 0
      %326 = vmatprep.subr.bf16.mxu0 0
      %327 = vmatpush2.bf16.msra.mxu0 0
      %328 = vmatprep.subr.bf16.mxu0 0
      %329 = vmatpush2.bf16.msra.mxu0 0
      %330 = vmatprep.mubr.bf16.mxu0 0
      %331 = vmatmul.mubr.bf16.gmra.mxu0 %v280
      %v332 = vpop.f32.mrf.mxu0
      %v333 = vadd.f32 0.0, %v332
      %v334 = vpop.f32.mrf.mxu0
      %v335 = vpop.f32.mrf.mxu0
      %v336 = vadd.f32 0.0, %v335
      %v337 = vpop.f32.mrf.mxu0
      %338 = vmatprep.mubr.bf16.mxu0 0
      %339 = vmatmul.mubr.bf16.gmra.mxu0 %v283
      %v340 = vpop.f32.mrf.mxu0
      %v341 = vadd.f32 0.0, %v340
      %v342 = vpop.f32.mrf.mxu0
      %v343 = vpop.f32.mrf.mxu0
      %v344 = vadd.f32 0.0, %v343
      %v345 = vpop.f32.mrf.mxu0
      %346 = vmatprep.mubr.bf16.mxu0 0
      %347 = vmatmul.mubr.bf16.gmra.mxu0 %v286
      %v348 = vpop.f32.mrf.mxu0
      %v349 = vadd.f32 0.0, %v348
      %v350 = vpop.f32.mrf.mxu0
      %v351 = vpop.f32.mrf.mxu0
      %v352 = vadd.f32 0.0, %v351
      %v353 = vpop.f32.mrf.mxu0
      %354 = vmatprep.mubr.bf16.mxu0 0
      %355 = vmatmul.mubr.bf16.gmra.mxu0 %v289
      %v356 = vpop.f32.mrf.mxu0
      %v357 = vadd.f32 0.0, %v356
      %v358 = vpop.f32.mrf.mxu0
      %v359 = vpop.f32.mrf.mxu0
      %v360 = vadd.f32 0.0, %v359
      %v361 = vpop.f32.mrf.mxu0
      %362 = vdwg.mxu0
      %v364 = vsel %vm278, %v248, 0
      %v367 = vsel %vm278, %v249, 0
      %v370 = vsel %vm278, %v250, 0
      %v373 = vsel %vm278, %v251, 0
      %v376 = vand.u32 %v252, %v294
      %378 = vmatprep.subr.bf16.mxu0 0
      %379 = vmatpush1.bf16.msra.mxu0 0
      %380 = vmatprep.subr.bf16.mxu0 0
      %381 = vmatpush1.bf16.msra.mxu0 0
      %382 = vmatprep.subr.bf16.mxu0 0
      %383 = vmatpush1.bf16.msra.mxu0 0
      %384 = vmatprep.subr.bf16.mxu0 0
      %385 = vmatpush1.bf16.msra.mxu0 0
      %386 = vmatprep.subr.bf16.mxu0 0
      %387 = vmatpush1.bf16.msra.mxu0 0
      %388 = vmatprep.subr.bf16.mxu0 0
      %389 = vmatpush1.bf16.msra.mxu0 0
      %390 = vmatprep.subr.bf16.mxu0 0
      %391 = vmatpush1.bf16.msra.mxu0 0
      %392 = vmatprep.subr.bf16.mxu0 0
      %393 = vmatpush1.bf16.msra.mxu0 %v376
      %394 = vmatprep.subr.bf16.mxu0 0
      %395 = vmatpush2.bf16.msra.mxu0 0
      %396 = vmatprep.subr.bf16.mxu0 0
      %397 = vmatpush2.bf16.msra.mxu0 0
      %398 = vmatprep.subr.bf16.mxu0 0
      %399 = vmatpush2.bf16.msra.mxu0 0
      %400 = vmatprep.subr.bf16.mxu0 0
      %401 = vmatpush2.bf16.msra.mxu0 0
      %402 = vmatprep.subr.bf16.mxu0 0
      %403 = vmatpush2.bf16.msra.mxu0 0
      %404 = vmatprep.subr.bf16.mxu0 0
      %405 = vmatpush2.bf16.msra.mxu0 0
      %406 = vmatprep.subr.bf16.mxu0 0
      %407 = vmatpush2.bf16.msra.mxu0 0
      %408 = vmatprep.subr.bf16.mxu0 0
      %409 = vmatpush2.bf16.msra.mxu0 0
      %410 = vmatprep.mubr.bf16.mxu0 0
      %411 = vmatmul.mubr.bf16.gmra.mxu0 %v364
      %v412 = vpop.f32.mrf.mxu0
      %v413 = vadd.f32 %v333, %v412
      %v414 = vpop.f32.mrf.mxu0
      %v415 = vpop.f32.mrf.mxu0
      %v416 = vadd.f32 %v336, %v415
      %v417 = vpop.f32.mrf.mxu0
      %418 = vmatprep.mubr.bf16.mxu0 0
      %419 = vmatmul.mubr.bf16.gmra.mxu0 %v367
      %v420 = vpop.f32.mrf.mxu0
      %v421 = vadd.f32 %v341, %v420
      %v422 = vpop.f32.mrf.mxu0
      %v423 = vpop.f32.mrf.mxu0
      %v424 = vadd.f32 %v344, %v423
      %v425 = vpop.f32.mrf.mxu0
      %426 = vmatprep.mubr.bf16.mxu0 0
      %427 = vmatmul.mubr.bf16.gmra.mxu0 %v370
      %v428 = vpop.f32.mrf.mxu0
      %v429 = vadd.f32 %v349, %v428
      %v430 = vpop.f32.mrf.mxu0
      %v431 = vpop.f32.mrf.mxu0
      %v432 = vadd.f32 %v352, %v431
      %v433 = vpop.f32.mrf.mxu0
      %434 = vmatprep.mubr.bf16.mxu0 0
      %435 = vmatmul.mubr.bf16.gmra.mxu0 %v373
      %v436 = vpop.f32.mrf.mxu0
      %v437 = vadd.f32 %v357, %v436
      %v438 = vpop.f32.mrf.mxu0
      %v439 = vpop.f32.mrf.mxu0
      %v440 = vadd.f32 %v360, %v439
      %v441 = vpop.f32.mrf.mxu0
      %442 = vdwg.mxu0
      %vm459 = vcmask 1046528
      %v460 = vrot.slane %v230, 1
      %v461 = vrot.slane %v231, 1
      %v462 = vsel %vm459, %v460, %v461
      %v463 = vrot.slane %v232, 1
      %v464 = vrot.slane %v233, 1
      %v465 = vsel %vm459, %v463, %v464
      %v466 = vrot.slane %v234, 1
      %v467 = vrot.slane %v235, 1
      %v468 = vsel %vm459, %v466, %v467
      %v469 = vrot.slane %v236, 1
      %v470 = vrot.slane %v237, 1
      %v471 = vsel %vm459, %v469, %v470
      %v472 = vrot.slane %v238, 1
      %v473 = vrot.slane %v239, 1
      %v474 = vsel %vm459, %v472, %v473
      %v475 = vrot.slane %v240, 1
      %v476 = vrot.slane %v241, 1
      %v477 = vsel %vm459, %v475, %v476
      %v478 = vrot.slane %v242, 1
      %v479 = vrot.slane %v243, 1
      %v480 = vsel %vm459, %v478, %v479
      %v481 = vrot.slane %v244, 1
      %v482 = vrot.slane %v245, 1
      %v483 = vsel %vm459, %v481, %v482
      %v492 = vpack.c.bf16 %v465, %v462
      %v493 = vpack.c.bf16 %v471, %v468
      %v494 = vpack.c.bf16 %v477, %v474
      %v495 = vpack.c.bf16 %v483, %v480
      %s496 = scalar_lea.vmem %s1, 4
      %v497 = vld [vmem:[%s496] sm:$0x3]
      %v499 = vsel %vm278, %v492, 0
      %v502 = vsel %vm278, %v493, 0
      %v505 = vsel %vm278, %v494, 0
      %v508 = vsel %vm278, %v495, 0
      %v511 = vand.u32 %v497, %v294
      %513 = vmatprep.subr.bf16.mxu0 0
      %514 = vmatpush1.bf16.msra.mxu0 0
      %515 = vmatprep.subr.bf16.mxu0 0
      %516 = vmatpush1.bf16.msra.mxu0 0
      %517 = vmatprep.subr.bf16.mxu0 0
      %518 = vmatpush1.bf16.msra.mxu0 0
      %519 = vmatprep.subr.bf16.mxu0 0
      %520 = vmatpush1.bf16.msra.mxu0 0
      %521 = vmatprep.subr.bf16.mxu0 0
      %522 = vmatpush1.bf16.msra.mxu0 0
      %523 = vmatprep.subr.bf16.mxu0 0
      %524 = vmatpush1.bf16.msra.mxu0 0
      %525 = vmatprep.subr.bf16.mxu0 0
      %526 = vmatpush1.bf16.msra.mxu0 0
      %527 = vmatprep.subr.bf16.mxu0 0
      %528 = vmatpush1.bf16.msra.mxu0 %v511
      %529 = vmatprep.subr.bf16.mxu0 0
      %530 = vmatpush2.bf16.msra.mxu0 0
      %531 = vmatprep.subr.bf16.mxu0 0
      %532 = vmatpush2.bf16.msra.mxu0 0
      %533 = vmatprep.subr.bf16.mxu0 0
      %534 = vmatpush2.bf16.msra.mxu0 0
      %535 = vmatprep.subr.bf16.mxu0 0
      %536 = vmatpush2.bf16.msra.mxu0 0
      %537 = vmatprep.subr.bf16.mxu0 0
      %538 = vmatpush2.bf16.msra.mxu0 0
      %539 = vmatprep.subr.bf16.mxu0 0
      %540 = vmatpush2.bf16.msra.mxu0 0
      %541 = vmatprep.subr.bf16.mxu0 0
      %542 = vmatpush2.bf16.msra.mxu0 0
      %543 = vmatprep.subr.bf16.mxu0 0
      %544 = vmatpush2.bf16.msra.mxu0 0
      %545 = vmatprep.mubr.bf16.mxu0 0
      %546 = vmatmul.mubr.bf16.gmra.mxu0 %v499
      %v547 = vpop.f32.mrf.mxu0
      %v548 = vadd.f32 0.0, %v547
      %v549 = vpop.f32.mrf.mxu0
      %v550 = vpop.f32.mrf.mxu0
      %v551 = vadd.f32 0.0, %v550
      %v552 = vpop.f32.mrf.mxu0
      %553 = vmatprep.mubr.bf16.mxu0 0
      %554 = vmatmul.mubr.bf16.gmra.mxu0 %v502
      %v555 = vpop.f32.mrf.mxu0
      %v556 = vadd.f32 0.0, %v555
      %v557 = vpop.f32.mrf.mxu0
      %v558 = vpop.f32.mrf.mxu0
      %v559 = vadd.f32 0.0, %v558
      %v560 = vpop.f32.mrf.mxu0
      %561 = vmatprep.mubr.bf16.mxu0 0
      %562 = vmatmul.mubr.bf16.gmra.mxu0 %v505
      %v563 = vpop.f32.mrf.mxu0
      %v564 = vadd.f32 0.0, %v563
      %v565 = vpop.f32.mrf.mxu0
      %v566 = vpop.f32.mrf.mxu0
      %v567 = vadd.f32 0.0, %v566
      %v568 = vpop.f32.mrf.mxu0
      %569 = vmatprep.mubr.bf16.mxu0 0
      %570 = vmatmul.mubr.bf16.gmra.mxu0 %v508
      %v571 = vpop.f32.mrf.mxu0
      %v572 = vadd.f32 0.0, %v571
      %v573 = vpop.f32.mrf.mxu0
      %v574 = vpop.f32.mrf.mxu0
      %v575 = vadd.f32 0.0, %v574
      %v576 = vpop.f32.mrf.mxu0
      %577 = vdwg.mxu0
      %v578 = vadd.f32 %v413, %v548
      %v579 = vadd.f32 %v416, %v551
      %v580 = vadd.f32 %v421, %v556
      %v581 = vadd.f32 %v424, %v559
      %v582 = vadd.f32 %v429, %v564
      %v583 = vadd.f32 %v432, %v567
      %v584 = vadd.f32 %v437, %v572
      %v585 = vadd.f32 %v440, %v575
      %v602 = vrot.slane %v254, 1
      %v603 = vrot.slane %v255, 1
      %v604 = vsel %vm459, %v602, %v603
      %v605 = vrot.slane %v256, 1
      %v606 = vrot.slane %v257, 1
      %v607 = vsel %vm459, %v605, %v606
      %v608 = vrot.slane %v258, 1
      %v609 = vrot.slane %v259, 1
      %v610 = vsel %vm459, %v608, %v609
      %v611 = vrot.slane %v260, 1
      %v612 = vrot.slane %v261, 1
      %v613 = vsel %vm459, %v611, %v612
      %v614 = vrot.slane %v262, 1
      %v615 = vrot.slane %v263, 1
      %v616 = vsel %vm459, %v614, %v615
      %v617 = vrot.slane %v264, 1
      %v618 = vrot.slane %v265, 1
      %v619 = vsel %vm459, %v617, %v618
      %v620 = vrot.slane %v266, 1
      %v621 = vrot.slane %v267, 1
      %v622 = vsel %vm459, %v620, %v621
      %v623 = vrot.slane %v268, 1
      %v624 = vrot.slane %v269, 1
      %v625 = vsel %vm459, %v623, %v624
      %v634 = vpack.c.bf16 %v607, %v604
      %v635 = vpack.c.bf16 %v613, %v610
      %v636 = vpack.c.bf16 %v619, %v616
      %v637 = vpack.c.bf16 %v625, %v622
      %s638 = scalar_lea.vmem %s1, 6
      %v639 = vld [vmem:[%s638] sm:$0x3]
      %v641 = vsel %vm278, %v634, 0
      %v644 = vsel %vm278, %v635, 0
      %v647 = vsel %vm278, %v636, 0
      %v650 = vsel %vm278, %v637, 0
      %v653 = vand.u32 %v639, %v294
      %655 = vmatprep.subr.bf16.mxu0 0
      %656 = vmatpush1.bf16.msra.mxu0 0
      %657 = vmatprep.subr.bf16.mxu0 0
      %658 = vmatpush1.bf16.msra.mxu0 0
      %659 = vmatprep.subr.bf16.mxu0 0
      %660 = vmatpush1.bf16.msra.mxu0 0
      %661 = vmatprep.subr.bf16.mxu0 0
      %662 = vmatpush1.bf16.msra.mxu0 0
      %663 = vmatprep.subr.bf16.mxu0 0
      %664 = vmatpush1.bf16.msra.mxu0 0
      %665 = vmatprep.subr.bf16.mxu0 0
      %666 = vmatpush1.bf16.msra.mxu0 0
      %667 = vmatprep.subr.bf16.mxu0 0
      %668 = vmatpush1.bf16.msra.mxu0 0
      %669 = vmatprep.subr.bf16.mxu0 0
      %670 = vmatpush1.bf16.msra.mxu0 %v653
      %671 = vmatprep.subr.bf16.mxu0 0
      %672 = vmatpush2.bf16.msra.mxu0 0
      %673 = vmatprep.subr.bf16.mxu0 0
      %674 = vmatpush2.bf16.msra.mxu0 0
      %675 = vmatprep.subr.bf16.mxu0 0
      %676 = vmatpush2.bf16.msra.mxu0 0
      %677 = vmatprep.subr.bf16.mxu0 0
      %678 = vmatpush2.bf16.msra.mxu0 0
      %679 = vmatprep.subr.bf16.mxu0 0
      %680 = vmatpush2.bf16.msra.mxu0 0
      %681 = vmatprep.subr.bf16.mxu0 0
      %682 = vmatpush2.bf16.msra.mxu0 0
      %683 = vmatprep.subr.bf16.mxu0 0
      %684 = vmatpush2.bf16.msra.mxu0 0
      %685 = vmatprep.subr.bf16.mxu0 0
      %686 = vmatpush2.bf16.msra.mxu0 0
      %687 = vmatprep.mubr.bf16.mxu0 0
      %688 = vmatmul.mubr.bf16.gmra.mxu0 %v641
      %v689 = vpop.f32.mrf.mxu0
      %v690 = vadd.f32 0.0, %v689
      %v691 = vpop.f32.mrf.mxu0
      %v692 = vpop.f32.mrf.mxu0
      %v693 = vadd.f32 0.0, %v692
      %v694 = vpop.f32.mrf.mxu0
      %695 = vmatprep.mubr.bf16.mxu0 0
      %696 = vmatmul.mubr.bf16.gmra.mxu0 %v644
      %v697 = vpop.f32.mrf.mxu0
      %v698 = vadd.f32 0.0, %v697
      %v699 = vpop.f32.mrf.mxu0
      %v700 = vpop.f32.mrf.mxu0
      %v701 = vadd.f32 0.0, %v700
      %v702 = vpop.f32.mrf.mxu0
      %703 = vmatprep.mubr.bf16.mxu0 0
      %704 = vmatmul.mubr.bf16.gmra.mxu0 %v647
      %v705 = vpop.f32.mrf.mxu0
      %v706 = vadd.f32 0.0, %v705
      %v707 = vpop.f32.mrf.mxu0
      %v708 = vpop.f32.mrf.mxu0
      %v709 = vadd.f32 0.0, %v708
      %v710 = vpop.f32.mrf.mxu0
      %711 = vmatprep.mubr.bf16.mxu0 0
      %712 = vmatmul.mubr.bf16.gmra.mxu0 %v650
      %v713 = vpop.f32.mrf.mxu0
      %v714 = vadd.f32 0.0, %v713
      %v715 = vpop.f32.mrf.mxu0
      %v716 = vpop.f32.mrf.mxu0
      %v717 = vadd.f32 0.0, %v716
      %v718 = vpop.f32.mrf.mxu0
      %719 = vdwg.mxu0
      %v720 = vadd.f32 %v578, %v690
      %v721 = vadd.f32 %v579, %v693
      %v722 = vadd.f32 %v580, %v698
      %v723 = vadd.f32 %v581, %v701
      %v724 = vadd.f32 %v582, %v706
      %v725 = vadd.f32 %v583, %v709
      %v726 = vadd.f32 %v584, %v714
      %v727 = vadd.f32 %v585, %v717
      %s728 = scalar_lea.vmem %s223, 288
      %v729 = vld [vmem:[%s728] sm:$0xff]
      %v730 = vld [vmem:[%s728 + $0x8] sm:$0x1]
      %v731 = vld [vmem:[%s728 + $0x10] sm:$0xff]
      %v732 = vld [vmem:[%s728 + $0x18] sm:$0x1]
      %v733 = vld [vmem:[%s728 + $0x20] sm:$0xff]
      %v734 = vld [vmem:[%s728 + $0x28] sm:$0x1]
      %v735 = vld [vmem:[%s728 + $0x30] sm:$0xff]
      %v736 = vld [vmem:[%s728 + $0x38] sm:$0x1]
      %v737 = vld [vmem:[%s728 + $0x40] sm:$0xff]
      %v738 = vld [vmem:[%s728 + $0x48] sm:$0x1]
      %v739 = vld [vmem:[%s728 + $0x50] sm:$0xff]
      %v740 = vld [vmem:[%s728 + $0x58] sm:$0x1]
      %v741 = vld [vmem:[%s728 + $0x60] sm:$0xff]
      %v742 = vld [vmem:[%s728 + $0x68] sm:$0x1]
      %v743 = vld [vmem:[%s728 + $0x70] sm:$0xff]
      %v744 = vld [vmem:[%s728 + $0x78] sm:$0x1]
      %v745 = vld [vmem:[%s728 + $0x80] sm:$0xff]
      %v746 = vld [vmem:[%s728 + $0x88] sm:$0x1]
      %v747 = vpack.c.bf16 %v731, %v729
      %v748 = vpack.c.bf16 %v735, %v733
      %v749 = vpack.c.bf16 %v739, %v737
      %v750 = vpack.c.bf16 %v743, %v741
      %s751 = scalar_lea.vmem %s1, 8
      %v752 = vld [vmem:[%s751] sm:$0x3]
      %v754 = vsel %vm278, %v747, 0
      %v757 = vsel %vm278, %v748, 0
      %v760 = vsel %vm278, %v749, 0
      %v763 = vsel %vm278, %v750, 0
      %v766 = vand.u32 %v752, %v294
      %768 = vmatprep.subr.bf16.mxu0 0
      %769 = vmatpush1.bf16.msra.mxu0 0
      %770 = vmatprep.subr.bf16.mxu0 0
      %771 = vmatpush1.bf16.msra.mxu0 0
      %772 = vmatprep.subr.bf16.mxu0 0
      %773 = vmatpush1.bf16.msra.mxu0 0
      %774 = vmatprep.subr.bf16.mxu0 0
      %775 = vmatpush1.bf16.msra.mxu0 0
      %776 = vmatprep.subr.bf16.mxu0 0
      %777 = vmatpush1.bf16.msra.mxu0 0
      %778 = vmatprep.subr.bf16.mxu0 0
      %779 = vmatpush1.bf16.msra.mxu0 0
      %780 = vmatprep.subr.bf16.mxu0 0
      %781 = vmatpush1.bf16.msra.mxu0 0
      %782 = vmatprep.subr.bf16.mxu0 0
      %783 = vmatpush1.bf16.msra.mxu0 %v766
      %784 = vmatprep.subr.bf16.mxu0 0
      %785 = vmatpush2.bf16.msra.mxu0 0
      %786 = vmatprep.subr.bf16.mxu0 0
      %787 = vmatpush2.bf16.msra.mxu0 0
      %788 = vmatprep.subr.bf16.mxu0 0
      %789 = vmatpush2.bf16.msra.mxu0 0
      %790 = vmatprep.subr.bf16.mxu0 0
      %791 = vmatpush2.bf16.msra.mxu0 0
      %792 = vmatprep.subr.bf16.mxu0 0
      %793 = vmatpush2.bf16.msra.mxu0 0
      %794 = vmatprep.subr.bf16.mxu0 0
      %795 = vmatpush2.bf16.msra.mxu0 0
      %796 = vmatprep.subr.bf16.mxu0 0
      %797 = vmatpush2.bf16.msra.mxu0 0
      %798 = vmatprep.subr.bf16.mxu0 0
      %799 = vmatpush2.bf16.msra.mxu0 0
      %800 = vmatprep.mubr.bf16.mxu0 0
      %801 = vmatmul.mubr.bf16.gmra.mxu0 %v754
      %v802 = vpop.f32.mrf.mxu0
      %v803 = vadd.f32 0.0, %v802
      %v804 = vpop.f32.mrf.mxu0
      %v805 = vpop.f32.mrf.mxu0
      %v806 = vadd.f32 0.0, %v805
      %v807 = vpop.f32.mrf.mxu0
      %808 = vmatprep.mubr.bf16.mxu0 0
      %809 = vmatmul.mubr.bf16.gmra.mxu0 %v757
      %v810 = vpop.f32.mrf.mxu0
      %v811 = vadd.f32 0.0, %v810
      %v812 = vpop.f32.mrf.mxu0
      %v813 = vpop.f32.mrf.mxu0
      %v814 = vadd.f32 0.0, %v813
      %v815 = vpop.f32.mrf.mxu0
      %816 = vmatprep.mubr.bf16.mxu0 0
      %817 = vmatmul.mubr.bf16.gmra.mxu0 %v760
      %v818 = vpop.f32.mrf.mxu0
      %v819 = vadd.f32 0.0, %v818
      %v820 = vpop.f32.mrf.mxu0
      %v821 = vpop.f32.mrf.mxu0
      %v822 = vadd.f32 0.0, %v821
      %v823 = vpop.f32.mrf.mxu0
      %824 = vmatprep.mubr.bf16.mxu0 0
      %825 = vmatmul.mubr.bf16.gmra.mxu0 %v763
      %v826 = vpop.f32.mrf.mxu0
      %v827 = vadd.f32 0.0, %v826
      %v828 = vpop.f32.mrf.mxu0
      %v829 = vpop.f32.mrf.mxu0
      %v830 = vadd.f32 0.0, %v829
      %v831 = vpop.f32.mrf.mxu0
      %832 = vdwg.mxu0
      %v833 = vadd.f32 %v720, %v803
      %v834 = vadd.f32 %v721, %v806
      %v835 = vadd.f32 %v722, %v811
      %v836 = vadd.f32 %v723, %v814
      %v837 = vadd.f32 %v724, %v819
      %v838 = vadd.f32 %v725, %v822
      %v839 = vadd.f32 %v726, %v827
      %v840 = vadd.f32 %v727, %v830
      %s841 = scalar_lea.vmem %s223, 432
      %v842 = vld [vmem:[%s841] sm:$0xff]
      %v843 = vld [vmem:[%s841 + $0x8] sm:$0x1]
      %v844 = vld [vmem:[%s841 + $0x10] sm:$0xff]
      %v845 = vld [vmem:[%s841 + $0x18] sm:$0x1]
      %v846 = vld [vmem:[%s841 + $0x20] sm:$0xff]
      %v847 = vld [vmem:[%s841 + $0x28] sm:$0x1]
      %v848 = vld [vmem:[%s841 + $0x30] sm:$0xff]
      %v849 = vld [vmem:[%s841 + $0x38] sm:$0x1]
      %v850 = vld [vmem:[%s841 + $0x40] sm:$0xff]
      %v851 = vld [vmem:[%s841 + $0x48] sm:$0x1]
      %v852 = vld [vmem:[%s841 + $0x50] sm:$0xff]
      %v853 = vld [vmem:[%s841 + $0x58] sm:$0x1]
      %v854 = vld [vmem:[%s841 + $0x60] sm:$0xff]
      %v855 = vld [vmem:[%s841 + $0x68] sm:$0x1]
      %v856 = vld [vmem:[%s841 + $0x70] sm:$0xff]
      %v857 = vld [vmem:[%s841 + $0x78] sm:$0x1]
      %v858 = vld [vmem:[%s841 + $0x80] sm:$0xff]
      %v859 = vld [vmem:[%s841 + $0x88] sm:$0x1]
      %v860 = vpack.c.bf16 %v844, %v842
      %v861 = vpack.c.bf16 %v848, %v846
      %v862 = vpack.c.bf16 %v852, %v850
      %v863 = vpack.c.bf16 %v856, %v854
      %s864 = scalar_lea.vmem %s1, 10
      %v865 = vld [vmem:[%s864] sm:$0x3]
      %v867 = vsel %vm278, %v860, 0
      %v870 = vsel %vm278, %v861, 0
      %v873 = vsel %vm278, %v862, 0
      %v876 = vsel %vm278, %v863, 0
      %v879 = vand.u32 %v865, %v294
      %881 = vmatprep.subr.bf16.mxu0 0
      %882 = vmatpush1.bf16.msra.mxu0 0
      %883 = vmatprep.subr.bf16.mxu0 0
      %884 = vmatpush1.bf16.msra.mxu0 0
      %885 = vmatprep.subr.bf16.mxu0 0
      %886 = vmatpush1.bf16.msra.mxu0 0
      %887 = vmatprep.subr.bf16.mxu0 0
      %888 = vmatpush1.bf16.msra.mxu0 0
      %889 = vmatprep.subr.bf16.mxu0 0
      %890 = vmatpush1.bf16.msra.mxu0 0
      %891 = vmatprep.subr.bf16.mxu0 0
      %892 = vmatpush1.bf16.msra.mxu0 0
      %893 = vmatprep.subr.bf16.mxu0 0
      %894 = vmatpush1.bf16.msra.mxu0 0
      %895 = vmatprep.subr.bf16.mxu0 0
      %896 = vmatpush1.bf16.msra.mxu0 %v879
      %897 = vmatprep.subr.bf16.mxu0 0
      %898 = vmatpush2.bf16.msra.mxu0 0
      %899 = vmatprep.subr.bf16.mxu0 0
      %900 = vmatpush2.bf16.msra.mxu0 0
      %901 = vmatprep.subr.bf16.mxu0 0
      %902 = vmatpush2.bf16.msra.mxu0 0
      %903 = vmatprep.subr.bf16.mxu0 0
      %904 = vmatpush2.bf16.msra.mxu0 0
      %905 = vmatprep.subr.bf16.mxu0 0
      %906 = vmatpush2.bf16.msra.mxu0 0
      %907 = vmatprep.subr.bf16.mxu0 0
      %908 = vmatpush2.bf16.msra.mxu0 0
      %909 = vmatprep.subr.bf16.mxu0 0
      %910 = vmatpush2.bf16.msra.mxu0 0
      %911 = vmatprep.subr.bf16.mxu0 0
      %912 = vmatpush2.bf16.msra.mxu0 0
      %913 = vmatprep.mubr.bf16.mxu0 0
      %914 = vmatmul.mubr.bf16.gmra.mxu0 %v867
      %v915 = vpop.f32.mrf.mxu0
      %v916 = vadd.f32 0.0, %v915
      %v917 = vpop.f32.mrf.mxu0
      %v918 = vpop.f32.mrf.mxu0
      %v919 = vadd.f32 0.0, %v918
      %v920 = vpop.f32.mrf.mxu0
      %921 = vmatprep.mubr.bf16.mxu0 0
      %922 = vmatmul.mubr.bf16.gmra.mxu0 %v870
      %v923 = vpop.f32.mrf.mxu0
      %v924 = vadd.f32 0.0, %v923
      %v925 = vpop.f32.mrf.mxu0
      %v926 = vpop.f32.mrf.mxu0
      %v927 = vadd.f32 0.0, %v926
      %v928 = vpop.f32.mrf.mxu0
      %929 = vmatprep.mubr.bf16.mxu0 0
      %930 = vmatmul.mubr.bf16.gmra.mxu0 %v873
      %v931 = vpop.f32.mrf.mxu0
      %v932 = vadd.f32 0.0, %v931
      %v933 = vpop.f32.mrf.mxu0
      %v934 = vpop.f32.mrf.mxu0
      %v935 = vadd.f32 0.0, %v934
      %v936 = vpop.f32.mrf.mxu0
      %937 = vmatprep.mubr.bf16.mxu0 0
      %938 = vmatmul.mubr.bf16.gmra.mxu0 %v876
      %v939 = vpop.f32.mrf.mxu0
      %v940 = vadd.f32 0.0, %v939
      %v941 = vpop.f32.mrf.mxu0
      %v942 = vpop.f32.mrf.mxu0
      %v943 = vadd.f32 0.0, %v942
      %v944 = vpop.f32.mrf.mxu0
      %945 = vdwg.mxu0
      %v946 = vadd.f32 %v833, %v916
      %v947 = vadd.f32 %v834, %v919
      %v948 = vadd.f32 %v835, %v924
      %v949 = vadd.f32 %v836, %v927
      %v950 = vadd.f32 %v837, %v932
      %v951 = vadd.f32 %v838, %v935
      %v952 = vadd.f32 %v839, %v940
      %v953 = vadd.f32 %v840, %v943
      %v970 = vrot.slane %v729, 1
      %v971 = vrot.slane %v730, 1
      %v972 = vsel %vm459, %v970, %v971
      %v973 = vrot.slane %v731, 1
      %v974 = vrot.slane %v732, 1
      %v975 = vsel %vm459, %v973, %v974
      %v976 = vrot.slane %v733, 1
      %v977 = vrot.slane %v734, 1
      %v978 = vsel %vm459, %v976, %v977
      %v979 = vrot.slane %v735, 1
      %v980 = vrot.slane %v736, 1
      %v981 = vsel %vm459, %v979, %v980
      %v982 = vrot.slane %v737, 1
      %v983 = vrot.slane %v738, 1
      %v984 = vsel %vm459, %v982, %v983
      %v985 = vrot.slane %v739, 1
      %v986 = vrot.slane %v740, 1
      %v987 = vsel %vm459, %v985, %v986
      %v988 = vrot.slane %v741, 1
      %v989 = vrot.slane %v742, 1
      %v990 = vsel %vm459, %v988, %v989
      %v991 = vrot.slane %v743, 1
      %v992 = vrot.slane %v744, 1
      %v993 = vsel %vm459, %v991, %v992
      %v1002 = vpack.c.bf16 %v975, %v972
      %v1003 = vpack.c.bf16 %v981, %v978
      %v1004 = vpack.c.bf16 %v987, %v984
      %v1005 = vpack.c.bf16 %v993, %v990
      %s1006 = scalar_lea.vmem %s1, 12
      %v1007 = vld [vmem:[%s1006] sm:$0x3]
      %v1009 = vsel %vm278, %v1002, 0
      %v1012 = vsel %vm278, %v1003, 0
      %v1015 = vsel %vm278, %v1004, 0
      %v1018 = vsel %vm278, %v1005, 0
      %v1021 = vand.u32 %v1007, %v294
      %1023 = vmatprep.subr.bf16.mxu0 0
      %1024 = vmatpush1.bf16.msra.mxu0 0
      %1025 = vmatprep.subr.bf16.mxu0 0
      %1026 = vmatpush1.bf16.msra.mxu0 0
      %1027 = vmatprep.subr.bf16.mxu0 0
      %1028 = vmatpush1.bf16.msra.mxu0 0
      %1029 = vmatprep.subr.bf16.mxu0 0
      %1030 = vmatpush1.bf16.msra.mxu0 0
      %1031 = vmatprep.subr.bf16.mxu0 0
      %1032 = vmatpush1.bf16.msra.mxu0 0
      %1033 = vmatprep.subr.bf16.mxu0 0
      %1034 = vmatpush1.bf16.msra.mxu0 0
      %1035 = vmatprep.subr.bf16.mxu0 0
      %1036 = vmatpush1.bf16.msra.mxu0 0
      %1037 = vmatprep.subr.bf16.mxu0 0
      %1038 = vmatpush1.bf16.msra.mxu0 %v1021
      %1039 = vmatprep.subr.bf16.mxu0 0
      %1040 = vmatpush2.bf16.msra.mxu0 0
      %1041 = vmatprep.subr.bf16.mxu0 0
      %1042 = vmatpush2.bf16.msra.mxu0 0
      %1043 = vmatprep.subr.bf16.mxu0 0
      %1044 = vmatpush2.bf16.msra.mxu0 0
      %1045 = vmatprep.subr.bf16.mxu0 0
      %1046 = vmatpush2.bf16.msra.mxu0 0
      %1047 = vmatprep.subr.bf16.mxu0 0
      %1048 = vmatpush2.bf16.msra.mxu0 0
      %1049 = vmatprep.subr.bf16.mxu0 0
      %1050 = vmatpush2.bf16.msra.mxu0 0
      %1051 = vmatprep.subr.bf16.mxu0 0
      %1052 = vmatpush2.bf16.msra.mxu0 0
      %1053 = vmatprep.subr.bf16.mxu0 0
      %1054 = vmatpush2.bf16.msra.mxu0 0
      %1055 = vmatprep.mubr.bf16.mxu0 0
      %1056 = vmatmul.mubr.bf16.gmra.mxu0 %v1009
      %v1057 = vpop.f32.mrf.mxu0
      %v1058 = vadd.f32 0.0, %v1057
      %v1059 = vpop.f32.mrf.mxu0
      %v1060 = vpop.f32.mrf.mxu0
      %v1061 = vadd.f32 0.0, %v1060
      %v1062 = vpop.f32.mrf.mxu0
      %1063 = vmatprep.mubr.bf16.mxu0 0
      %1064 = vmatmul.mubr.bf16.gmra.mxu0 %v1012
      %v1065 = vpop.f32.mrf.mxu0
      %v1066 = vadd.f32 0.0, %v1065
      %v1067 = vpop.f32.mrf.mxu0
      %v1068 = vpop.f32.mrf.mxu0
      %v1069 = vadd.f32 0.0, %v1068
      %v1070 = vpop.f32.mrf.mxu0
      %1071 = vmatprep.mubr.bf16.mxu0 0
      %1072 = vmatmul.mubr.bf16.gmra.mxu0 %v1015
      %v1073 = vpop.f32.mrf.mxu0
      %v1074 = vadd.f32 0.0, %v1073
      %v1075 = vpop.f32.mrf.mxu0
      %v1076 = vpop.f32.mrf.mxu0
      %v1077 = vadd.f32 0.0, %v1076
      %v1078 = vpop.f32.mrf.mxu0
      %1079 = vmatprep.mubr.bf16.mxu0 0
      %1080 = vmatmul.mubr.bf16.gmra.mxu0 %v1018
      %v1081 = vpop.f32.mrf.mxu0
      %v1082 = vadd.f32 0.0, %v1081
      %v1083 = vpop.f32.mrf.mxu0
      %v1084 = vpop.f32.mrf.mxu0
      %v1085 = vadd.f32 0.0, %v1084
      %v1086 = vpop.f32.mrf.mxu0
      %1087 = vdwg.mxu0
      %v1088 = vadd.f32 %v946, %v1058
      %v1089 = vadd.f32 %v947, %v1061
      %v1090 = vadd.f32 %v948, %v1066
      %v1091 = vadd.f32 %v949, %v1069
      %v1092 = vadd.f32 %v950, %v1074
      %v1093 = vadd.f32 %v951, %v1077
      %v1094 = vadd.f32 %v952, %v1082
      %v1095 = vadd.f32 %v953, %v1085
      %v1112 = vrot.slane %v842, 1
      %v1113 = vrot.slane %v843, 1
      %v1114 = vsel %vm459, %v1112, %v1113
      %v1115 = vrot.slane %v844, 1
      %v1116 = vrot.slane %v845, 1
      %v1117 = vsel %vm459, %v1115, %v1116
      %v1118 = vrot.slane %v846, 1
      %v1119 = vrot.slane %v847, 1
      %v1120 = vsel %vm459, %v1118, %v1119
      %v1121 = vrot.slane %v848, 1
      %v1122 = vrot.slane %v849, 1
      %v1123 = vsel %vm459, %v1121, %v1122
      %v1124 = vrot.slane %v850, 1
      %v1125 = vrot.slane %v851, 1
      %v1126 = vsel %vm459, %v1124, %v1125
      %v1127 = vrot.slane %v852, 1
      %v1128 = vrot.slane %v853, 1
      %v1129 = vsel %vm459, %v1127, %v1128
      %v1130 = vrot.slane %v854, 1
      %v1131 = vrot.slane %v855, 1
      %v1132 = vsel %vm459, %v1130, %v1131
      %v1133 = vrot.slane %v856, 1
      %v1134 = vrot.slane %v857, 1
      %v1135 = vsel %vm459, %v1133, %v1134
      %v1144 = vpack.c.bf16 %v1117, %v1114
      %v1145 = vpack.c.bf16 %v1123, %v1120
      %v1146 = vpack.c.bf16 %v1129, %v1126
      %v1147 = vpack.c.bf16 %v1135, %v1132
      %s1148 = scalar_lea.vmem %s1, 14
      %v1149 = vld [vmem:[%s1148] sm:$0x3]
      %v1151 = vsel %vm278, %v1144, 0
      %v1154 = vsel %vm278, %v1145, 0
      %v1157 = vsel %vm278, %v1146, 0
      %v1160 = vsel %vm278, %v1147, 0
      %v1163 = vand.u32 %v1149, %v294
      %1165 = vmatprep.subr.bf16.mxu0 0
      %1166 = vmatpush1.bf16.msra.mxu0 0
      %1167 = vmatprep.subr.bf16.mxu0 0
      %1168 = vmatpush1.bf16.msra.mxu0 0
      %1169 = vmatprep.subr.bf16.mxu0 0
      %1170 = vmatpush1.bf16.msra.mxu0 0
      %1171 = vmatprep.subr.bf16.mxu0 0
      %1172 = vmatpush1.bf16.msra.mxu0 0
      %1173 = vmatprep.subr.bf16.mxu0 0
      %1174 = vmatpush1.bf16.msra.mxu0 0
      %1175 = vmatprep.subr.bf16.mxu0 0
      %1176 = vmatpush1.bf16.msra.mxu0 0
      %1177 = vmatprep.subr.bf16.mxu0 0
      %1178 = vmatpush1.bf16.msra.mxu0 0
      %1179 = vmatprep.subr.bf16.mxu0 0
      %1180 = vmatpush1.bf16.msra.mxu0 %v1163
      %1181 = vmatprep.subr.bf16.mxu0 0
      %1182 = vmatpush2.bf16.msra.mxu0 0
      %1183 = vmatprep.subr.bf16.mxu0 0
      %1184 = vmatpush2.bf16.msra.mxu0 0
      %1185 = vmatprep.subr.bf16.mxu0 0
      %1186 = vmatpush2.bf16.msra.mxu0 0
      %1187 = vmatprep.subr.bf16.mxu0 0
      %1188 = vmatpush2.bf16.msra.mxu0 0
      %1189 = vmatprep.subr.bf16.mxu0 0
      %1190 = vmatpush2.bf16.msra.mxu0 0
      %1191 = vmatprep.subr.bf16.mxu0 0
      %1192 = vmatpush2.bf16.msra.mxu0 0
      %1193 = vmatprep.subr.bf16.mxu0 0
      %1194 = vmatpush2.bf16.msra.mxu0 0
      %1195 = vmatprep.subr.bf16.mxu0 0
      %1196 = vmatpush2.bf16.msra.mxu0 0
      %1197 = vmatprep.mubr.bf16.mxu0 0
      %1198 = vmatmul.mubr.bf16.gmra.mxu0 %v1151
      %v1199 = vpop.f32.mrf.mxu0
      %v1200 = vadd.f32 0.0, %v1199
      %v1201 = vpop.f32.mrf.mxu0
      %v1202 = vpop.f32.mrf.mxu0
      %v1203 = vadd.f32 0.0, %v1202
      %v1204 = vpop.f32.mrf.mxu0
      %1205 = vmatprep.mubr.bf16.mxu0 0
      %1206 = vmatmul.mubr.bf16.gmra.mxu0 %v1154
      %v1207 = vpop.f32.mrf.mxu0
      %v1208 = vadd.f32 0.0, %v1207
      %v1209 = vpop.f32.mrf.mxu0
      %v1210 = vpop.f32.mrf.mxu0
      %v1211 = vadd.f32 0.0, %v1210
      %v1212 = vpop.f32.mrf.mxu0
      %1213 = vmatprep.mubr.bf16.mxu0 0
      %1214 = vmatmul.mubr.bf16.gmra.mxu0 %v1157
      %v1215 = vpop.f32.mrf.mxu0
      %v1216 = vadd.f32 0.0, %v1215
      %v1217 = vpop.f32.mrf.mxu0
      %v1218 = vpop.f32.mrf.mxu0
      %v1219 = vadd.f32 0.0, %v1218
      %v1220 = vpop.f32.mrf.mxu0
      %1221 = vmatprep.mubr.bf16.mxu0 0
      %1222 = vmatmul.mubr.bf16.gmra.mxu0 %v1160
      %v1223 = vpop.f32.mrf.mxu0
      %v1224 = vadd.f32 0.0, %v1223
      %v1225 = vpop.f32.mrf.mxu0
      %v1226 = vpop.f32.mrf.mxu0
      %v1227 = vadd.f32 0.0, %v1226
      %v1228 = vpop.f32.mrf.mxu0
      %1229 = vdwg.mxu0
      %v1230 = vadd.f32 %v1088, %v1200
      %v1231 = vadd.f32 %v1089, %v1203
      %v1232 = vadd.f32 %v1090, %v1208
      %v1233 = vadd.f32 %v1091, %v1211
      %v1234 = vadd.f32 %v1092, %v1216
      %v1235 = vadd.f32 %v1093, %v1219
      %v1236 = vadd.f32 %v1094, %v1224
      %v1237 = vadd.f32 %v1095, %v1227
      %v1238 = vpack.c.bf16 %v234, %v232
      %v1239 = vpack.c.bf16 %v238, %v236
      %v1240 = vpack.c.bf16 %v242, %v240
      %v1241 = vpack.c.bf16 %v246, %v244
      %s1242 = scalar_lea.vmem %s1, 16
      %v1243 = vld [vmem:[%s1242] sm:$0x3]
      %v1245 = vsel %vm278, %v1238, 0
      %v1248 = vsel %vm278, %v1239, 0
      %v1251 = vsel %vm278, %v1240, 0
      %v1254 = vsel %vm278, %v1241, 0
      %v1257 = vand.u32 %v1243, %v294
      %1259 = vmatprep.subr.bf16.mxu0 0
      %1260 = vmatpush1.bf16.msra.mxu0 0
      %1261 = vmatprep.subr.bf16.mxu0 0
      %1262 = vmatpush1.bf16.msra.mxu0 0
      %1263 = vmatprep.subr.bf16.mxu0 0
      %1264 = vmatpush1.bf16.msra.mxu0 0
      %1265 = vmatprep.subr.bf16.mxu0 0
      %1266 = vmatpush1.bf16.msra.mxu0 0
      %1267 = vmatprep.subr.bf16.mxu0 0
      %1268 = vmatpush1.bf16.msra.mxu0 0
      %1269 = vmatprep.subr.bf16.mxu0 0
      %1270 = vmatpush1.bf16.msra.mxu0 0
      %1271 = vmatprep.subr.bf16.mxu0 0
      %1272 = vmatpush1.bf16.msra.mxu0 0
      %1273 = vmatprep.subr.bf16.mxu0 0
      %1274 = vmatpush1.bf16.msra.mxu0 %v1257
      %1275 = vmatprep.subr.bf16.mxu0 0
      %1276 = vmatpush2.bf16.msra.mxu0 0
      %1277 = vmatprep.subr.bf16.mxu0 0
      %1278 = vmatpush2.bf16.msra.mxu0 0
      %1279 = vmatprep.subr.bf16.mxu0 0
      %1280 = vmatpush2.bf16.msra.mxu0 0
      %1281 = vmatprep.subr.bf16.mxu0 0
      %1282 = vmatpush2.bf16.msra.mxu0 0
      %1283 = vmatprep.subr.bf16.mxu0 0
      %1284 = vmatpush2.bf16.msra.mxu0 0
      %1285 = vmatprep.subr.bf16.mxu0 0
      %1286 = vmatpush2.bf16.msra.mxu0 0
      %1287 = vmatprep.subr.bf16.mxu0 0
      %1288 = vmatpush2.bf16.msra.mxu0 0
      %1289 = vmatprep.subr.bf16.mxu0 0
      %1290 = vmatpush2.bf16.msra.mxu0 0
      %1291 = vmatprep.mubr.bf16.mxu0 0
      %1292 = vmatmul.mubr.bf16.gmra.mxu0 %v1245
      %v1293 = vpop.f32.mrf.mxu0
      %v1294 = vadd.f32 0.0, %v1293
      %v1295 = vpop.f32.mrf.mxu0
      %v1296 = vpop.f32.mrf.mxu0
      %v1297 = vadd.f32 0.0, %v1296
      %v1298 = vpop.f32.mrf.mxu0
      %1299 = vmatprep.mubr.bf16.mxu0 0
      %1300 = vmatmul.mubr.bf16.gmra.mxu0 %v1248
      %v1301 = vpop.f32.mrf.mxu0
      %v1302 = vadd.f32 0.0, %v1301
      %v1303 = vpop.f32.mrf.mxu0
      %v1304 = vpop.f32.mrf.mxu0
      %v1305 = vadd.f32 0.0, %v1304
      %v1306 = vpop.f32.mrf.mxu0
      %1307 = vmatprep.mubr.bf16.mxu0 0
      %1308 = vmatmul.mubr.bf16.gmra.mxu0 %v1251
      %v1309 = vpop.f32.mrf.mxu0
      %v1310 = vadd.f32 0.0, %v1309
      %v1311 = vpop.f32.mrf.mxu0
      %v1312 = vpop.f32.mrf.mxu0
      %v1313 = vadd.f32 0.0, %v1312
      %v1314 = vpop.f32.mrf.mxu0
      %1315 = vmatprep.mubr.bf16.mxu0 0
      %1316 = vmatmul.mubr.bf16.gmra.mxu0 %v1254
      %v1317 = vpop.f32.mrf.mxu0
      %v1318 = vadd.f32 0.0, %v1317
      %v1319 = vpop.f32.mrf.mxu0
      %v1320 = vpop.f32.mrf.mxu0
      %v1321 = vadd.f32 0.0, %v1320
      %v1322 = vpop.f32.mrf.mxu0
      %1323 = vdwg.mxu0
      %v1324 = vadd.f32 %v1230, %v1294
      %v1325 = vadd.f32 %v1231, %v1297
      %v1326 = vadd.f32 %v1232, %v1302
      %v1327 = vadd.f32 %v1233, %v1305
      %v1328 = vadd.f32 %v1234, %v1310
      %v1329 = vadd.f32 %v1235, %v1313
      %v1330 = vadd.f32 %v1236, %v1318
      %v1331 = vadd.f32 %v1237, %v1321
      %v1332 = vpack.c.bf16 %v258, %v256
      %v1333 = vpack.c.bf16 %v262, %v260
      %v1334 = vpack.c.bf16 %v266, %v264
      %v1335 = vpack.c.bf16 %v270, %v268
      %s1336 = scalar_lea.vmem %s1, 18
      %v1337 = vld [vmem:[%s1336] sm:$0x3]
      %v1339 = vsel %vm278, %v1332, 0
      %v1342 = vsel %vm278, %v1333, 0
      %v1345 = vsel %vm278, %v1334, 0
      %v1348 = vsel %vm278, %v1335, 0
      %v1351 = vand.u32 %v1337, %v294
      %1353 = vmatprep.subr.bf16.mxu0 0
      %1354 = vmatpush1.bf16.msra.mxu0 0
      %1355 = vmatprep.subr.bf16.mxu0 0
      %1356 = vmatpush1.bf16.msra.mxu0 0
      %1357 = vmatprep.subr.bf16.mxu0 0
      %1358 = vmatpush1.bf16.msra.mxu0 0
      %1359 = vmatprep.subr.bf16.mxu0 0
      %1360 = vmatpush1.bf16.msra.mxu0 0
      %1361 = vmatprep.subr.bf16.mxu0 0
      %1362 = vmatpush1.bf16.msra.mxu0 0
      %1363 = vmatprep.subr.bf16.mxu0 0
      %1364 = vmatpush1.bf16.msra.mxu0 0
      %1365 = vmatprep.subr.bf16.mxu0 0
      %1366 = vmatpush1.bf16.msra.mxu0 0
      %1367 = vmatprep.subr.bf16.mxu0 0
      %1368 = vmatpush1.bf16.msra.mxu0 %v1351
      %1369 = vmatprep.subr.bf16.mxu0 0
      %1370 = vmatpush2.bf16.msra.mxu0 0
      %1371 = vmatprep.subr.bf16.mxu0 0
      %1372 = vmatpush2.bf16.msra.mxu0 0
      %1373 = vmatprep.subr.bf16.mxu0 0
      %1374 = vmatpush2.bf16.msra.mxu0 0
      %1375 = vmatprep.subr.bf16.mxu0 0
      %1376 = vmatpush2.bf16.msra.mxu0 0
      %1377 = vmatprep.subr.bf16.mxu0 0
      %1378 = vmatpush2.bf16.msra.mxu0 0
      %1379 = vmatprep.subr.bf16.mxu0 0
      %1380 = vmatpush2.bf16.msra.mxu0 0
      %1381 = vmatprep.subr.bf16.mxu0 0
      %1382 = vmatpush2.bf16.msra.mxu0 0
      %1383 = vmatprep.subr.bf16.mxu0 0
      %1384 = vmatpush2.bf16.msra.mxu0 0
      %1385 = vmatprep.mubr.bf16.mxu0 0
      %1386 = vmatmul.mubr.bf16.gmra.mxu0 %v1339
      %v1387 = vpop.f32.mrf.mxu0
      %v1388 = vadd.f32 0.0, %v1387
      %v1389 = vpop.f32.mrf.mxu0
      %v1390 = vpop.f32.mrf.mxu0
      %v1391 = vadd.f32 0.0, %v1390
      %v1392 = vpop.f32.mrf.mxu0
      %1393 = vmatprep.mubr.bf16.mxu0 0
      %1394 = vmatmul.mubr.bf16.gmra.mxu0 %v1342
      %v1395 = vpop.f32.mrf.mxu0
      %v1396 = vadd.f32 0.0, %v1395
      %v1397 = vpop.f32.mrf.mxu0
      %v1398 = vpop.f32.mrf.mxu0
      %v1399 = vadd.f32 0.0, %v1398
      %v1400 = vpop.f32.mrf.mxu0
      %1401 = vmatprep.mubr.bf16.mxu0 0
      %1402 = vmatmul.mubr.bf16.gmra.mxu0 %v1345
      %v1403 = vpop.f32.mrf.mxu0
      %v1404 = vadd.f32 0.0, %v1403
      %v1405 = vpop.f32.mrf.mxu0
      %v1406 = vpop.f32.mrf.mxu0
      %v1407 = vadd.f32 0.0, %v1406
      %v1408 = vpop.f32.mrf.mxu0
      %1409 = vmatprep.mubr.bf16.mxu0 0
      %1410 = vmatmul.mubr.bf16.gmra.mxu0 %v1348
      %v1411 = vpop.f32.mrf.mxu0
      %v1412 = vadd.f32 0.0, %v1411
      %v1413 = vpop.f32.mrf.mxu0
      %v1414 = vpop.f32.mrf.mxu0
      %v1415 = vadd.f32 0.0, %v1414
      %v1416 = vpop.f32.mrf.mxu0
      %1417 = vdwg.mxu0
      %v1418 = vadd.f32 %v1324, %v1388
      %v1419 = vadd.f32 %v1325, %v1391
      %v1420 = vadd.f32 %v1326, %v1396
      %v1421 = vadd.f32 %v1327, %v1399
      %v1422 = vadd.f32 %v1328, %v1404
      %v1423 = vadd.f32 %v1329, %v1407
      %v1424 = vadd.f32 %v1330, %v1412
      %v1425 = vadd.f32 %v1331, %v1415
      %v1428 = vrot.slane %v246, 1
      %v1429 = vrot.slane %v247, 1
      %v1430 = vsel %vm459, %v1428, %v1429
      %v1432 = vpack.c.bf16 %v468, %v465
      %v1433 = vpack.c.bf16 %v474, %v471
      %v1434 = vpack.c.bf16 %v480, %v477
      %v1435 = vpack.c.bf16 %v1430, %v483
      %s1436 = scalar_lea.vmem %s1, 20
      %v1437 = vld [vmem:[%s1436] sm:$0x3]
      %v1439 = vsel %vm278, %v1432, 0
      %v1442 = vsel %vm278, %v1433, 0
      %v1445 = vsel %vm278, %v1434, 0
      %v1448 = vsel %vm278, %v1435, 0
      %v1451 = vand.u32 %v1437, %v294
      %1453 = vmatprep.subr.bf16.mxu0 0
      %1454 = vmatpush1.bf16.msra.mxu0 0
      %1455 = vmatprep.subr.bf16.mxu0 0
      %1456 = vmatpush1.bf16.msra.mxu0 0
      %1457 = vmatprep.subr.bf16.mxu0 0
      %1458 = vmatpush1.bf16.msra.mxu0 0
      %1459 = vmatprep.subr.bf16.mxu0 0
      %1460 = vmatpush1.bf16.msra.mxu0 0
      %1461 = vmatprep.subr.bf16.mxu0 0
      %1462 = vmatpush1.bf16.msra.mxu0 0
      %1463 = vmatprep.subr.bf16.mxu0 0
      %1464 = vmatpush1.bf16.msra.mxu0 0
      %1465 = vmatprep.subr.bf16.mxu0 0
      %1466 = vmatpush1.bf16.msra.mxu0 0
      %1467 = vmatprep.subr.bf16.mxu0 0
      %1468 = vmatpush1.bf16.msra.mxu0 %v1451
      %1469 = vmatprep.subr.bf16.mxu0 0
      %1470 = vmatpush2.bf16.msra.mxu0 0
      %1471 = vmatprep.subr.bf16.mxu0 0
      %1472 = vmatpush2.bf16.msra.mxu0 0
      %1473 = vmatprep.subr.bf16.mxu0 0
      %1474 = vmatpush2.bf16.msra.mxu0 0
      %1475 = vmatprep.subr.bf16.mxu0 0
      %1476 = vmatpush2.bf16.msra.mxu0 0
      %1477 = vmatprep.subr.bf16.mxu0 0
      %1478 = vmatpush2.bf16.msra.mxu0 0
      %1479 = vmatprep.subr.bf16.mxu0 0
      %1480 = vmatpush2.bf16.msra.mxu0 0
      %1481 = vmatprep.subr.bf16.mxu0 0
      %1482 = vmatpush2.bf16.msra.mxu0 0
      %1483 = vmatprep.subr.bf16.mxu0 0
      %1484 = vmatpush2.bf16.msra.mxu0 0
      %1485 = vmatprep.mubr.bf16.mxu0 0
      %1486 = vmatmul.mubr.bf16.gmra.mxu0 %v1439
      %v1487 = vpop.f32.mrf.mxu0
      %v1488 = vadd.f32 0.0, %v1487
      %v1489 = vpop.f32.mrf.mxu0
      %v1490 = vpop.f32.mrf.mxu0
      %v1491 = vadd.f32 0.0, %v1490
      %v1492 = vpop.f32.mrf.mxu0
      %1493 = vmatprep.mubr.bf16.mxu0 0
      %1494 = vmatmul.mubr.bf16.gmra.mxu0 %v1442
      %v1495 = vpop.f32.mrf.mxu0
      %v1496 = vadd.f32 0.0, %v1495
      %v1497 = vpop.f32.mrf.mxu0
      %v1498 = vpop.f32.mrf.mxu0
      %v1499 = vadd.f32 0.0, %v1498
      %v1500 = vpop.f32.mrf.mxu0
      %1501 = vmatprep.mubr.bf16.mxu0 0
      %1502 = vmatmul.mubr.bf16.gmra.mxu0 %v1445
      %v1503 = vpop.f32.mrf.mxu0
      %v1504 = vadd.f32 0.0, %v1503
      %v1505 = vpop.f32.mrf.mxu0
      %v1506 = vpop.f32.mrf.mxu0
      %v1507 = vadd.f32 0.0, %v1506
      %v1508 = vpop.f32.mrf.mxu0
      %1509 = vmatprep.mubr.bf16.mxu0 0
      %1510 = vmatmul.mubr.bf16.gmra.mxu0 %v1448
      %v1511 = vpop.f32.mrf.mxu0
      %v1512 = vadd.f32 0.0, %v1511
      %v1513 = vpop.f32.mrf.mxu0
      %v1514 = vpop.f32.mrf.mxu0
      %v1515 = vadd.f32 0.0, %v1514
      %v1516 = vpop.f32.mrf.mxu0
      %1517 = vdwg.mxu0
      %v1518 = vadd.f32 %v1418, %v1488
      %v1519 = vadd.f32 %v1419, %v1491
      %v1520 = vadd.f32 %v1420, %v1496
      %v1521 = vadd.f32 %v1421, %v1499
      %v1522 = vadd.f32 %v1422, %v1504
      %v1523 = vadd.f32 %v1423, %v1507
      %v1524 = vadd.f32 %v1424, %v1512
      %v1525 = vadd.f32 %v1425, %v1515
      %v1528 = vrot.slane %v270, 1
      %v1529 = vrot.slane %v271, 1
      %v1530 = vsel %vm459, %v1528, %v1529
      %v1532 = vpack.c.bf16 %v610, %v607
      %v1533 = vpack.c.bf16 %v616, %v613
      %v1534 = vpack.c.bf16 %v622, %v619
      %v1535 = vpack.c.bf16 %v1530, %v625
      %s1536 = scalar_lea.vmem %s1, 22
      %v1537 = vld [vmem:[%s1536] sm:$0x3]
      %v1539 = vsel %vm278, %v1532, 0
      %v1542 = vsel %vm278, %v1533, 0
      %v1545 = vsel %vm278, %v1534, 0
      %v1548 = vsel %vm278, %v1535, 0
      %v1551 = vand.u32 %v1537, %v294
      %1553 = vmatprep.subr.bf16.mxu0 0
      %1554 = vmatpush1.bf16.msra.mxu0 0
      %1555 = vmatprep.subr.bf16.mxu0 0
      %1556 = vmatpush1.bf16.msra.mxu0 0
      %1557 = vmatprep.subr.bf16.mxu0 0
      %1558 = vmatpush1.bf16.msra.mxu0 0
      %1559 = vmatprep.subr.bf16.mxu0 0
      %1560 = vmatpush1.bf16.msra.mxu0 0
      %1561 = vmatprep.subr.bf16.mxu0 0
      %1562 = vmatpush1.bf16.msra.mxu0 0
      %1563 = vmatprep.subr.bf16.mxu0 0
      %1564 = vmatpush1.bf16.msra.mxu0 0
      %1565 = vmatprep.subr.bf16.mxu0 0
      %1566 = vmatpush1.bf16.msra.mxu0 0
      %1567 = vmatprep.subr.bf16.mxu0 0
      %1568 = vmatpush1.bf16.msra.mxu0 %v1551
      %1569 = vmatprep.subr.bf16.mxu0 0
      %1570 = vmatpush2.bf16.msra.mxu0 0
      %1571 = vmatprep.subr.bf16.mxu0 0
      %1572 = vmatpush2.bf16.msra.mxu0 0
      %1573 = vmatprep.subr.bf16.mxu0 0
      %1574 = vmatpush2.bf16.msra.mxu0 0
      %1575 = vmatprep.subr.bf16.mxu0 0
      %1576 = vmatpush2.bf16.msra.mxu0 0
      %1577 = vmatprep.subr.bf16.mxu0 0
      %1578 = vmatpush2.bf16.msra.mxu0 0
      %1579 = vmatprep.subr.bf16.mxu0 0
      %1580 = vmatpush2.bf16.msra.mxu0 0
      %1581 = vmatprep.subr.bf16.mxu0 0
      %1582 = vmatpush2.bf16.msra.mxu0 0
      %1583 = vmatprep.subr.bf16.mxu0 0
      %1584 = vmatpush2.bf16.msra.mxu0 0
      %1585 = vmatprep.mubr.bf16.mxu0 0
      %1586 = vmatmul.mubr.bf16.gmra.mxu0 %v1539
      %v1587 = vpop.f32.mrf.mxu0
      %v1588 = vadd.f32 0.0, %v1587
      %v1589 = vpop.f32.mrf.mxu0
      %v1590 = vpop.f32.mrf.mxu0
      %v1591 = vadd.f32 0.0, %v1590
      %v1592 = vpop.f32.mrf.mxu0
      %1593 = vmatprep.mubr.bf16.mxu0 0
      %1594 = vmatmul.mubr.bf16.gmra.mxu0 %v1542
      %v1595 = vpop.f32.mrf.mxu0
      %v1596 = vadd.f32 0.0, %v1595
      %v1597 = vpop.f32.mrf.mxu0
      %v1598 = vpop.f32.mrf.mxu0
      %v1599 = vadd.f32 0.0, %v1598
      %v1600 = vpop.f32.mrf.mxu0
      %1601 = vmatprep.mubr.bf16.mxu0 0
      %1602 = vmatmul.mubr.bf16.gmra.mxu0 %v1545
      %v1603 = vpop.f32.mrf.mxu0
      %v1604 = vadd.f32 0.0, %v1603
      %v1605 = vpop.f32.mrf.mxu0
      %v1606 = vpop.f32.mrf.mxu0
      %v1607 = vadd.f32 0.0, %v1606
      %v1608 = vpop.f32.mrf.mxu0
      %1609 = vmatprep.mubr.bf16.mxu0 0
      %1610 = vmatmul.mubr.bf16.gmra.mxu0 %v1548
      %v1611 = vpop.f32.mrf.mxu0
      %v1612 = vadd.f32 0.0, %v1611
      %v1613 = vpop.f32.mrf.mxu0
      %v1614 = vpop.f32.mrf.mxu0
      %v1615 = vadd.f32 0.0, %v1614
      %v1616 = vpop.f32.mrf.mxu0
      %1617 = vdwg.mxu0
      %v1618 = vadd.f32 %v1518, %v1588
      %v1619 = vadd.f32 %v1519, %v1591
      %v1620 = vadd.f32 %v1520, %v1596
      %v1621 = vadd.f32 %v1521, %v1599
      %v1622 = vadd.f32 %v1522, %v1604
      %v1623 = vadd.f32 %v1523, %v1607
      %v1624 = vadd.f32 %v1524, %v1612
      %v1625 = vadd.f32 %v1525, %v1615
      %v1626 = vpack.c.bf16 %v733, %v731
      %v1627 = vpack.c.bf16 %v737, %v735
      %v1628 = vpack.c.bf16 %v741, %v739
      %v1629 = vpack.c.bf16 %v745, %v743
      %s1630 = scalar_lea.vmem %s1, 24
      %v1631 = vld [vmem:[%s1630] sm:$0x3]
      %v1633 = vsel %vm278, %v1626, 0
      %v1636 = vsel %vm278, %v1627, 0
      %v1639 = vsel %vm278, %v1628, 0
      %v1642 = vsel %vm278, %v1629, 0
      %v1645 = vand.u32 %v1631, %v294
      %1647 = vmatprep.subr.bf16.mxu0 0
      %1648 = vmatpush1.bf16.msra.mxu0 0
      %1649 = vmatprep.subr.bf16.mxu0 0
      %1650 = vmatpush1.bf16.msra.mxu0 0
      %1651 = vmatprep.subr.bf16.mxu0 0
      %1652 = vmatpush1.bf16.msra.mxu0 0
      %1653 = vmatprep.subr.bf16.mxu0 0
      %1654 = vmatpush1.bf16.msra.mxu0 0
      %1655 = vmatprep.subr.bf16.mxu0 0
      %1656 = vmatpush1.bf16.msra.mxu0 0
      %1657 = vmatprep.subr.bf16.mxu0 0
      %1658 = vmatpush1.bf16.msra.mxu0 0
      %1659 = vmatprep.subr.bf16.mxu0 0
      %1660 = vmatpush1.bf16.msra.mxu0 0
      %1661 = vmatprep.subr.bf16.mxu0 0
      %1662 = vmatpush1.bf16.msra.mxu0 %v1645
      %1663 = vmatprep.subr.bf16.mxu0 0
      %1664 = vmatpush2.bf16.msra.mxu0 0
      %1665 = vmatprep.subr.bf16.mxu0 0
      %1666 = vmatpush2.bf16.msra.mxu0 0
      %1667 = vmatprep.subr.bf16.mxu0 0
      %1668 = vmatpush2.bf16.msra.mxu0 0
      %1669 = vmatprep.subr.bf16.mxu0 0
      %1670 = vmatpush2.bf16.msra.mxu0 0
      %1671 = vmatprep.subr.bf16.mxu0 0
      %1672 = vmatpush2.bf16.msra.mxu0 0
      %1673 = vmatprep.subr.bf16.mxu0 0
      %1674 = vmatpush2.bf16.msra.mxu0 0
      %1675 = vmatprep.subr.bf16.mxu0 0
      %1676 = vmatpush2.bf16.msra.mxu0 0
      %1677 = vmatprep.subr.bf16.mxu0 0
      %1678 = vmatpush2.bf16.msra.mxu0 0
      %1679 = vmatprep.mubr.bf16.mxu0 0
      %1680 = vmatmul.mubr.bf16.gmra.mxu0 %v1633
      %v1681 = vpop.f32.mrf.mxu0
      %v1682 = vadd.f32 0.0, %v1681
      %v1683 = vpop.f32.mrf.mxu0
      %v1684 = vpop.f32.mrf.mxu0
      %v1685 = vadd.f32 0.0, %v1684
      %v1686 = vpop.f32.mrf.mxu0
      %1687 = vmatprep.mubr.bf16.mxu0 0
      %1688 = vmatmul.mubr.bf16.gmra.mxu0 %v1636
      %v1689 = vpop.f32.mrf.mxu0
      %v1690 = vadd.f32 0.0, %v1689
      %v1691 = vpop.f32.mrf.mxu0
      %v1692 = vpop.f32.mrf.mxu0
      %v1693 = vadd.f32 0.0, %v1692
      %v1694 = vpop.f32.mrf.mxu0
      %1695 = vmatprep.mubr.bf16.mxu0 0
      %1696 = vmatmul.mubr.bf16.gmra.mxu0 %v1639
      %v1697 = vpop.f32.mrf.mxu0
      %v1698 = vadd.f32 0.0, %v1697
      %v1699 = vpop.f32.mrf.mxu0
      %v1700 = vpop.f32.mrf.mxu0
      %v1701 = vadd.f32 0.0, %v1700
      %v1702 = vpop.f32.mrf.mxu0
      %1703 = vmatprep.mubr.bf16.mxu0 0
      %1704 = vmatmul.mubr.bf16.gmra.mxu0 %v1642
      %v1705 = vpop.f32.mrf.mxu0
      %v1706 = vadd.f32 0.0, %v1705
      %v1707 = vpop.f32.mrf.mxu0
      %v1708 = vpop.f32.mrf.mxu0
      %v1709 = vadd.f32 0.0, %v1708
      %v1710 = vpop.f32.mrf.mxu0
      %1711 = vdwg.mxu0
      %v1712 = vadd.f32 %v1618, %v1682
      %v1713 = vadd.f32 %v1619, %v1685
      %v1714 = vadd.f32 %v1620, %v1690
      %v1715 = vadd.f32 %v1621, %v1693
      %v1716 = vadd.f32 %v1622, %v1698
      %v1717 = vadd.f32 %v1623, %v1701
      %v1718 = vadd.f32 %v1624, %v1706
      %v1719 = vadd.f32 %v1625, %v1709
      %v1720 = vpack.c.bf16 %v846, %v844
      %v1721 = vpack.c.bf16 %v850, %v848
      %v1722 = vpack.c.bf16 %v854, %v852
      %v1723 = vpack.c.bf16 %v858, %v856
      %s1724 = scalar_lea.vmem %s1, 26
      %v1725 = vld [vmem:[%s1724] sm:$0x3]
      %v1727 = vsel %vm278, %v1720, 0
      %v1730 = vsel %vm278, %v1721, 0
      %v1733 = vsel %vm278, %v1722, 0
      %v1736 = vsel %vm278, %v1723, 0
      %v1739 = vand.u32 %v1725, %v294
      %1741 = vmatprep.subr.bf16.mxu0 0
      %1742 = vmatpush1.bf16.msra.mxu0 0
      %1743 = vmatprep.subr.bf16.mxu0 0
      %1744 = vmatpush1.bf16.msra.mxu0 0
      %1745 = vmatprep.subr.bf16.mxu0 0
      %1746 = vmatpush1.bf16.msra.mxu0 0
      %1747 = vmatprep.subr.bf16.mxu0 0
      %1748 = vmatpush1.bf16.msra.mxu0 0
      %1749 = vmatprep.subr.bf16.mxu0 0
      %1750 = vmatpush1.bf16.msra.mxu0 0
      %1751 = vmatprep.subr.bf16.mxu0 0
      %1752 = vmatpush1.bf16.msra.mxu0 0
      %1753 = vmatprep.subr.bf16.mxu0 0
      %1754 = vmatpush1.bf16.msra.mxu0 0
      %1755 = vmatprep.subr.bf16.mxu0 0
      %1756 = vmatpush1.bf16.msra.mxu0 %v1739
      %1757 = vmatprep.subr.bf16.mxu0 0
      %1758 = vmatpush2.bf16.msra.mxu0 0
      %1759 = vmatprep.subr.bf16.mxu0 0
      %1760 = vmatpush2.bf16.msra.mxu0 0
      %1761 = vmatprep.subr.bf16.mxu0 0
      %1762 = vmatpush2.bf16.msra.mxu0 0
      %1763 = vmatprep.subr.bf16.mxu0 0
      %1764 = vmatpush2.bf16.msra.mxu0 0
      %1765 = vmatprep.subr.bf16.mxu0 0
      %1766 = vmatpush2.bf16.msra.mxu0 0
      %1767 = vmatprep.subr.bf16.mxu0 0
      %1768 = vmatpush2.bf16.msra.mxu0 0
      %1769 = vmatprep.subr.bf16.mxu0 0
      %1770 = vmatpush2.bf16.msra.mxu0 0
      %1771 = vmatprep.subr.bf16.mxu0 0
      %1772 = vmatpush2.bf16.msra.mxu0 0
      %1773 = vmatprep.mubr.bf16.mxu0 0
      %1774 = vmatmul.mubr.bf16.gmra.mxu0 %v1727
      %v1775 = vpop.f32.mrf.mxu0
      %v1776 = vadd.f32 0.0, %v1775
      %v1777 = vpop.f32.mrf.mxu0
      %v1778 = vpop.f32.mrf.mxu0
      %v1779 = vadd.f32 0.0, %v1778
      %v1780 = vpop.f32.mrf.mxu0
      %1781 = vmatprep.mubr.bf16.mxu0 0
      %1782 = vmatmul.mubr.bf16.gmra.mxu0 %v1730
      %v1783 = vpop.f32.mrf.mxu0
      %v1784 = vadd.f32 0.0, %v1783
      %v1785 = vpop.f32.mrf.mxu0
      %v1786 = vpop.f32.mrf.mxu0
      %v1787 = vadd.f32 0.0, %v1786
      %v1788 = vpop.f32.mrf.mxu0
      %1789 = vmatprep.mubr.bf16.mxu0 0
      %1790 = vmatmul.mubr.bf16.gmra.mxu0 %v1733
      %v1791 = vpop.f32.mrf.mxu0
      %v1792 = vadd.f32 0.0, %v1791
      %v1793 = vpop.f32.mrf.mxu0
      %v1794 = vpop.f32.mrf.mxu0
      %v1795 = vadd.f32 0.0, %v1794
      %v1796 = vpop.f32.mrf.mxu0
      %1797 = vmatprep.mubr.bf16.mxu0 0
      %1798 = vmatmul.mubr.bf16.gmra.mxu0 %v1736
      %v1799 = vpop.f32.mrf.mxu0
      %v1800 = vadd.f32 0.0, %v1799
      %v1801 = vpop.f32.mrf.mxu0
      %v1802 = vpop.f32.mrf.mxu0
      %v1803 = vadd.f32 0.0, %v1802
      %v1804 = vpop.f32.mrf.mxu0
      %1805 = vdwg.mxu0
      %v1806 = vadd.f32 %v1712, %v1776
      %v1807 = vadd.f32 %v1713, %v1779
      %v1808 = vadd.f32 %v1714, %v1784
      %v1809 = vadd.f32 %v1715, %v1787
      %v1810 = vadd.f32 %v1716, %v1792
      %v1811 = vadd.f32 %v1717, %v1795
      %v1812 = vadd.f32 %v1718, %v1800
      %v1813 = vadd.f32 %v1719, %v1803
      %v1816 = vrot.slane %v745, 1
      %v1817 = vrot.slane %v746, 1
      %v1818 = vsel %vm459, %v1816, %v1817
      %v1820 = vpack.c.bf16 %v978, %v975
      %v1821 = vpack.c.bf16 %v984, %v981
      %v1822 = vpack.c.bf16 %v990, %v987
      %v1823 = vpack.c.bf16 %v1818, %v993
      %s1824 = scalar_lea.vmem %s1, 28
      %v1825 = vld [vmem:[%s1824] sm:$0x3]
      %v1827 = vsel %vm278, %v1820, 0
      %v1830 = vsel %vm278, %v1821, 0
      %v1833 = vsel %vm278, %v1822, 0
      %v1836 = vsel %vm278, %v1823, 0
      %v1839 = vand.u32 %v1825, %v294
      %1841 = vmatprep.subr.bf16.mxu0 0
      %1842 = vmatpush1.bf16.msra.mxu0 0
      %1843 = vmatprep.subr.bf16.mxu0 0
      %1844 = vmatpush1.bf16.msra.mxu0 0
      %1845 = vmatprep.subr.bf16.mxu0 0
      %1846 = vmatpush1.bf16.msra.mxu0 0
      %1847 = vmatprep.subr.bf16.mxu0 0
      %1848 = vmatpush1.bf16.msra.mxu0 0
      %1849 = vmatprep.subr.bf16.mxu0 0
      %1850 = vmatpush1.bf16.msra.mxu0 0
      %1851 = vmatprep.subr.bf16.mxu0 0
      %1852 = vmatpush1.bf16.msra.mxu0 0
      %1853 = vmatprep.subr.bf16.mxu0 0
      %1854 = vmatpush1.bf16.msra.mxu0 0
      %1855 = vmatprep.subr.bf16.mxu0 0
      %1856 = vmatpush1.bf16.msra.mxu0 %v1839
      %1857 = vmatprep.subr.bf16.mxu0 0
      %1858 = vmatpush2.bf16.msra.mxu0 0
      %1859 = vmatprep.subr.bf16.mxu0 0
      %1860 = vmatpush2.bf16.msra.mxu0 0
      %1861 = vmatprep.subr.bf16.mxu0 0
      %1862 = vmatpush2.bf16.msra.mxu0 0
      %1863 = vmatprep.subr.bf16.mxu0 0
      %1864 = vmatpush2.bf16.msra.mxu0 0
      %1865 = vmatprep.subr.bf16.mxu0 0
      %1866 = vmatpush2.bf16.msra.mxu0 0
      %1867 = vmatprep.subr.bf16.mxu0 0
      %1868 = vmatpush2.bf16.msra.mxu0 0
      %1869 = vmatprep.subr.bf16.mxu0 0
      %1870 = vmatpush2.bf16.msra.mxu0 0
      %1871 = vmatprep.subr.bf16.mxu0 0
      %1872 = vmatpush2.bf16.msra.mxu0 0
      %1873 = vmatprep.mubr.bf16.mxu0 0
      %1874 = vmatmul.mubr.bf16.gmra.mxu0 %v1827
      %v1875 = vpop.f32.mrf.mxu0
      %v1876 = vadd.f32 0.0, %v1875
      %v1877 = vpop.f32.mrf.mxu0
      %v1878 = vpop.f32.mrf.mxu0
      %v1879 = vadd.f32 0.0, %v1878
      %v1880 = vpop.f32.mrf.mxu0
      %1881 = vmatprep.mubr.bf16.mxu0 0
      %1882 = vmatmul.mubr.bf16.gmra.mxu0 %v1830
      %v1883 = vpop.f32.mrf.mxu0
      %v1884 = vadd.f32 0.0, %v1883
      %v1885 = vpop.f32.mrf.mxu0
      %v1886 = vpop.f32.mrf.mxu0
      %v1887 = vadd.f32 0.0, %v1886
      %v1888 = vpop.f32.mrf.mxu0
      %1889 = vmatprep.mubr.bf16.mxu0 0
      %1890 = vmatmul.mubr.bf16.gmra.mxu0 %v1833
      %v1891 = vpop.f32.mrf.mxu0
      %v1892 = vadd.f32 0.0, %v1891
      %v1893 = vpop.f32.mrf.mxu0
      %v1894 = vpop.f32.mrf.mxu0
      %v1895 = vadd.f32 0.0, %v1894
      %v1896 = vpop.f32.mrf.mxu0
      %1897 = vmatprep.mubr.bf16.mxu0 0
      %1898 = vmatmul.mubr.bf16.gmra.mxu0 %v1836
      %v1899 = vpop.f32.mrf.mxu0
      %v1900 = vadd.f32 0.0, %v1899
      %v1901 = vpop.f32.mrf.mxu0
      %v1902 = vpop.f32.mrf.mxu0
      %v1903 = vadd.f32 0.0, %v1902
      %v1904 = vpop.f32.mrf.mxu0
      %1905 = vdwg.mxu0
      %v1906 = vadd.f32 %v1806, %v1876
      %v1907 = vadd.f32 %v1807, %v1879
      %v1908 = vadd.f32 %v1808, %v1884
      %v1909 = vadd.f32 %v1809, %v1887
      %v1910 = vadd.f32 %v1810, %v1892
      %v1911 = vadd.f32 %v1811, %v1895
      %v1912 = vadd.f32 %v1812, %v1900
      %v1913 = vadd.f32 %v1813, %v1903
      %v1916 = vrot.slane %v858, 1
      %v1917 = vrot.slane %v859, 1
      %v1918 = vsel %vm459, %v1916, %v1917
      %v1920 = vpack.c.bf16 %v1120, %v1117
      %v1921 = vpack.c.bf16 %v1126, %v1123
      %v1922 = vpack.c.bf16 %v1132, %v1129
      %v1923 = vpack.c.bf16 %v1918, %v1135
      %s1924 = scalar_lea.vmem %s1, 30
      %v1925 = vld [vmem:[%s1924] sm:$0x3]
      %v1927 = vsel %vm278, %v1920, 0
      %v1930 = vsel %vm278, %v1921, 0
      %v1933 = vsel %vm278, %v1922, 0
      %v1936 = vsel %vm278, %v1923, 0
      %v1939 = vand.u32 %v1925, %v294
      %1941 = vmatprep.subr.bf16.mxu0 0
      %1942 = vmatpush1.bf16.msra.mxu0 0
      %1943 = vmatprep.subr.bf16.mxu0 0
      %1944 = vmatpush1.bf16.msra.mxu0 0
      %1945 = vmatprep.subr.bf16.mxu0 0
      %1946 = vmatpush1.bf16.msra.mxu0 0
      %1947 = vmatprep.subr.bf16.mxu0 0
      %1948 = vmatpush1.bf16.msra.mxu0 0
      %1949 = vmatprep.subr.bf16.mxu0 0
      %1950 = vmatpush1.bf16.msra.mxu0 0
      %1951 = vmatprep.subr.bf16.mxu0 0
      %1952 = vmatpush1.bf16.msra.mxu0 0
      %1953 = vmatprep.subr.bf16.mxu0 0
      %1954 = vmatpush1.bf16.msra.mxu0 0
      %1955 = vmatprep.subr.bf16.mxu0 0
      %1956 = vmatpush1.bf16.msra.mxu0 %v1939
      %1957 = vmatprep.subr.bf16.mxu0 0
      %1958 = vmatpush2.bf16.msra.mxu0 0
      %1959 = vmatprep.subr.bf16.mxu0 0
      %1960 = vmatpush2.bf16.msra.mxu0 0
      %1961 = vmatprep.subr.bf16.mxu0 0
      %1962 = vmatpush2.bf16.msra.mxu0 0
      %1963 = vmatprep.subr.bf16.mxu0 0
      %1964 = vmatpush2.bf16.msra.mxu0 0
      %1965 = vmatprep.subr.bf16.mxu0 0
      %1966 = vmatpush2.bf16.msra.mxu0 0
      %1967 = vmatprep.subr.bf16.mxu0 0
      %1968 = vmatpush2.bf16.msra.mxu0 0
      %1969 = vmatprep.subr.bf16.mxu0 0
      %1970 = vmatpush2.bf16.msra.mxu0 0
      %1971 = vmatprep.subr.bf16.mxu0 0
      %1972 = vmatpush2.bf16.msra.mxu0 0
      %1973 = vmatprep.mubr.bf16.mxu0 0
      %1974 = vmatmul.mubr.bf16.gmra.mxu0 %v1927
      %v1975 = vpop.f32.mrf.mxu0
      %v1976 = vadd.f32 0.0, %v1975
      %v1977 = vpop.f32.mrf.mxu0
      %v1978 = vpop.f32.mrf.mxu0
      %v1979 = vadd.f32 0.0, %v1978
      %v1980 = vpop.f32.mrf.mxu0
      %1981 = vmatprep.mubr.bf16.mxu0 0
      %1982 = vmatmul.mubr.bf16.gmra.mxu0 %v1930
      %v1983 = vpop.f32.mrf.mxu0
      %v1984 = vadd.f32 0.0, %v1983
      %v1985 = vpop.f32.mrf.mxu0
      %v1986 = vpop.f32.mrf.mxu0
      %v1987 = vadd.f32 0.0, %v1986
      %v1988 = vpop.f32.mrf.mxu0
      %1989 = vmatprep.mubr.bf16.mxu0 0
      %1990 = vmatmul.mubr.bf16.gmra.mxu0 %v1933
      %v1991 = vpop.f32.mrf.mxu0
      %v1992 = vadd.f32 0.0, %v1991
      %v1993 = vpop.f32.mrf.mxu0
      %v1994 = vpop.f32.mrf.mxu0
      %v1995 = vadd.f32 0.0, %v1994
      %v1996 = vpop.f32.mrf.mxu0
      %1997 = vmatprep.mubr.bf16.mxu0 0
      %1998 = vmatmul.mubr.bf16.gmra.mxu0 %v1936
      %v1999 = vpop.f32.mrf.mxu0
      %v2000 = vadd.f32 0.0, %v1999
      %v2001 = vpop.f32.mrf.mxu0
      %v2002 = vpop.f32.mrf.mxu0
      %v2003 = vadd.f32 0.0, %v2002
      %v2004 = vpop.f32.mrf.mxu0
      %2005 = vdwg.mxu0
      %v2006 = vadd.f32 %v1906, %v1976
      %v2007 = vadd.f32 %v1907, %v1979
      %v2008 = vadd.f32 %v1908, %v1984
      %v2009 = vadd.f32 %v1909, %v1987
      %v2010 = vadd.f32 %v1910, %v1992
      %v2011 = vadd.f32 %v1911, %v1995
      %v2012 = vadd.f32 %v1912, %v2000
      %v2013 = vadd.f32 %v1913, %v2003
      %v2014 = vld [vmem:[%s2] sm:$0x1]
      %v2016 = vlaneseq
      %v2017 = vshrl.u32 %v2016, 7
      %v2018 = vsub.s32 0, %v2017
      %v2019 = vrot.slane %v2014, %v2018
      %v2021 = vadd.f32 %v2006, %v2019
      %v2022 = vadd.f32 %v2007, %v2019
      %v2023 = vadd.f32 %v2008, %v2019
      %v2024 = vadd.f32 %v2009, %v2019
      %v2025 = vadd.f32 %v2010, %v2019
      %v2026 = vadd.f32 %v2011, %v2019
      %v2027 = vadd.f32 %v2012, %v2019
      %v2028 = vadd.f32 %v2013, %v2019
      %vm2029 = vcmp.ge.f32.partialorder %v2021, 0.0
      %vm2030 = vcmp.ge.f32.partialorder %v2022, 0.0
      %vm2031 = vcmp.ge.f32.partialorder %v2023, 0.0
      %vm2032 = vcmp.ge.f32.partialorder %v2024, 0.0
      %vm2033 = vcmp.ge.f32.partialorder %v2025, 0.0
      %vm2034 = vcmp.ge.f32.partialorder %v2026, 0.0
      %vm2035 = vcmp.ge.f32.partialorder %v2027, 0.0
      %vm2036 = vcmp.ge.f32.partialorder %v2028, 0.0
      %v2037 = vmul.f32 %v2021, 0.2
      %v2038 = vmul.f32 %v2022, 0.2
      %v2039 = vmul.f32 %v2023, 0.2
      %v2040 = vmul.f32 %v2024, 0.2
      %v2041 = vmul.f32 %v2025, 0.2
      %v2042 = vmul.f32 %v2026, 0.2
      %v2043 = vmul.f32 %v2027, 0.2
      %v2044 = vmul.f32 %v2028, 0.2
      %v2045 = vsel %vm2029, %v2021, %v2037
      %v2046 = vsel %vm2030, %v2022, %v2038
      %v2047 = vsel %vm2031, %v2023, %v2039
      %v2048 = vsel %vm2032, %v2024, %v2040
      %v2049 = vsel %vm2033, %v2025, %v2041
      %v2050 = vsel %vm2034, %v2026, %v2042
      %v2051 = vsel %vm2035, %v2027, %v2043
      %v2052 = vsel %vm2036, %v2028, %v2044
      %vm2053 = vcmask 523264
      %2054 = vst.msk [vmem:[#allocation2] sm:$0xff] %vm2053, 0.0
      %vm2055 = vcmask 517120
      %2056 = vst.msk [vmem:[#allocation2 + $0x8] sm:$0x3] %vm2055, 0.0
      %2057 = vst.msk [vmem:[#allocation2 + $0x10] sm:$0xff] %vm2053, 0.0
      %2058 = vst.msk [vmem:[#allocation2 + $0x18] sm:$0x3] %vm2055, 0.0
      %2059 = vst.msk [vmem:[#allocation2 + $0x20] sm:$0xff] %vm2053, 0.0
      %2060 = vst.msk [vmem:[#allocation2 + $0x28] sm:$0x3] %vm2055, 0.0
      %2061 = vst.msk [vmem:[#allocation2 + $0x30] sm:$0xff] %vm2053, 0.0
      %2062 = vst.msk [vmem:[#allocation2 + $0x38] sm:$0x3] %vm2055, 0.0
      %2063 = vst.msk [vmem:[#allocation2 + $0x40] sm:$0xff] %vm2053, 0.0
      %2064 = vst.msk [vmem:[#allocation2 + $0x48] sm:$0x3] %vm2055, 0.0
      %2065 = vst.msk [vmem:[#allocation2 + $0x50] sm:$0xff] %vm2053, 0.0
      %2066 = vst.msk [vmem:[#allocation2 + $0x58] sm:$0x3] %vm2055, 0.0
      %2067 = vst.msk [vmem:[#allocation2 + $0x60] sm:$0xff] %vm2053, 0.0
      %2068 = vst.msk [vmem:[#allocation2 + $0x68] sm:$0x3] %vm2055, 0.0
      %2069 = vst.msk [vmem:[#allocation2 + $0x70] sm:$0xff] %vm2053, 0.0
      %2070 = vst.msk [vmem:[#allocation2 + $0x78] sm:$0x3] %vm2055, 0.0
      %2071 = vst.msk [vmem:[#allocation2 + $0x80] sm:$0xff] %vm2053, 0.0
      %2072 = vst.msk [vmem:[#allocation2 + $0x88] sm:$0x3] %vm2055, 0.0
      %2073 = vst.msk [vmem:[#allocation2 + $0x90] sm:$0xff] %vm2053, 0.0
      %2074 = vst.msk [vmem:[#allocation2 + $0x98] sm:$0x3] %vm2055, 0.0
      %s2075 = scalar_lea.vmem [#allocation2], 16
      %2076 = vst.msk [vmem:[%s2075 + $0x1] sm:$0xff] %vm2053, %v2045
      %2077 = vst.msk [vmem:[%s2075 + $0x11] sm:$0xff] %vm2053, %v2046
      %2078 = vst.msk [vmem:[%s2075 + $0x21] sm:$0xff] %vm2053, %v2047
      %2079 = vst.msk [vmem:[%s2075 + $0x31] sm:$0xff] %vm2053, %v2048
      %2080 = vst.msk [vmem:[%s2075 + $0x41] sm:$0xff] %vm2053, %v2049
      %2081 = vst.msk [vmem:[%s2075 + $0x51] sm:$0xff] %vm2053, %v2050
      %2082 = vst.msk [vmem:[%s2075 + $0x61] sm:$0xff] %vm2053, %v2051
      %2083 = vst.msk [vmem:[%s2075 + $0x71] sm:$0xff] %vm2053, %v2052
      %v2084 = vld [vmem:[#allocation2] sm:$0x7f]
      %v2085 = vld [vmem:[#allocation2 + $0x10] sm:$0x7f]
      %v2086 = vld [vmem:[#allocation2 + $0x20] sm:$0x7f]
      %v2087 = vld [vmem:[#allocation2 + $0x30] sm:$0x7f]
      %v2088 = vld [vmem:[#allocation2 + $0x40] sm:$0x7f]
      %v2089 = vld [vmem:[#allocation2 + $0x50] sm:$0x7f]
      %v2090 = vld [vmem:[#allocation2 + $0x60] sm:$0x7f]
      %v2091 = vld [vmem:[%s3] sm:$0x1]
      %v2093 = vlaneseq
      %v2094 = vshrl.u32 %v2093, 7
      %v2095 = vsub.s32 0, %v2094
      %v2096 = vrot.slane %v2091, %v2095
      %v2098 = vmul.f32 %v2084, %v2096
      %v2099 = vmul.f32 %v2085, %v2096
      %v2100 = vmul.f32 %v2086, %v2096
      %v2101 = vmul.f32 %v2087, %v2096
      %v2102 = vmul.f32 %v2088, %v2096
      %v2103 = vmul.f32 %v2089, %v2096
      %v2104 = vmul.f32 %v2090, %v2096
      %v2105 = vadd.f32 %v2098, 0.0
      %v2106 = vadd.f32 %v2099, 0.0
      %v2107 = vadd.f32 %v2100, 0.0
      %v2108 = vadd.f32 %v2101, 0.0
      %v2109 = vadd.f32 %v2102, 0.0
      %v2110 = vadd.f32 %v2103, 0.0
      %v2111 = vadd.f32 %v2104, 0.0
      %v2112 = vld [vmem:[#allocation2 + $0x1] sm:$0x7f]
      %v2113 = vld [vmem:[#allocation2 + $0x11] sm:$0x7f]
      %v2114 = vld [vmem:[#allocation2 + $0x21] sm:$0x7f]
      %v2115 = vld [vmem:[#allocation2 + $0x31] sm:$0x7f]
      %v2116 = vld [vmem:[#allocation2 + $0x41] sm:$0x7f]
      %v2117 = vld [vmem:[#allocation2 + $0x51] sm:$0x7f]
      %v2118 = vld [vmem:[#allocation2 + $0x61] sm:$0x7f]
      %s2119 = scalar_lea.vmem %s3, 1
      %v2120 = vld [vmem:[%s2119] sm:$0x1]
      %v2122 = vlaneseq
      %v2123 = vshrl.u32 %v2122, 7
      %v2124 = vsub.s32 0, %v2123
      %v2125 = vrot.slane %v2120, %v2124
      %v2127 = vmul.f32 %v2112, %v2125
      %v2128 = vmul.f32 %v2113, %v2125
      %v2129 = vmul.f32 %v2114, %v2125
      %v2130 = vmul.f32 %v2115, %v2125
      %v2131 = vmul.f32 %v2116, %v2125
      %v2132 = vmul.f32 %v2117, %v2125
      %v2133 = vmul.f32 %v2118, %v2125
      %v2134 = vadd.f32 %v2105, %v2127
      %v2135 = vadd.f32 %v2106, %v2128
      %v2136 = vadd.f32 %v2107, %v2129
      %v2137 = vadd.f32 %v2108, %v2130
      %v2138 = vadd.f32 %v2109, %v2131
      %v2139 = vadd.f32 %v2110, %v2132
      %v2140 = vadd.f32 %v2111, %v2133
      %v2141 = vld [vmem:[#allocation2 + $0x2] sm:$0x7f]
      %v2142 = vld [vmem:[#allocation2 + $0x12] sm:$0x7f]
      %v2143 = vld [vmem:[#allocation2 + $0x22] sm:$0x7f]
      %v2144 = vld [vmem:[#allocation2 + $0x32] sm:$0x7f]
      %v2145 = vld [vmem:[#allocation2 + $0x42] sm:$0x7f]
      %v2146 = vld [vmem:[#allocation2 + $0x52] sm:$0x7f]
      %v2147 = vld [vmem:[#allocation2 + $0x62] sm:$0x7f]
      %s2148 = scalar_lea.vmem %s3, 2
      %v2149 = vld [vmem:[%s2148] sm:$0x1]
      %v2151 = vlaneseq
      %v2152 = vshrl.u32 %v2151, 7
      %v2153 = vsub.s32 0, %v2152
      %v2154 = vrot.slane %v2149, %v2153
      %v2156 = vmul.f32 %v2141, %v2154
      %v2157 = vmul.f32 %v2142, %v2154
      %v2158 = vmul.f32 %v2143, %v2154
      %v2159 = vmul.f32 %v2144, %v2154
      %v2160 = vmul.f32 %v2145, %v2154
      %v2161 = vmul.f32 %v2146, %v2154
      %v2162 = vmul.f32 %v2147, %v2154
      %v2163 = vadd.f32 %v2134, %v2156
      %v2164 = vadd.f32 %v2135, %v2157
      %v2165 = vadd.f32 %v2136, %v2158
      %v2166 = vadd.f32 %v2137, %v2159
      %v2167 = vadd.f32 %v2138, %v2160
      %v2168 = vadd.f32 %v2139, %v2161
      %v2169 = vadd.f32 %v2140, %v2162
      %v2170 = vld [vmem:[#allocation2 + $0x3] sm:$0x7f]
      %v2171 = vld [vmem:[#allocation2 + $0x13] sm:$0x7f]
      %v2172 = vld [vmem:[#allocation2 + $0x23] sm:$0x7f]
      %v2173 = vld [vmem:[#allocation2 + $0x33] sm:$0x7f]
      %v2174 = vld [vmem:[#allocation2 + $0x43] sm:$0x7f]
      %v2175 = vld [vmem:[#allocation2 + $0x53] sm:$0x7f]
      %v2176 = vld [vmem:[#allocation2 + $0x63] sm:$0x7f]
      %s2177 = scalar_lea.vmem %s3, 3
      %v2178 = vld [vmem:[%s2177] sm:$0x1]
      %v2180 = vlaneseq
      %v2181 = vshrl.u32 %v2180, 7
      %v2182 = vsub.s32 0, %v2181
      %v2183 = vrot.slane %v2178, %v2182
      %v2185 = vmul.f32 %v2170, %v2183
      %v2186 = vmul.f32 %v2171, %v2183
      %v2187 = vmul.f32 %v2172, %v2183
      %v2188 = vmul.f32 %v2173, %v2183
      %v2189 = vmul.f32 %v2174, %v2183
      %v2190 = vmul.f32 %v2175, %v2183
      %v2191 = vmul.f32 %v2176, %v2183
      %v2192 = vadd.f32 %v2163, %v2185
      %v2193 = vadd.f32 %v2164, %v2186
      %v2194 = vadd.f32 %v2165, %v2187
      %v2195 = vadd.f32 %v2166, %v2188
      %v2196 = vadd.f32 %v2167, %v2189
      %v2197 = vadd.f32 %v2168, %v2190
      %v2198 = vadd.f32 %v2169, %v2191
      %v2199 = vld [vmem:[%s2075] sm:$0x7f]
      %v2200 = vld [vmem:[%s2075 + $0x10] sm:$0x7f]
      %v2201 = vld [vmem:[%s2075 + $0x20] sm:$0x7f]
      %v2202 = vld [vmem:[%s2075 + $0x30] sm:$0x7f]
      %v2203 = vld [vmem:[%s2075 + $0x40] sm:$0x7f]
      %v2204 = vld [vmem:[%s2075 + $0x50] sm:$0x7f]
      %v2205 = vld [vmem:[%s2075 + $0x60] sm:$0x7f]
      %s2206 = scalar_lea.vmem %s3, 4
      %v2207 = vld [vmem:[%s2206] sm:$0x1]
      %v2209 = vlaneseq
      %v2210 = vshrl.u32 %v2209, 7
      %v2211 = vsub.s32 0, %v2210
      %v2212 = vrot.slane %v2207, %v2211
      %v2214 = vmul.f32 %v2199, %v2212
      %v2215 = vmul.f32 %v2200, %v2212
      %v2216 = vmul.f32 %v2201, %v2212
      %v2217 = vmul.f32 %v2202, %v2212
      %v2218 = vmul.f32 %v2203, %v2212
      %v2219 = vmul.f32 %v2204, %v2212
      %v2220 = vmul.f32 %v2205, %v2212
      %v2221 = vadd.f32 %v2192, %v2214
      %v2222 = vadd.f32 %v2193, %v2215
      %v2223 = vadd.f32 %v2194, %v2216
      %v2224 = vadd.f32 %v2195, %v2217
      %v2225 = vadd.f32 %v2196, %v2218
      %v2226 = vadd.f32 %v2197, %v2219
      %v2227 = vadd.f32 %v2198, %v2220
      %v2228 = vld [vmem:[%s2075 + $0x1] sm:$0x7f]
      %v2229 = vld [vmem:[%s2075 + $0x11] sm:$0x7f]
      %v2230 = vld [vmem:[%s2075 + $0x21] sm:$0x7f]
      %v2231 = vld [vmem:[%s2075 + $0x31] sm:$0x7f]
      %v2232 = vld [vmem:[%s2075 + $0x41] sm:$0x7f]
      %v2233 = vld [vmem:[%s2075 + $0x51] sm:$0x7f]
      %v2234 = vld [vmem:[%s2075 + $0x61] sm:$0x7f]
      %s2235 = scalar_lea.vmem %s3, 5
      %v2236 = vld [vmem:[%s2235] sm:$0x1]
      %v2238 = vlaneseq
      %v2239 = vshrl.u32 %v2238, 7
      %v2240 = vsub.s32 0, %v2239
      %v2241 = vrot.slane %v2236, %v2240
      %v2243 = vmul.f32 %v2228, %v2241
      %v2244 = vmul.f32 %v2229, %v2241
      %v2245 = vmul.f32 %v2230, %v2241
      %v2246 = vmul.f32 %v2231, %v2241
      %v2247 = vmul.f32 %v2232, %v2241
      %v2248 = vmul.f32 %v2233, %v2241
      %v2249 = vmul.f32 %v2234, %v2241
      %v2250 = vadd.f32 %v2221, %v2243
      %v2251 = vadd.f32 %v2222, %v2244
      %v2252 = vadd.f32 %v2223, %v2245
      %v2253 = vadd.f32 %v2224, %v2246
      %v2254 = vadd.f32 %v2225, %v2247
      %v2255 = vadd.f32 %v2226, %v2248
      %v2256 = vadd.f32 %v2227, %v2249
      %v2257 = vld [vmem:[%s2075 + $0x2] sm:$0x7f]
      %v2258 = vld [vmem:[%s2075 + $0x12] sm:$0x7f]
      %v2259 = vld [vmem:[%s2075 + $0x22] sm:$0x7f]
      %v2260 = vld [vmem:[%s2075 + $0x32] sm:$0x7f]
      %v2261 = vld [vmem:[%s2075 + $0x42] sm:$0x7f]
      %v2262 = vld [vmem:[%s2075 + $0x52] sm:$0x7f]
      %v2263 = vld [vmem:[%s2075 + $0x62] sm:$0x7f]
      %s2264 = scalar_lea.vmem %s3, 6
      %v2265 = vld [vmem:[%s2264] sm:$0x1]
      %v2267 = vlaneseq
      %v2268 = vshrl.u32 %v2267, 7
      %v2269 = vsub.s32 0, %v2268
      %v2270 = vrot.slane %v2265, %v2269
      %v2272 = vmul.f32 %v2257, %v2270
      %v2273 = vmul.f32 %v2258, %v2270
      %v2274 = vmul.f32 %v2259, %v2270
      %v2275 = vmul.f32 %v2260, %v2270
      %v2276 = vmul.f32 %v2261, %v2270
      %v2277 = vmul.f32 %v2262, %v2270
      %v2278 = vmul.f32 %v2263, %v2270
      %v2279 = vadd.f32 %v2250, %v2272
      %v2280 = vadd.f32 %v2251, %v2273
      %v2281 = vadd.f32 %v2252, %v2274
      %v2282 = vadd.f32 %v2253, %v2275
      %v2283 = vadd.f32 %v2254, %v2276
      %v2284 = vadd.f32 %v2255, %v2277
      %v2285 = vadd.f32 %v2256, %v2278
      %v2286 = vld [vmem:[%s2075 + $0x3] sm:$0x7f]
      %v2287 = vld [vmem:[%s2075 + $0x13] sm:$0x7f]
      %v2288 = vld [vmem:[%s2075 + $0x23] sm:$0x7f]
      %v2289 = vld [vmem:[%s2075 + $0x33] sm:$0x7f]
      %v2290 = vld [vmem:[%s2075 + $0x43] sm:$0x7f]
      %v2291 = vld [vmem:[%s2075 + $0x53] sm:$0x7f]
      %v2292 = vld [vmem:[%s2075 + $0x63] sm:$0x7f]
      %s2293 = scalar_lea.vmem %s3, 7
      %v2294 = vld [vmem:[%s2293] sm:$0x1]
      %v2296 = vlaneseq
      %v2297 = vshrl.u32 %v2296, 7
      %v2298 = vsub.s32 0, %v2297
      %v2299 = vrot.slane %v2294, %v2298
      %v2301 = vmul.f32 %v2286, %v2299
      %v2302 = vmul.f32 %v2287, %v2299
      %v2303 = vmul.f32 %v2288, %v2299
      %v2304 = vmul.f32 %v2289, %v2299
      %v2305 = vmul.f32 %v2290, %v2299
      %v2306 = vmul.f32 %v2291, %v2299
      %v2307 = vmul.f32 %v2292, %v2299
      %v2308 = vadd.f32 %v2279, %v2301
      %v2309 = vadd.f32 %v2280, %v2302
      %v2310 = vadd.f32 %v2281, %v2303
      %v2311 = vadd.f32 %v2282, %v2304
      %v2312 = vadd.f32 %v2283, %v2305
      %v2313 = vadd.f32 %v2284, %v2306
      %v2314 = vadd.f32 %v2285, %v2307
      %s2315 = scalar_lea.vmem [#allocation2], 32
      %v2316 = vld [vmem:[%s2315] sm:$0x7f]
      %v2317 = vld [vmem:[%s2315 + $0x10] sm:$0x7f]
      %v2318 = vld [vmem:[%s2315 + $0x20] sm:$0x7f]
      %v2319 = vld [vmem:[%s2315 + $0x30] sm:$0x7f]
      %v2320 = vld [vmem:[%s2315 + $0x40] sm:$0x7f]
      %v2321 = vld [vmem:[%s2315 + $0x50] sm:$0x7f]
      %v2322 = vld [vmem:[%s2315 + $0x60] sm:$0x7f]
      %s2323 = scalar_lea.vmem %s3, 8
      %v2324 = vld [vmem:[%s2323] sm:$0x1]
      %v2326 = vlaneseq
      %v2327 = vshrl.u32 %v2326, 7
      %v2328 = vsub.s32 0, %v2327
      %v2329 = vrot.slane %v2324, %v2328
      %v2331 = vmul.f32 %v2316, %v2329
      %v2332 = vmul.f32 %v2317, %v2329
      %v2333 = vmul.f32 %v2318, %v2329
      %v2334 = vmul.f32 %v2319, %v2329
      %v2335 = vmul.f32 %v2320, %v2329
      %v2336 = vmul.f32 %v2321, %v2329
      %v2337 = vmul.f32 %v2322, %v2329
      %v2338 = vadd.f32 %v2308, %v2331
      %v2339 = vadd.f32 %v2309, %v2332
      %v2340 = vadd.f32 %v2310, %v2333
      %v2341 = vadd.f32 %v2311, %v2334
      %v2342 = vadd.f32 %v2312, %v2335
      %v2343 = vadd.f32 %v2313, %v2336
      %v2344 = vadd.f32 %v2314, %v2337
      %v2345 = vld [vmem:[%s2315 + $0x1] sm:$0x7f]
      %v2346 = vld [vmem:[%s2315 + $0x11] sm:$0x7f]
      %v2347 = vld [vmem:[%s2315 + $0x21] sm:$0x7f]
      %v2348 = vld [vmem:[%s2315 + $0x31] sm:$0x7f]
      %v2349 = vld [vmem:[%s2315 + $0x41] sm:$0x7f]
      %v2350 = vld [vmem:[%s2315 + $0x51] sm:$0x7f]
      %v2351 = vld [vmem:[%s2315 + $0x61] sm:$0x7f]
      %s2352 = scalar_lea.vmem %s3, 9
      %v2353 = vld [vmem:[%s2352] sm:$0x1]
      %v2355 = vlaneseq
      %v2356 = vshrl.u32 %v2355, 7
      %v2357 = vsub.s32 0, %v2356
      %v2358 = vrot.slane %v2353, %v2357
      %v2360 = vmul.f32 %v2345, %v2358
      %v2361 = vmul.f32 %v2346, %v2358
      %v2362 = vmul.f32 %v2347, %v2358
      %v2363 = vmul.f32 %v2348, %v2358
      %v2364 = vmul.f32 %v2349, %v2358
      %v2365 = vmul.f32 %v2350, %v2358
      %v2366 = vmul.f32 %v2351, %v2358
      %v2367 = vadd.f32 %v2338, %v2360
      %v2368 = vadd.f32 %v2339, %v2361
      %v2369 = vadd.f32 %v2340, %v2362
      %v2370 = vadd.f32 %v2341, %v2363
      %v2371 = vadd.f32 %v2342, %v2364
      %v2372 = vadd.f32 %v2343, %v2365
      %v2373 = vadd.f32 %v2344, %v2366
      %v2374 = vld [vmem:[%s2315 + $0x2] sm:$0x7f]
      %v2375 = vld [vmem:[%s2315 + $0x12] sm:$0x7f]
      %v2376 = vld [vmem:[%s2315 + $0x22] sm:$0x7f]
      %v2377 = vld [vmem:[%s2315 + $0x32] sm:$0x7f]
      %v2378 = vld [vmem:[%s2315 + $0x42] sm:$0x7f]
      %v2379 = vld [vmem:[%s2315 + $0x52] sm:$0x7f]
      %v2380 = vld [vmem:[%s2315 + $0x62] sm:$0x7f]
      %s2381 = scalar_lea.vmem %s3, 10
      %v2382 = vld [vmem:[%s2381] sm:$0x1]
      %v2384 = vlaneseq
      %v2385 = vshrl.u32 %v2384, 7
      %v2386 = vsub.s32 0, %v2385
      %v2387 = vrot.slane %v2382, %v2386
      %v2389 = vmul.f32 %v2374, %v2387
      %v2390 = vmul.f32 %v2375, %v2387
      %v2391 = vmul.f32 %v2376, %v2387
      %v2392 = vmul.f32 %v2377, %v2387
      %v2393 = vmul.f32 %v2378, %v2387
      %v2394 = vmul.f32 %v2379, %v2387
      %v2395 = vmul.f32 %v2380, %v2387
      %v2396 = vadd.f32 %v2367, %v2389
      %v2397 = vadd.f32 %v2368, %v2390
      %v2398 = vadd.f32 %v2369, %v2391
      %v2399 = vadd.f32 %v2370, %v2392
      %v2400 = vadd.f32 %v2371, %v2393
      %v2401 = vadd.f32 %v2372, %v2394
      %v2402 = vadd.f32 %v2373, %v2395
      %v2403 = vld [vmem:[%s2315 + $0x3] sm:$0x7f]
      %v2404 = vld [vmem:[%s2315 + $0x13] sm:$0x7f]
      %v2405 = vld [vmem:[%s2315 + $0x23] sm:$0x7f]
      %v2406 = vld [vmem:[%s2315 + $0x33] sm:$0x7f]
      %v2407 = vld [vmem:[%s2315 + $0x43] sm:$0x7f]
      %v2408 = vld [vmem:[%s2315 + $0x53] sm:$0x7f]
      %v2409 = vld [vmem:[%s2315 + $0x63] sm:$0x7f]
      %s2410 = scalar_lea.vmem %s3, 11
      %v2411 = vld [vmem:[%s2410] sm:$0x1]
      %v2413 = vlaneseq
      %v2414 = vshrl.u32 %v2413, 7
      %v2415 = vsub.s32 0, %v2414
      %v2416 = vrot.slane %v2411, %v2415
      %v2418 = vmul.f32 %v2403, %v2416
      %v2419 = vmul.f32 %v2404, %v2416
      %v2420 = vmul.f32 %v2405, %v2416
      %v2421 = vmul.f32 %v2406, %v2416
      %v2422 = vmul.f32 %v2407, %v2416
      %v2423 = vmul.f32 %v2408, %v2416
      %v2424 = vmul.f32 %v2409, %v2416
      %v2425 = vadd.f32 %v2396, %v2418
      %v2426 = vadd.f32 %v2397, %v2419
      %v2427 = vadd.f32 %v2398, %v2420
      %v2428 = vadd.f32 %v2399, %v2421
      %v2429 = vadd.f32 %v2400, %v2422
      %v2430 = vadd.f32 %v2401, %v2423
      %v2431 = vadd.f32 %v2402, %v2424
      %s2432 = scalar_lea.vmem [#allocation2], 48
      %v2433 = vld [vmem:[%s2432] sm:$0x7f]
      %v2434 = vld [vmem:[%s2432 + $0x10] sm:$0x7f]
      %v2435 = vld [vmem:[%s2432 + $0x20] sm:$0x7f]
      %v2436 = vld [vmem:[%s2432 + $0x30] sm:$0x7f]
      %v2437 = vld [vmem:[%s2432 + $0x40] sm:$0x7f]
      %v2438 = vld [vmem:[%s2432 + $0x50] sm:$0x7f]
      %v2439 = vld [vmem:[%s2432 + $0x60] sm:$0x7f]
      %s2440 = scalar_lea.vmem %s3, 12
      %v2441 = vld [vmem:[%s2440] sm:$0x1]
      %v2443 = vlaneseq
      %v2444 = vshrl.u32 %v2443, 7
      %v2445 = vsub.s32 0, %v2444
      %v2446 = vrot.slane %v2441, %v2445
      %v2448 = vmul.f32 %v2433, %v2446
      %v2449 = vmul.f32 %v2434, %v2446
      %v2450 = vmul.f32 %v2435, %v2446
      %v2451 = vmul.f32 %v2436, %v2446
      %v2452 = vmul.f32 %v2437, %v2446
      %v2453 = vmul.f32 %v2438, %v2446
      %v2454 = vmul.f32 %v2439, %v2446
      %v2455 = vadd.f32 %v2425, %v2448
      %v2456 = vadd.f32 %v2426, %v2449
      %v2457 = vadd.f32 %v2427, %v2450
      %v2458 = vadd.f32 %v2428, %v2451
      %v2459 = vadd.f32 %v2429, %v2452
      %v2460 = vadd.f32 %v2430, %v2453
      %v2461 = vadd.f32 %v2431, %v2454
      %v2462 = vld [vmem:[%s2432 + $0x1] sm:$0x7f]
      %v2463 = vld [vmem:[%s2432 + $0x11] sm:$0x7f]
      %v2464 = vld [vmem:[%s2432 + $0x21] sm:$0x7f]
      %v2465 = vld [vmem:[%s2432 + $0x31] sm:$0x7f]
      %v2466 = vld [vmem:[%s2432 + $0x41] sm:$0x7f]
      %v2467 = vld [vmem:[%s2432 + $0x51] sm:$0x7f]
      %v2468 = vld [vmem:[%s2432 + $0x61] sm:$0x7f]
      %s2469 = scalar_lea.vmem %s3, 13
      %v2470 = vld [vmem:[%s2469] sm:$0x1]
      %v2472 = vlaneseq
      %v2473 = vshrl.u32 %v2472, 7
      %v2474 = vsub.s32 0, %v2473
      %v2475 = vrot.slane %v2470, %v2474
      %v2477 = vmul.f32 %v2462, %v2475
      %v2478 = vmul.f32 %v2463, %v2475
      %v2479 = vmul.f32 %v2464, %v2475
      %v2480 = vmul.f32 %v2465, %v2475
      %v2481 = vmul.f32 %v2466, %v2475
      %v2482 = vmul.f32 %v2467, %v2475
      %v2483 = vmul.f32 %v2468, %v2475
      %v2484 = vadd.f32 %v2455, %v2477
      %v2485 = vadd.f32 %v2456, %v2478
      %v2486 = vadd.f32 %v2457, %v2479
      %v2487 = vadd.f32 %v2458, %v2480
      %v2488 = vadd.f32 %v2459, %v2481
      %v2489 = vadd.f32 %v2460, %v2482
      %v2490 = vadd.f32 %v2461, %v2483
      %v2491 = vld [vmem:[%s2432 + $0x2] sm:$0x7f]
      %v2492 = vld [vmem:[%s2432 + $0x12] sm:$0x7f]
      %v2493 = vld [vmem:[%s2432 + $0x22] sm:$0x7f]
      %v2494 = vld [vmem:[%s2432 + $0x32] sm:$0x7f]
      %v2495 = vld [vmem:[%s2432 + $0x42] sm:$0x7f]
      %v2496 = vld [vmem:[%s2432 + $0x52] sm:$0x7f]
      %v2497 = vld [vmem:[%s2432 + $0x62] sm:$0x7f]
      %s2498 = scalar_lea.vmem %s3, 14
      %v2499 = vld [vmem:[%s2498] sm:$0x1]
      %v2501 = vlaneseq
      %v2502 = vshrl.u32 %v2501, 7
      %v2503 = vsub.s32 0, %v2502
      %v2504 = vrot.slane %v2499, %v2503
      %v2506 = vmul.f32 %v2491, %v2504
      %v2507 = vmul.f32 %v2492, %v2504
      %v2508 = vmul.f32 %v2493, %v2504
      %v2509 = vmul.f32 %v2494, %v2504
      %v2510 = vmul.f32 %v2495, %v2504
      %v2511 = vmul.f32 %v2496, %v2504
      %v2512 = vmul.f32 %v2497, %v2504
      %v2513 = vadd.f32 %v2484, %v2506
      %v2514 = vadd.f32 %v2485, %v2507
      %v2515 = vadd.f32 %v2486, %v2508
      %v2516 = vadd.f32 %v2487, %v2509
      %v2517 = vadd.f32 %v2488, %v2510
      %v2518 = vadd.f32 %v2489, %v2511
      %v2519 = vadd.f32 %v2490, %v2512
      %v2520 = vld [vmem:[%s2432 + $0x3] sm:$0x7f]
      %v2521 = vld [vmem:[%s2432 + $0x13] sm:$0x7f]
      %v2522 = vld [vmem:[%s2432 + $0x23] sm:$0x7f]
      %v2523 = vld [vmem:[%s2432 + $0x33] sm:$0x7f]
      %v2524 = vld [vmem:[%s2432 + $0x43] sm:$0x7f]
      %v2525 = vld [vmem:[%s2432 + $0x53] sm:$0x7f]
      %v2526 = vld [vmem:[%s2432 + $0x63] sm:$0x7f]
      %s2527 = scalar_lea.vmem %s3, 15
      %v2528 = vld [vmem:[%s2527] sm:$0x1]
      %v2530 = vlaneseq
      %v2531 = vshrl.u32 %v2530, 7
      %v2532 = vsub.s32 0, %v2531
      %v2533 = vrot.slane %v2528, %v2532
      %v2535 = vmul.f32 %v2520, %v2533
      %v2536 = vmul.f32 %v2521, %v2533
      %v2537 = vmul.f32 %v2522, %v2533
      %v2538 = vmul.f32 %v2523, %v2533
      %v2539 = vmul.f32 %v2524, %v2533
      %v2540 = vmul.f32 %v2525, %v2533
      %v2541 = vmul.f32 %v2526, %v2533
      %v2542 = vadd.f32 %v2513, %v2535
      %v2543 = vadd.f32 %v2514, %v2536
      %v2544 = vadd.f32 %v2515, %v2537
      %v2545 = vadd.f32 %v2516, %v2538
      %v2546 = vadd.f32 %v2517, %v2539
      %v2547 = vadd.f32 %v2518, %v2540
      %v2548 = vadd.f32 %v2519, %v2541
      %vm2549 = vcmask 522240
      %v2550 = vsel %vm2549, %v2542, 0.0
      %2551 = vadd.xlane.f32.xlu0 %v2550
      %v2552 = vpop.xlane.xlu0 %2551
      %v2553 = vsel %vm2549, %v2543, 0.0
      %2554 = vadd.xlane.f32.xlu0 %v2553
      %v2555 = vpop.xlane.xlu0 %2554
      %v2556 = vsel %vm2549, %v2544, 0.0
      %2557 = vadd.xlane.f32.xlu0 %v2556
      %v2558 = vpop.xlane.xlu0 %2557
      %v2559 = vsel %vm2549, %v2545, 0.0
      %2560 = vadd.xlane.f32.xlu0 %v2559
      %v2561 = vpop.xlane.xlu0 %2560
      %v2562 = vsel %vm2549, %v2546, 0.0
      %2563 = vadd.xlane.f32.xlu0 %v2562
      %v2564 = vpop.xlane.xlu0 %2563
      %v2565 = vsel %vm2549, %v2547, 0.0
      %2566 = vadd.xlane.f32.xlu0 %v2565
      %v2567 = vpop.xlane.xlu0 %2566
      %v2568 = vsel %vm2549, %v2548, 0.0
      %2569 = vadd.xlane.f32.xlu0 %v2568
      %v2570 = vpop.xlane.xlu0 %2569
      %s2571 = sld [smem:[#allocation3]]
      %v2572 = vstv %s2571
      %v2573 = vadd.f32 %v2552, %v2572
      %v2574 = vadd.f32 %v2555, %v2572
      %v2575 = vadd.f32 %v2558, %v2572
      %v2576 = vadd.f32 %v2561, %v2572
      %v2577 = vadd.f32 %v2564, %v2572
      %v2578 = vadd.f32 %v2567, %v2572
      %v2579 = vadd.f32 %v2570, %v2572
      %v2587 = vlaneseq
      %v2588 = vand.u32 %v2587, 127
      %v2589 = vlaneseq
      %v2590 = vshrl.u32 %v2589, 7
      %v2591 = vsub.s32 %v2588, %v2590
      %v2592 = vrot.slane %v2573, %v2591
      %v2593 = vlaneseq
      %v2594 = vshrl.u32 %v2593, 7
      %v2595 = vsub.s32 %v2588, %v2594
      %v2596 = vrot.slane %v2574, %v2595
      %v2597 = vlaneseq
      %v2598 = vshrl.u32 %v2597, 7
      %v2599 = vsub.s32 %v2588, %v2598
      %v2600 = vrot.slane %v2575, %v2599
      %v2601 = vlaneseq
      %v2602 = vshrl.u32 %v2601, 7
      %v2603 = vsub.s32 %v2588, %v2602
      %v2604 = vrot.slane %v2576, %v2603
      %v2605 = vlaneseq
      %v2606 = vshrl.u32 %v2605, 7
      %v2607 = vsub.s32 %v2588, %v2606
      %v2608 = vrot.slane %v2577, %v2607
      %v2609 = vlaneseq
      %v2610 = vshrl.u32 %v2609, 7
      %v2611 = vsub.s32 %v2588, %v2610
      %v2612 = vrot.slane %v2578, %v2611
      %v2613 = vlaneseq
      %v2614 = vshrl.u32 %v2613, 7
      %v2615 = vsub.s32 %v2588, %v2614
      %v2616 = vrot.slane %v2579, %v2615
      %vm2617 = vcmask 1041409
      %v2618 = vsel %vm2617, %v2596, %v2592
      %vm2619 = vcmask 1042434
      %v2620 = vsel %vm2619, %v2600, %v2618
      %vm2621 = vcmask 1043459
      %v2622 = vsel %vm2621, %v2604, %v2620
      %vm2623 = vcmask 1044484
      %v2624 = vsel %vm2623, %v2608, %v2622
      %vm2625 = vcmask 1045509
      %v2626 = vsel %vm2625, %v2612, %v2624
      %vm2627 = vcmask 1046534
      %v2628 = vsel %vm2627, %v2616, %v2626
      %vm2630 = vcmask 55296
      %2631 = vst.msk [vmem:[%s228] sm:$0x7f] %vm2630, %v2628
      %p2632 = scmp.lt.s32.totalorder %s17, 1
      %s2633 = scalar_select %p2632, %s17, 1
      %s2634 = smul.addr %s2633, 8
      %s2635 = scalar_lea.vmem %s5, %s2634
      // Predicated region
      $region41: #{tpu_custom_call.1} parent=39 // pred_check
        %p2636 = pneg %p145
      $region42: #{tpu_custom_call.1} parent=39 // pred_check_branch
        %2638 = sbr.rel (%p2636) target = $region44
      $region43: #{tpu_custom_call.1} parent=39 // pred_region
        _
      $region44: #{tpu_custom_call.1} parent=39 // pred_fallthru
        _
    $region40: #{tpu_custom_call.1} parent=5 // pred_fallthru
      _
    %p2639 = scmp.le.s32.totalorder 2, %s12
    // Predicated region
    $region45: #{tpu_custom_call.1} parent=5 // pred_check
      %p2640 = pneg %p2639
    $region46: #{tpu_custom_call.1} parent=5 // pred_check_branch
      %2642 = sbr.rel (%p2640) target = $region48
    $region47: #{tpu_custom_call.1} parent=5 // pred_region
      %s2643 = ssub.s32 %s12, 2
      // Predicated region
      $region49: #{tpu_custom_call.1} parent=47 // pred_check
        %p2644 = pneg %p151
      $region50: #{tpu_custom_call.1} parent=47 // pred_check_branch
        %2646 = sbr.rel (%p2644) target = $region52
      $region51: #{tpu_custom_call.1} parent=47 // pred_region
        %p2647 = scmp.lt.s32.totalorder %s18, 1
        %s2648 = scalar_select %p2647, %s18, 1
        %s2649 = smul.addr %s2648, 8
        %s2650 = scalar_lea.vmem %s5, %s2649
      $region52: #{tpu_custom_call.1} parent=47 // pred_fallthru
        _
    $region48: #{tpu_custom_call.1} parent=5 // pred_fallthru
      _
  $region6: #{tpu_custom_call.1} parent=0 // loop_footer
    %s16 = sadd.s32 1, %s12
  $region7: #{tpu_custom_call.1} parent=0 // loop_footer_branch
    %11 = sbr.rel target = $region3
  $region8: #{tpu_custom_call.1} parent=0 // loop_exit
    _

</llo_original>
